<compile_context>
chip_gen: v6e
topology: v6e:2x2x1
jax: 0.10.0
libtpu: 0.0.40
codegen_flags: <defaults>
</compile_context>

<pallas_src>
import functools

import jax
import jax.numpy as jnp
from jax.experimental import pallas as pl
from jax.experimental.pallas import tpu as pltpu

# ----------------------------- config (small) -------------------------------
VOCAB_SIZE = 50
EMB_SIZE = 32
HIDDEN_SIZE = 32
NUM_LAYERS = 2
SEQ_LEN = 8
BATCH = 2


# ------------------------------ Pallas kernel -------------------------------
def _lstm_kernel(x_ref, mask_ref, wih_ref, whh_ref, b_ref,
                 out_ref, hn_ref, cn_ref,
                 xbuf, gbuf):
    """Multi-layer LSTM over the full (small) sequence, all resident in VMEM.

    x_ref   : (T, Bp, Din)  embedded inputs (Din == max(E, H), zero padded)
    mask_ref: (T, Bp, H)    1.0 where t < lengths[b], else 0.0 (pad rows too)
    wih_ref : (L, Din, 4H)  input->gates weights (layer>0 rows beyond H are 0)
    whh_ref : (L, H, 4H)    hidden->gates weights
    b_ref   : (L, 1, 4H)    combined bias (b_ih + b_hh)
    out_ref : (T, Bp, H)    padded outputs (zeros at padded timesteps / rows)
    hn_ref  : (L, Bp, H)    final hidden state per layer
    cn_ref  : (L, Bp, H)    final cell state per layer
    xbuf    : (T, Bp, Din)  scratch: current layer's input sequence
    gbuf    : (T, Bp, 4H)   scratch: hoisted input-projection gates
    """
    T, Bp, Din = x_ref.shape
    L, H, _ = whh_ref.shape
    G = 4 * H

    # Layer-0 input; later layers overwrite [:, :, :H] (tail cols only ever
    # multiply zero weight rows for layer > 0, so they can stay stale).
    xbuf[...] = x_ref[...]

    # Static lane mask selecting the "g" (cell candidate) gate block.
    lane = jax.lax.broadcasted_iota(jnp.int32, (Bp, G), dimension=1)
    is_g = jnp.logical_and(lane >= 2 * H, lane < 3 * H)

    for layer in range(L):                           # static, small
        w_hh = whh_ref[layer]                        # (H, 4H)
        last = layer == L - 1

        # Hoisted input projection + bias: one (T*Bp, Din) @ (Din, 4H) matmul.
        gx = jnp.dot(xbuf[...].reshape(T * Bp, Din), wih_ref[layer],
                     preferred_element_type=jnp.float32) + b_ref[layer]
        gbuf[...] = gx.reshape(T, Bp, G)

        def step(t, carry, w_hh=w_hh, last=last):
            h, c = carry
            gates = gbuf[t] + jnp.dot(h, w_hh,
                                      preferred_element_type=jnp.float32)
            # 2 full-width EUP ops + 1 select instead of 4 quarter-width ones.
            act = jnp.where(is_g, jnp.tanh(gates), jax.nn.sigmoid(gates))
            i_g = act[:, 0 * H:1 * H]
            f_g = act[:, 1 * H:2 * H]
            g_g = act[:, 2 * H:3 * H]
            o_g = act[:, 3 * H:4 * H]
            c_new = f_g * c + i_g * g_g
            h_new = o_g * jnp.tanh(c_new)

            valid = mask_ref[t] > 0.5                # (Bp, H) bool
            h = jnp.where(valid, h_new, h)
            c = jnp.where(valid, c_new, c)
            out_t = jnp.where(valid, h_new, 0.0)     # zeros at padded positions
            if last:
                out_ref[t] = out_t                   # write output directly
            elif Din == H:
                xbuf[t] = out_t                      # feed next layer
            else:
                xbuf[t, :, 0:H] = out_t              # tail cols hit zero rows
            return (h, c)

        h0 = jnp.zeros((Bp, H), jnp.float32)
        c0 = jnp.zeros((Bp, H), jnp.float32)
        h_fin, c_fin = jax.lax.fori_loop(0, T, step, (h0, c0), unroll=True)
        hn_ref[layer] = h_fin
        cn_ref[layer] = c_fin


def lstm_pallas(x_emb, mask, w_ih, w_hh, bias):
    T, Bp, Din = x_emb.shape
    L, H, _ = w_hh.shape
    vmem = functools.partial(pl.BlockSpec, memory_space=pltpu.MemorySpace.VMEM)
    return pl.pallas_call(
        _lstm_kernel,
        out_shape=(
            jax.ShapeDtypeStruct((T, Bp, H), jnp.float32),   # outputs
            jax.ShapeDtypeStruct((L, Bp, H), jnp.float32),   # h_n
            jax.ShapeDtypeStruct((L, Bp, H), jnp.float32),   # c_n
        ),
        in_specs=[vmem()] * 5,
        out_specs=(vmem(), vmem(), vmem()),
        scratch_shapes=[
            pltpu.VMEM((T, Bp, Din), jnp.float32),      # layer input buffer
            pltpu.VMEM((T, Bp, 4 * H), jnp.float32),    # hoisted gates buffer
        ],
    )(x_emb, mask, w_ih, w_hh, bias)


# --------------------------- parameter construction -------------------------
def init_params(key):
    ks = jax.random.split(key, 2 + 4 * NUM_LAYERS)
    emb_table = jax.random.normal(ks[0], (VOCAB_SIZE, EMB_SIZE), jnp.float32) * 0.1

    H = HIDDEN_SIZE
    Din = max(EMB_SIZE, H)
    scale = 1.0 / jnp.sqrt(H)
    w_ih, w_hh, bias = [], [], []
    for l in range(NUM_LAYERS):
        in_dim = EMB_SIZE if l == 0 else H
        k_ih, k_hh, k_bi, k_bh = ks[2 + 4 * l: 6 + 4 * l]
        wi = jax.random.uniform(k_ih, (in_dim, 4 * H), jnp.float32, -scale, scale)
        # zero-pad input dim up to Din so all layers can be stacked
        wi = jnp.pad(wi, ((0, Din - in_dim), (0, 0)))
        wh = jax.random.uniform(k_hh, (H, 4 * H), jnp.float32, -scale, scale)
        bi = jax.random.uniform(k_bi, (4 * H,), jnp.float32, -scale, scale)
        bh = jax.random.uniform(k_bh, (4 * H,), jnp.float32, -scale, scale)
        w_ih.append(wi)
        w_hh.append(wh)
        bias.append((bi + bh)[None, :])
    return emb_table, jnp.stack(w_ih), jnp.stack(w_hh), jnp.stack(bias)


# ------------------------------ full forward ---------------------------------
def rnn_encoder_forward(tokens, lengths, emb_table, w_ih, w_hh, bias):
    """tokens: (T, B) int32, lengths: (B,) int32 (sorted descending, like pack)."""
    T, B = tokens.shape
    H = HIDDEN_SIZE
    Din = w_ih.shape[1]
    Bp = ((B + 7) // 8) * 8                  # pad batch to the 8-sublane granule
    # embedding lookup (glue, plain JAX gather)
    x = jnp.take(emb_table, tokens.reshape(-1), axis=0).reshape(T, B, EMB_SIZE)
    x = jnp.pad(x, ((0, 0), (0, Bp - B), (0, Din - EMB_SIZE))).astype(jnp.float32)
    len_p = jnp.pad(lengths, (0, Bp - B))    # pad rows get length 0 -> fully masked
    mask = (jnp.arange(T)[:, None] < len_p[None, :]).astype(jnp.float32)
    mask = jnp.broadcast_to(mask[:, :, None], (T, Bp, H))
    outputs, h_n, c_n = lstm_pallas(x, mask, w_ih, w_hh, bias)
    return outputs[:, :B], (h_n[:, :B], c_n[:, :B])


# ------------------------------ pure-JAX reference ---------------------------
def lstm_ref(x, mask, w_ih, w_hh, bias):
    T, B, _ = x.shape
    L, H, _ = w_hh.shape
    layer_in = x
    hns, cns = [], []
    for l in range(L):
        h = jnp.zeros((B, H), jnp.float32)
        c = jnp.zeros((B, H), jnp.float32)
        outs = []
        for t in range(T):
            g = (jnp.dot(layer_in[t], w_ih[l]) + jnp.dot(h, w_hh[l]) + bias[l])
            i_g = jax.nn.sigmoid(g[:, :H])
            f_g = jax.nn.sigmoid(g[:, H:2 * H])
            g_g = jnp.tanh(g[:, 2 * H:3 * H])
            o_g = jax.nn.sigmoid(g[:, 3 * H:])
            c_new = f_g * c + i_g * g_g
            h_new = o_g * jnp.tanh(c_new)
            m = mask[t]
            h = m * h_new + (1 - m) * h
            c = m * c_new + (1 - m) * c
            outs.append(m * h_new)
        nxt = jnp.stack(outs)  # (T, B, H)
        layer_in = jnp.pad(nxt, ((0, 0), (0, 0), (0, x.shape[2] - H)))
        hns.append(h)
        cns.append(c)
    return layer_in[:, :, :H], jnp.stack(hns), jnp.stack(cns)


# ----------------------------------- main ------------------------------------
if __name__ == "__main__":
    key = jax.random.PRNGKey(0)
    k_param, k_tok = jax.random.split(key)
    emb_table, w_ih, w_hh, bias = init_params(k_param)

    tokens = jax.random.randint(k_tok, (SEQ_LEN, BATCH), 0, VOCAB_SIZE, jnp.int32)
    lengths = jnp.array([SEQ_LEN, 5], dtype=jnp.int32)  # sorted desc, like pack()

    outputs, (h_n, c_n) = rnn_encoder_forward(
        tokens, lengths, emb_table, w_ih, w_hh, bias)
    jax.block_until_ready((outputs, h_n, c_n))

    # correctness check against a pure-JAX reference (also default precision)
    T, B = tokens.shape
    Din = w_ih.shape[1]
    x = jnp.take(emb_table, tokens.reshape(-1), axis=0).reshape(T, B, EMB_SIZE)
    x = jnp.pad(x, ((0, 0), (0, 0), (0, Din - EMB_SIZE)))
    mask = (jnp.arange(T)[:, None] < lengths[None, :]).astype(jnp.float32)[:, :, None]
    ref_out, ref_h, ref_c = lstm_ref(x, mask, w_ih, w_hh, bias)

    assert outputs.shape == (SEQ_LEN, BATCH, HIDDEN_SIZE)
    assert h_n.shape == (NUM_LAYERS, BATCH, HIDDEN_SIZE)
    assert c_n.shape == (NUM_LAYERS, BATCH, HIDDEN_SIZE)
    # tolerance loosened slightly (1e-3 -> 2e-3): HIGHEST precision dropped in
    # favor of bf16-native MXU passes per the performance review.
    assert jnp.allclose(outputs, ref_out, atol=2e-3, rtol=2e-3)
    assert jnp.allclose(h_n, ref_h, atol=2e-3, rtol=2e-3)
    assert jnp.allclose(c_n, ref_c, atol=2e-3, rtol=2e-3)

    print("KERNEL_OK")
</pallas_src>

<mosaic_0001>
module attributes {stable_mosaic.version = 11 : i64} {
  func.func @_lstm_kernel(%arg0: memref<8x8x32xf32, #tpu.memory_space<vmem>>, %arg1: memref<8x8x32xf32, #tpu.memory_space<vmem>>, %arg2: memref<2x32x128xf32, #tpu.memory_space<vmem>>, %arg3: memref<2x32x128xf32, #tpu.memory_space<vmem>>, %arg4: memref<2x1x128xf32, #tpu.memory_space<vmem>>, %arg5: memref<8x8x32xf32, #tpu.memory_space<vmem>>, %arg6: memref<2x8x32xf32, #tpu.memory_space<vmem>>, %arg7: memref<2x8x32xf32, #tpu.memory_space<vmem>>, %arg8: memref<8x8x32xf32, #tpu.memory_space<vmem>>, %arg9: memref<8x8x128xf32, #tpu.memory_space<vmem>>) attributes {dimension_semantics = [], scalar_prefetch = 0 : i64, scratch_operands = 2 : i64, tpu.core_type = #tpu.core_type<tc>} {
    %c0 = arith.constant 0 : index
    %c0_0 = arith.constant 0 : index
    %c0_1 = arith.constant 0 : index
    %0 = vector.load %arg0[%c0, %c0_0, %c0_1] : memref<8x8x32xf32, #tpu.memory_space<vmem>>, vector<8x8x32xf32>
    %c0_2 = arith.constant 0 : index
    %c0_3 = arith.constant 0 : index
    %c0_4 = arith.constant 0 : index
    %1 = vector.load %arg8[%c0_2, %c0_3, %c0_4] : memref<8x8x32xf32, #tpu.memory_space<vmem>>, vector<8x8x32xf32>
    tpu.vector_store %arg8[%c0_2, %c0_3, %c0_4], %0 {strides = array<i32>} : memref<8x8x32xf32, #tpu.memory_space<vmem>>, vector<8x8x32xf32>,
    %2 = tpu.iota {dimensions = array<i32: 1>} : vector<8x128xi32>
    %c64_i32 = arith.constant 64 : i32
    %3 = vector.broadcast %c64_i32 : i32 to vector<8x128xi32>
    %4 = arith.cmpi sge, %2, %3 : vector<8x128xi32>
    %c96_i32 = arith.constant 96 : i32
    %5 = vector.broadcast %c96_i32 : i32 to vector<8x128xi32>
    %6 = arith.cmpi slt, %2, %5 : vector<8x128xi32>
    %7 = arith.andi %4, %6 : vector<8x128xi1>
    %c0_5 = arith.constant 0 : index
    %c0_6 = arith.constant 0 : index
    %c0_7 = arith.constant 0 : index
    %8 = vector.load %arg3[%c0_5, %c0_6, %c0_7] : memref<2x32x128xf32, #tpu.memory_space<vmem>>, vector<1x32x128xf32>
    %9 = vector.shape_cast %8 : vector<1x32x128xf32> to vector<32x128xf32>
    %c0_8 = arith.constant 0 : index
    %c0_9 = arith.constant 0 : index
    %c0_10 = arith.constant 0 : index
    %10 = vector.load %arg8[%c0_8, %c0_9, %c0_10] : memref<8x8x32xf32, #tpu.memory_space<vmem>>, vector<8x8x32xf32>
    %11 = vector.shape_cast %10 : vector<8x8x32xf32> to vector<64x32xf32>
    %c0_11 = arith.constant 0 : index
    %c0_12 = arith.constant 0 : index
    %c0_13 = arith.constant 0 : index
    %12 = vector.load %arg2[%c0_11, %c0_12, %c0_13] : memref<2x32x128xf32, #tpu.memory_space<vmem>>, vector<1x32x128xf32>
    %13 = vector.shape_cast %12 : vector<1x32x128xf32> to vector<32x128xf32>
    %cst = arith.constant dense<0.000000e+00> : vector<64x128xf32>
    %14 = tpu.matmul %11, %13, %cst {dimension_numbers = #tpu.dot_dimension_numbers<[1], [0], [0], [1], [0, 0, 1, 1], [], []>} : vector<64x32xf32>, vector<32x128xf32>, vector<64x128xf32> -> vector<64x128xf32>
    %c0_14 = arith.constant 0 : index
    %c0_15 = arith.constant 0 : index
    %c0_16 = arith.constant 0 : index
    %15 = vector.load %arg4[%c0_14, %c0_15, %c0_16] : memref<2x1x128xf32, #tpu.memory_space<vmem>>, vector<1x1x128xf32>
    %16 = vector.shape_cast %15 : vector<1x1x128xf32> to vector<1x128xf32>
    %17 = vector.broadcast %16 : vector<1x128xf32> to vector<64x128xf32>
    %18 = arith.addf %14, %17 : vector<64x128xf32>
    %19 = vector.shape_cast %18 : vector<64x128xf32> to vector<8x8x128xf32>
    %c0_17 = arith.constant 0 : index
    %c0_18 = arith.constant 0 : index
    %c0_19 = arith.constant 0 : index
    %20 = vector.load %arg9[%c0_17, %c0_18, %c0_19] : memref<8x8x128xf32, #tpu.memory_space<vmem>>, vector<8x8x128xf32>
    tpu.vector_store %arg9[%c0_17, %c0_18, %c0_19], %19 {strides = array<i32>} : memref<8x8x128xf32, #tpu.memory_space<vmem>>, vector<8x8x128xf32>,
    %cst_20 = arith.constant 0.000000e+00 : f32
    %21 = vector.broadcast %cst_20 : f32 to vector<8x32xf32>
    %cst_21 = arith.constant 0.000000e+00 : f32
    %22 = vector.broadcast %cst_21 : f32 to vector<8x32xf32>
    %c0_i32 = arith.constant 0 : i32
    %23 = arith.index_cast %c0_i32 : i32 to index
    %c0_22 = arith.constant 0 : index
    %c0_23 = arith.constant 0 : index
    %24 = vector.load %arg9[%23, %c0_22, %c0_23] : memref<8x8x128xf32, #tpu.memory_space<vmem>>, vector<1x8x128xf32>
    %25 = vector.shape_cast %24 : vector<1x8x128xf32> to vector<8x128xf32>
    %cst_24 = arith.constant dense<0.000000e+00> : vector<8x128xf32>
    %26 = tpu.matmul %21, %9, %cst_24 {dimension_numbers = #tpu.dot_dimension_numbers<[1], [0], [0], [1], [0, 0, 1, 1], [], []>} : vector<8x32xf32>, vector<32x128xf32>, vector<8x128xf32> -> vector<8x128xf32>
    %27 = arith.addf %25, %26 : vector<8x128xf32>
    %28 = math.tanh %27 : vector<8x128xf32>
    %29 = arith.negf %27 : vector<8x128xf32>
    %30 = math.exp %29 : vector<8x128xf32>
    %cst_25 = arith.constant 1.000000e+00 : f32
    %31 = vector.broadcast %cst_25 : f32 to vector<8x128xf32>
    %32 = arith.addf %31, %30 : vector<8x128xf32>
    %33 = arith.divf %31, %32 : vector<8x128xf32>
    %34 = arith.select %7, %28, %33 : vector<8x128xi1>, vector<8x128xf32>
    %35 = vector.extract_strided_slice %34 {offsets = [0, 0], sizes = [8, 32], strides = [1, 1]} : vector<8x128xf32> to vector<8x32xf32>
    %36 = vector.extract_strided_slice %34 {offsets = [0, 32], sizes = [8, 32], strides = [1, 1]} : vector<8x128xf32> to vector<8x32xf32>
    %37 = vector.extract_strided_slice %34 {offsets = [0, 64], sizes = [8, 32], strides = [1, 1]} : vector<8x128xf32> to vector<8x32xf32>
    %38 = vector.extract_strided_slice %34 {offsets = [0, 96], sizes = [8, 32], strides = [1, 1]} : vector<8x128xf32> to vector<8x32xf32>
    %39 = arith.mulf %36, %22 : vector<8x32xf32>
    %40 = arith.mulf %35, %37 : vector<8x32xf32>
    %41 = arith.addf %39, %40 : vector<8x32xf32>
    %42 = math.tanh %41 : vector<8x32xf32>
    %43 = arith.mulf %38, %42 : vector<8x32xf32>
    %44 = arith.index_cast %c0_i32 : i32 to index
    %c0_26 = arith.constant 0 : index
    %c0_27 = arith.constant 0 : index
    %45 = vector.load %arg1[%44, %c0_26, %c0_27] : memref<8x8x32xf32, #tpu.memory_space<vmem>>, vector<1x8x32xf32>
    %46 = vector.shape_cast %45 : vector<1x8x32xf32> to vector<8x32xf32>
    %cst_28 = arith.constant 5.000000e-01 : f32
    %47 = vector.broadcast %cst_28 : f32 to vector<8x32xf32>
    %48 = arith.cmpf ogt, %46, %47 : vector<8x32xf32>
    %49 = arith.select %48, %43, %21 : vector<8x32xi1>, vector<8x32xf32>
    %50 = arith.select %48, %41, %22 : vector<8x32xi1>, vector<8x32xf32>
    %cst_29 = arith.constant 0.000000e+00 : f32
    %51 = vector.broadcast %cst_29 : f32 to vector<8x32xf32>
    %52 = arith.select %48, %43, %51 : vector<8x32xi1>, vector<8x32xf32>
    %53 = arith.index_cast %c0_i32 : i32 to index
    %c0_30 = arith.constant 0 : index
    %c0_31 = arith.constant 0 : index
    %54 = vector.load %arg8[%53, %c0_30, %c0_31] : memref<8x8x32xf32, #tpu.memory_space<vmem>>, vector<1x8x32xf32>
    %55 = vector.shape_cast %54 : vector<1x8x32xf32> to vector<8x32xf32>
    %56 = vector.shape_cast %52 : vector<8x32xf32> to vector<1x8x32xf32>
    tpu.vector_store %arg8[%53, %c0_30, %c0_31], %56 {strides = array<i32>} : memref<8x8x32xf32, #tpu.memory_space<vmem>>, vector<1x8x32xf32>,
    %c1_i32 = arith.constant 1 : i32
    %57 = arith.index_cast %c1_i32 : i32 to index
    %c0_32 = arith.constant 0 : index
    %c0_33 = arith.constant 0 : index
    %58 = vector.load %arg9[%57, %c0_32, %c0_33] : memref<8x8x128xf32, #tpu.memory_space<vmem>>, vector<1x8x128xf32>
    %59 = vector.shape_cast %58 : vector<1x8x128xf32> to vector<8x128xf32>
    %cst_34 = arith.constant dense<0.000000e+00> : vector<8x128xf32>
    %60 = tpu.matmul %49, %9, %cst_34 {dimension_numbers = #tpu.dot_dimension_numbers<[1], [0], [0], [1], [0, 0, 1, 1], [], []>} : vector<8x32xf32>, vector<32x128xf32>, vector<8x128xf32> -> vector<8x128xf32>
    %61 = arith.addf %59, %60 : vector<8x128xf32>
    %62 = math.tanh %61 : vector<8x128xf32>
    %63 = arith.negf %61 : vector<8x128xf32>
    %64 = math.exp %63 : vector<8x128xf32>
    %cst_35 = arith.constant 1.000000e+00 : f32
    %65 = vector.broadcast %cst_35 : f32 to vector<8x128xf32>
    %66 = arith.addf %65, %64 : vector<8x128xf32>
    %67 = arith.divf %65, %66 : vector<8x128xf32>
    %68 = arith.select %7, %62, %67 : vector<8x128xi1>, vector<8x128xf32>
    %69 = vector.extract_strided_slice %68 {offsets = [0, 0], sizes = [8, 32], strides = [1, 1]} : vector<8x128xf32> to vector<8x32xf32>
    %70 = vector.extract_strided_slice %68 {offsets = [0, 32], sizes = [8, 32], strides = [1, 1]} : vector<8x128xf32> to vector<8x32xf32>
    %71 = vector.extract_strided_slice %68 {offsets = [0, 64], sizes = [8, 32], strides = [1, 1]} : vector<8x128xf32> to vector<8x32xf32>
    %72 = vector.extract_strided_slice %68 {offsets = [0, 96], sizes = [8, 32], strides = [1, 1]} : vector<8x128xf32> to vector<8x32xf32>
    %73 = arith.mulf %70, %50 : vector<8x32xf32>
    %74 = arith.mulf %69, %71 : vector<8x32xf32>
    %75 = arith.addf %73, %74 : vector<8x32xf32>
    %76 = math.tanh %75 : vector<8x32xf32>
    %77 = arith.mulf %72, %76 : vector<8x32xf32>
    %78 = arith.index_cast %c1_i32 : i32 to index
    %c0_36 = arith.constant 0 : index
    %c0_37 = arith.constant 0 : index
    %79 = vector.load %arg1[%78, %c0_36, %c0_37] : memref<8x8x32xf32, #tpu.memory_space<vmem>>, vector<1x8x32xf32>
    %80 = vector.shape_cast %79 : vector<1x8x32xf32> to vector<8x32xf32>
    %cst_38 = arith.constant 5.000000e-01 : f32
    %81 = vector.broadcast %cst_38 : f32 to vector<8x32xf32>
    %82 = arith.cmpf ogt, %80, %81 : vector<8x32xf32>
    %83 = arith.select %82, %77, %49 : vector<8x32xi1>, vector<8x32xf32>
    %84 = arith.select %82, %75, %50 : vector<8x32xi1>, vector<8x32xf32>
    %cst_39 = arith.constant 0.000000e+00 : f32
    %85 = vector.broadcast %cst_39 : f32 to vector<8x32xf32>
    %86 = arith.select %82, %77, %85 : vector<8x32xi1>, vector<8x32xf32>
    %87 = arith.index_cast %c1_i32 : i32 to index
    %c0_40 = arith.constant 0 : index
    %c0_41 = arith.constant 0 : index
    %88 = vector.load %arg8[%87, %c0_40, %c0_41] : memref<8x8x32xf32, #tpu.memory_space<vmem>>, vector<1x8x32xf32>
    %89 = vector.shape_cast %88 : vector<1x8x32xf32> to vector<8x32xf32>
    %90 = vector.shape_cast %86 : vector<8x32xf32> to vector<1x8x32xf32>
    tpu.vector_store %arg8[%87, %c0_40, %c0_41], %90 {strides = array<i32>} : memref<8x8x32xf32, #tpu.memory_space<vmem>>, vector<1x8x32xf32>,
    %c2_i32 = arith.constant 2 : i32
    %91 = arith.index_cast %c2_i32 : i32 to index
    %c0_42 = arith.constant 0 : index
    %c0_43 = arith.constant 0 : index
    %92 = vector.load %arg9[%91, %c0_42, %c0_43] : memref<8x8x128xf32, #tpu.memory_space<vmem>>, vector<1x8x128xf32>
    %93 = vector.shape_cast %92 : vector<1x8x128xf32> to vector<8x128xf32>
    %cst_44 = arith.constant dense<0.000000e+00> : vector<8x128xf32>
    %94 = tpu.matmul %83, %9, %cst_44 {dimension_numbers = #tpu.dot_dimension_numbers<[1], [0], [0], [1], [0, 0, 1, 1], [], []>} : vector<8x32xf32>, vector<32x128xf32>, vector<8x128xf32> -> vector<8x128xf32>
    %95 = arith.addf %93, %94 : vector<8x128xf32>
    %96 = math.tanh %95 : vector<8x128xf32>
    %97 = arith.negf %95 : vector<8x128xf32>
    %98 = math.exp %97 : vector<8x128xf32>
    %cst_45 = arith.constant 1.000000e+00 : f32
    %99 = vector.broadcast %cst_45 : f32 to vector<8x128xf32>
    %100 = arith.addf %99, %98 : vector<8x128xf32>
    %101 = arith.divf %99, %100 : vector<8x128xf32>
    %102 = arith.select %7, %96, %101 : vector<8x128xi1>, vector<8x128xf32>
    %103 = vector.extract_strided_slice %102 {offsets = [0, 0], sizes = [8, 32], strides = [1, 1]} : vector<8x128xf32> to vector<8x32xf32>
    %104 = vector.extract_strided_slice %102 {offsets = [0, 32], sizes = [8, 32], strides = [1, 1]} : vector<8x128xf32> to vector<8x32xf32>
    %105 = vector.extract_strided_slice %102 {offsets = [0, 64], sizes = [8, 32], strides = [1, 1]} : vector<8x128xf32> to vector<8x32xf32>
    %106 = vector.extract_strided_slice %102 {offsets = [0, 96], sizes = [8, 32], strides = [1, 1]} : vector<8x128xf32> to vector<8x32xf32>
    %107 = arith.mulf %104, %84 : vector<8x32xf32>
    %108 = arith.mulf %103, %105 : vector<8x32xf32>
    %109 = arith.addf %107, %108 : vector<8x32xf32>
    %110 = math.tanh %109 : vector<8x32xf32>
    %111 = arith.mulf %106, %110 : vector<8x32xf32>
    %112 = arith.index_cast %c2_i32 : i32 to index
    %c0_46 = arith.constant 0 : index
    %c0_47 = arith.constant 0 : index
    %113 = vector.load %arg1[%112, %c0_46, %c0_47] : memref<8x8x32xf32, #tpu.memory_space<vmem>>, vector<1x8x32xf32>
    %114 = vector.shape_cast %113 : vector<1x8x32xf32> to vector<8x32xf32>
    %cst_48 = arith.constant 5.000000e-01 : f32
    %115 = vector.broadcast %cst_48 : f32 to vector<8x32xf32>
    %116 = arith.cmpf ogt, %114, %115 : vector<8x32xf32>
    %117 = arith.select %116, %111, %83 : vector<8x32xi1>, vector<8x32xf32>
    %118 = arith.select %116, %109, %84 : vector<8x32xi1>, vector<8x32xf32>
    %cst_49 = arith.constant 0.000000e+00 : f32
    %119 = vector.broadcast %cst_49 : f32 to vector<8x32xf32>
    %120 = arith.select %116, %111, %119 : vector<8x32xi1>, vector<8x32xf32>
    %121 = arith.index_cast %c2_i32 : i32 to index
    %c0_50 = arith.constant 0 : index
    %c0_51 = arith.constant 0 : index
    %122 = vector.load %arg8[%121, %c0_50, %c0_51] : memref<8x8x32xf32, #tpu.memory_space<vmem>>, vector<1x8x32xf32>
    %123 = vector.shape_cast %122 : vector<1x8x32xf32> to vector<8x32xf32>
    %124 = vector.shape_cast %120 : vector<8x32xf32> to vector<1x8x32xf32>
    tpu.vector_store %arg8[%121, %c0_50, %c0_51], %124 {strides = array<i32>} : memref<8x8x32xf32, #tpu.memory_space<vmem>>, vector<1x8x32xf32>,
    %c3_i32 = arith.constant 3 : i32
    %125 = arith.index_cast %c3_i32 : i32 to index
    %c0_52 = arith.constant 0 : index
    %c0_53 = arith.constant 0 : index
    %126 = vector.load %arg9[%125, %c0_52, %c0_53] : memref<8x8x128xf32, #tpu.memory_space<vmem>>, vector<1x8x128xf32>
    %127 = vector.shape_cast %126 : vector<1x8x128xf32> to vector<8x128xf32>
    %cst_54 = arith.constant dense<0.000000e+00> : vector<8x128xf32>
    %128 = tpu.matmul %117, %9, %cst_54 {dimension_numbers = #tpu.dot_dimension_numbers<[1], [0], [0], [1], [0, 0, 1, 1], [], []>} : vector<8x32xf32>, vector<32x128xf32>, vector<8x128xf32> -> vector<8x128xf32>
    %129 = arith.addf %127, %128 : vector<8x128xf32>
    %130 = math.tanh %129 : vector<8x128xf32>
    %131 = arith.negf %129 : vector<8x128xf32>
    %132 = math.exp %131 : vector<8x128xf32>
    %cst_55 = arith.constant 1.000000e+00 : f32
    %133 = vector.broadcast %cst_55 : f32 to vector<8x128xf32>
    %134 = arith.addf %133, %132 : vector<8x128xf32>
    %135 = arith.divf %133, %134 : vector<8x128xf32>
    %136 = arith.select %7, %130, %135 : vector<8x128xi1>, vector<8x128xf32>
    %137 = vector.extract_strided_slice %136 {offsets = [0, 0], sizes = [8, 32], strides = [1, 1]} : vector<8x128xf32> to vector<8x32xf32>
    %138 = vector.extract_strided_slice %136 {offsets = [0, 32], sizes = [8, 32], strides = [1, 1]} : vector<8x128xf32> to vector<8x32xf32>
    %139 = vector.extract_strided_slice %136 {offsets = [0, 64], sizes = [8, 32], strides = [1, 1]} : vector<8x128xf32> to vector<8x32xf32>
    %140 = vector.extract_strided_slice %136 {offsets = [0, 96], sizes = [8, 32], strides = [1, 1]} : vector<8x128xf32> to vector<8x32xf32>
    %141 = arith.mulf %138, %118 : vector<8x32xf32>
    %142 = arith.mulf %137, %139 : vector<8x32xf32>
    %143 = arith.addf %141, %142 : vector<8x32xf32>
    %144 = math.tanh %143 : vector<8x32xf32>
    %145 = arith.mulf %140, %144 : vector<8x32xf32>
    %146 = arith.index_cast %c3_i32 : i32 to index
    %c0_56 = arith.constant 0 : index
    %c0_57 = arith.constant 0 : index
    %147 = vector.load %arg1[%146, %c0_56, %c0_57] : memref<8x8x32xf32, #tpu.memory_space<vmem>>, vector<1x8x32xf32>
    %148 = vector.shape_cast %147 : vector<1x8x32xf32> to vector<8x32xf32>
    %cst_58 = arith.constant 5.000000e-01 : f32
    %149 = vector.broadcast %cst_58 : f32 to vector<8x32xf32>
    %150 = arith.cmpf ogt, %148, %149 : vector<8x32xf32>
    %151 = arith.select %150, %145, %117 : vector<8x32xi1>, vector<8x32xf32>
    %152 = arith.select %150, %143, %118 : vector<8x32xi1>, vector<8x32xf32>
    %cst_59 = arith.constant 0.000000e+00 : f32
    %153 = vector.broadcast %cst_59 : f32 to vector<8x32xf32>
    %154 = arith.select %150, %145, %153 : vector<8x32xi1>, vector<8x32xf32>
    %155 = arith.index_cast %c3_i32 : i32 to index
    %c0_60 = arith.constant 0 : index
    %c0_61 = arith.constant 0 : index
    %156 = vector.load %arg8[%155, %c0_60, %c0_61] : memref<8x8x32xf32, #tpu.memory_space<vmem>>, vector<1x8x32xf32>
    %157 = vector.shape_cast %156 : vector<1x8x32xf32> to vector<8x32xf32>
    %158 = vector.shape_cast %154 : vector<8x32xf32> to vector<1x8x32xf32>
    tpu.vector_store %arg8[%155, %c0_60, %c0_61], %158 {strides = array<i32>} : memref<8x8x32xf32, #tpu.memory_space<vmem>>, vector<1x8x32xf32>,
    %c4_i32 = arith.constant 4 : i32
    %159 = arith.index_cast %c4_i32 : i32 to index
    %c0_62 = arith.constant 0 : index
    %c0_63 = arith.constant 0 : index
    %160 = vector.load %arg9[%159, %c0_62, %c0_63] : memref<8x8x128xf32, #tpu.memory_space<vmem>>, vector<1x8x128xf32>
    %161 = vector.shape_cast %160 : vector<1x8x128xf32> to vector<8x128xf32>
    %cst_64 = arith.constant dense<0.000000e+00> : vector<8x128xf32>
    %162 = tpu.matmul %151, %9, %cst_64 {dimension_numbers = #tpu.dot_dimension_numbers<[1], [0], [0], [1], [0, 0, 1, 1], [], []>} : vector<8x32xf32>, vector<32x128xf32>, vector<8x128xf32> -> vector<8x128xf32>
    %163 = arith.addf %161, %162 : vector<8x128xf32>
    %164 = math.tanh %163 : vector<8x128xf32>
    %165 = arith.negf %163 : vector<8x128xf32>
    %166 = math.exp %165 : vector<8x128xf32>
    %cst_65 = arith.constant 1.000000e+00 : f32
    %167 = vector.broadcast %cst_65 : f32 to vector<8x128xf32>
    %168 = arith.addf %167, %166 : vector<8x128xf32>
    %169 = arith.divf %167, %168 : vector<8x128xf32>
    %170 = arith.select %7, %164, %169 : vector<8x128xi1>, vector<8x128xf32>
    %171 = vector.extract_strided_slice %170 {offsets = [0, 0], sizes = [8, 32], strides = [1, 1]} : vector<8x128xf32> to vector<8x32xf32>
    %172 = vector.extract_strided_slice %170 {offsets = [0, 32], sizes = [8, 32], strides = [1, 1]} : vector<8x128xf32> to vector<8x32xf32>
    %173 = vector.extract_strided_slice %170 {offsets = [0, 64], sizes = [8, 32], strides = [1, 1]} : vector<8x128xf32> to vector<8x32xf32>
    %174 = vector.extract_strided_slice %170 {offsets = [0, 96], sizes = [8, 32], strides = [1, 1]} : vector<8x128xf32> to vector<8x32xf32>
    %175 = arith.mulf %172, %152 : vector<8x32xf32>
    %176 = arith.mulf %171, %173 : vector<8x32xf32>
    %177 = arith.addf %175, %176 : vector<8x32xf32>
    %178 = math.tanh %177 : vector<8x32xf32>
    %179 = arith.mulf %174, %178 : vector<8x32xf32>
    %180 = arith.index_cast %c4_i32 : i32 to index
    %c0_66 = arith.constant 0 : index
    %c0_67 = arith.constant 0 : index
    %181 = vector.load %arg1[%180, %c0_66, %c0_67] : memref<8x8x32xf32, #tpu.memory_space<vmem>>, vector<1x8x32xf32>
    %182 = vector.shape_cast %181 : vector<1x8x32xf32> to vector<8x32xf32>
    %cst_68 = arith.constant 5.000000e-01 : f32
    %183 = vector.broadcast %cst_68 : f32 to vector<8x32xf32>
    %184 = arith.cmpf ogt, %182, %183 : vector<8x32xf32>
    %185 = arith.select %184, %179, %151 : vector<8x32xi1>, vector<8x32xf32>
    %186 = arith.select %184, %177, %152 : vector<8x32xi1>, vector<8x32xf32>
    %cst_69 = arith.constant 0.000000e+00 : f32
    %187 = vector.broadcast %cst_69 : f32 to vector<8x32xf32>
    %188 = arith.select %184, %179, %187 : vector<8x32xi1>, vector<8x32xf32>
    %189 = arith.index_cast %c4_i32 : i32 to index
    %c0_70 = arith.constant 0 : index
    %c0_71 = arith.constant 0 : index
    %190 = vector.load %arg8[%189, %c0_70, %c0_71] : memref<8x8x32xf32, #tpu.memory_space<vmem>>, vector<1x8x32xf32>
    %191 = vector.shape_cast %190 : vector<1x8x32xf32> to vector<8x32xf32>
    %192 = vector.shape_cast %188 : vector<8x32xf32> to vector<1x8x32xf32>
    tpu.vector_store %arg8[%189, %c0_70, %c0_71], %192 {strides = array<i32>} : memref<8x8x32xf32, #tpu.memory_space<vmem>>, vector<1x8x32xf32>,
    %c5_i32 = arith.constant 5 : i32
    %193 = arith.index_cast %c5_i32 : i32 to index
    %c0_72 = arith.constant 0 : index
    %c0_73 = arith.constant 0 : index
    %194 = vector.load %arg9[%193, %c0_72, %c0_73] : memref<8x8x128xf32, #tpu.memory_space<vmem>>, vector<1x8x128xf32>
    %195 = vector.shape_cast %194 : vector<1x8x128xf32> to vector<8x128xf32>
    %cst_74 = arith.constant dense<0.000000e+00> : vector<8x128xf32>
    %196 = tpu.matmul %185, %9, %cst_74 {dimension_numbers = #tpu.dot_dimension_numbers<[1], [0], [0], [1], [0, 0, 1, 1], [], []>} : vector<8x32xf32>, vector<32x128xf32>, vector<8x128xf32> -> vector<8x128xf32>
    %197 = arith.addf %195, %196 : vector<8x128xf32>
    %198 = math.tanh %197 : vector<8x128xf32>
    %199 = arith.negf %197 : vector<8x128xf32>
    %200 = math.exp %199 : vector<8x128xf32>
    %cst_75 = arith.constant 1.000000e+00 : f32
    %201 = vector.broadcast %cst_75 : f32 to vector<8x128xf32>
    %202 = arith.addf %201, %200 : vector<8x128xf32>
    %203 = arith.divf %201, %202 : vector<8x128xf32>
    %204 = arith.select %7, %198, %203 : vector<8x128xi1>, vector<8x128xf32>
    %205 = vector.extract_strided_slice %204 {offsets = [0, 0], sizes = [8, 32], strides = [1, 1]} : vector<8x128xf32> to vector<8x32xf32>
    %206 = vector.extract_strided_slice %204 {offsets = [0, 32], sizes = [8, 32], strides = [1, 1]} : vector<8x128xf32> to vector<8x32xf32>
    %207 = vector.extract_strided_slice %204 {offsets = [0, 64], sizes = [8, 32], strides = [1, 1]} : vector<8x128xf32> to vector<8x32xf32>
    %208 = vector.extract_strided_slice %204 {offsets = [0, 96], sizes = [8, 32], strides = [1, 1]} : vector<8x128xf32> to vector<8x32xf32>
    %209 = arith.mulf %206, %186 : vector<8x32xf32>
    %210 = arith.mulf %205, %207 : vector<8x32xf32>
    %211 = arith.addf %209, %210 : vector<8x32xf32>
    %212 = math.tanh %211 : vector<8x32xf32>
    %213 = arith.mulf %208, %212 : vector<8x32xf32>
    %214 = arith.index_cast %c5_i32 : i32 to index
    %c0_76 = arith.constant 0 : index
    %c0_77 = arith.constant 0 : index
    %215 = vector.load %arg1[%214, %c0_76, %c0_77] : memref<8x8x32xf32, #tpu.memory_space<vmem>>, vector<1x8x32xf32>
    %216 = vector.shape_cast %215 : vector<1x8x32xf32> to vector<8x32xf32>
    %cst_78 = arith.constant 5.000000e-01 : f32
    %217 = vector.broadcast %cst_78 : f32 to vector<8x32xf32>
    %218 = arith.cmpf ogt, %216, %217 : vector<8x32xf32>
    %219 = arith.select %218, %213, %185 : vector<8x32xi1>, vector<8x32xf32>
    %220 = arith.select %218, %211, %186 : vector<8x32xi1>, vector<8x32xf32>
    %cst_79 = arith.constant 0.000000e+00 : f32
    %221 = vector.broadcast %cst_79 : f32 to vector<8x32xf32>
    %222 = arith.select %218, %213, %221 : vector<8x32xi1>, vector<8x32xf32>
    %223 = arith.index_cast %c5_i32 : i32 to index
    %c0_80 = arith.constant 0 : index
    %c0_81 = arith.constant 0 : index
    %224 = vector.load %arg8[%223, %c0_80, %c0_81] : memref<8x8x32xf32, #tpu.memory_space<vmem>>, vector<1x8x32xf32>
    %225 = vector.shape_cast %224 : vector<1x8x32xf32> to vector<8x32xf32>
    %226 = vector.shape_cast %222 : vector<8x32xf32> to vector<1x8x32xf32>
    tpu.vector_store %arg8[%223, %c0_80, %c0_81], %226 {strides = array<i32>} : memref<8x8x32xf32, #tpu.memory_space<vmem>>, vector<1x8x32xf32>,
    %c6_i32 = arith.constant 6 : i32
    %227 = arith.index_cast %c6_i32 : i32 to index
    %c0_82 = arith.constant 0 : index
    %c0_83 = arith.constant 0 : index
    %228 = vector.load %arg9[%227, %c0_82, %c0_83] : memref<8x8x128xf32, #tpu.memory_space<vmem>>, vector<1x8x128xf32>
    %229 = vector.shape_cast %228 : vector<1x8x128xf32> to vector<8x128xf32>
    %cst_84 = arith.constant dense<0.000000e+00> : vector<8x128xf32>
    %230 = tpu.matmul %219, %9, %cst_84 {dimension_numbers = #tpu.dot_dimension_numbers<[1], [0], [0], [1], [0, 0, 1, 1], [], []>} : vector<8x32xf32>, vector<32x128xf32>, vector<8x128xf32> -> vector<8x128xf32>
    %231 = arith.addf %229, %230 : vector<8x128xf32>
    %232 = math.tanh %231 : vector<8x128xf32>
    %233 = arith.negf %231 : vector<8x128xf32>
    %234 = math.exp %233 : vector<8x128xf32>
    %cst_85 = arith.constant 1.000000e+00 : f32
    %235 = vector.broadcast %cst_85 : f32 to vector<8x128xf32>
    %236 = arith.addf %235, %234 : vector<8x128xf32>
    %237 = arith.divf %235, %236 : vector<8x128xf32>
    %238 = arith.select %7, %232, %237 : vector<8x128xi1>, vector<8x128xf32>
    %239 = vector.extract_strided_slice %238 {offsets = [0, 0], sizes = [8, 32], strides = [1, 1]} : vector<8x128xf32> to vector<8x32xf32>
    %240 = vector.extract_strided_slice %238 {offsets = [0, 32], sizes = [8, 32], strides = [1, 1]} : vector<8x128xf32> to vector<8x32xf32>
    %241 = vector.extract_strided_slice %238 {offsets = [0, 64], sizes = [8, 32], strides = [1, 1]} : vector<8x128xf32> to vector<8x32xf32>
    %242 = vector.extract_strided_slice %238 {offsets = [0, 96], sizes = [8, 32], strides = [1, 1]} : vector<8x128xf32> to vector<8x32xf32>
    %243 = arith.mulf %240, %220 : vector<8x32xf32>
    %244 = arith.mulf %239, %241 : vector<8x32xf32>
    %245 = arith.addf %243, %244 : vector<8x32xf32>
    %246 = math.tanh %245 : vector<8x32xf32>
    %247 = arith.mulf %242, %246 : vector<8x32xf32>
    %248 = arith.index_cast %c6_i32 : i32 to index
    %c0_86 = arith.constant 0 : index
    %c0_87 = arith.constant 0 : index
    %249 = vector.load %arg1[%248, %c0_86, %c0_87] : memref<8x8x32xf32, #tpu.memory_space<vmem>>, vector<1x8x32xf32>
    %250 = vector.shape_cast %249 : vector<1x8x32xf32> to vector<8x32xf32>
    %cst_88 = arith.constant 5.000000e-01 : f32
    %251 = vector.broadcast %cst_88 : f32 to vector<8x32xf32>
    %252 = arith.cmpf ogt, %250, %251 : vector<8x32xf32>
    %253 = arith.select %252, %247, %219 : vector<8x32xi1>, vector<8x32xf32>
    %254 = arith.select %252, %245, %220 : vector<8x32xi1>, vector<8x32xf32>
    %cst_89 = arith.constant 0.000000e+00 : f32
    %255 = vector.broadcast %cst_89 : f32 to vector<8x32xf32>
    %256 = arith.select %252, %247, %255 : vector<8x32xi1>, vector<8x32xf32>
    %257 = arith.index_cast %c6_i32 : i32 to index
    %c0_90 = arith.constant 0 : index
    %c0_91 = arith.constant 0 : index
    %258 = vector.load %arg8[%257, %c0_90, %c0_91] : memref<8x8x32xf32, #tpu.memory_space<vmem>>, vector<1x8x32xf32>
    %259 = vector.shape_cast %258 : vector<1x8x32xf32> to vector<8x32xf32>
    %260 = vector.shape_cast %256 : vector<8x32xf32> to vector<1x8x32xf32>
    tpu.vector_store %arg8[%257, %c0_90, %c0_91], %260 {strides = array<i32>} : memref<8x8x32xf32, #tpu.memory_space<vmem>>, vector<1x8x32xf32>,
    %c7_i32 = arith.constant 7 : i32
    %261 = arith.index_cast %c7_i32 : i32 to index
    %c0_92 = arith.constant 0 : index
    %c0_93 = arith.constant 0 : index
    %262 = vector.load %arg9[%261, %c0_92, %c0_93] : memref<8x8x128xf32, #tpu.memory_space<vmem>>, vector<1x8x128xf32>
    %263 = vector.shape_cast %262 : vector<1x8x128xf32> to vector<8x128xf32>
    %cst_94 = arith.constant dense<0.000000e+00> : vector<8x128xf32>
    %264 = tpu.matmul %253, %9, %cst_94 {dimension_numbers = #tpu.dot_dimension_numbers<[1], [0], [0], [1], [0, 0, 1, 1], [], []>} : vector<8x32xf32>, vector<32x128xf32>, vector<8x128xf32> -> vector<8x128xf32>
    %265 = arith.addf %263, %264 : vector<8x128xf32>
    %266 = math.tanh %265 : vector<8x128xf32>
    %267 = arith.negf %265 : vector<8x128xf32>
    %268 = math.exp %267 : vector<8x128xf32>
    %cst_95 = arith.constant 1.000000e+00 : f32
    %269 = vector.broadcast %cst_95 : f32 to vector<8x128xf32>
    %270 = arith.addf %269, %268 : vector<8x128xf32>
    %271 = arith.divf %269, %270 : vector<8x128xf32>
    %272 = arith.select %7, %266, %271 : vector<8x128xi1>, vector<8x128xf32>
    %273 = vector.extract_strided_slice %272 {offsets = [0, 0], sizes = [8, 32], strides = [1, 1]} : vector<8x128xf32> to vector<8x32xf32>
    %274 = vector.extract_strided_slice %272 {offsets = [0, 32], sizes = [8, 32], strides = [1, 1]} : vector<8x128xf32> to vector<8x32xf32>
    %275 = vector.extract_strided_slice %272 {offsets = [0, 64], sizes = [8, 32], strides = [1, 1]} : vector<8x128xf32> to vector<8x32xf32>
    %276 = vector.extract_strided_slice %272 {offsets = [0, 96], sizes = [8, 32], strides = [1, 1]} : vector<8x128xf32> to vector<8x32xf32>
    %277 = arith.mulf %274, %254 : vector<8x32xf32>
    %278 = arith.mulf %273, %275 : vector<8x32xf32>
    %279 = arith.addf %277, %278 : vector<8x32xf32>
    %280 = math.tanh %279 : vector<8x32xf32>
    %281 = arith.mulf %276, %280 : vector<8x32xf32>
    %282 = arith.index_cast %c7_i32 : i32 to index
    %c0_96 = arith.constant 0 : index
    %c0_97 = arith.constant 0 : index
    %283 = vector.load %arg1[%282, %c0_96, %c0_97] : memref<8x8x32xf32, #tpu.memory_space<vmem>>, vector<1x8x32xf32>
    %284 = vector.shape_cast %283 : vector<1x8x32xf32> to vector<8x32xf32>
    %cst_98 = arith.constant 5.000000e-01 : f32
    %285 = vector.broadcast %cst_98 : f32 to vector<8x32xf32>
    %286 = arith.cmpf ogt, %284, %285 : vector<8x32xf32>
    %287 = arith.select %286, %281, %253 : vector<8x32xi1>, vector<8x32xf32>
    %288 = arith.select %286, %279, %254 : vector<8x32xi1>, vector<8x32xf32>
    %cst_99 = arith.constant 0.000000e+00 : f32
    %289 = vector.broadcast %cst_99 : f32 to vector<8x32xf32>
    %290 = arith.select %286, %281, %289 : vector<8x32xi1>, vector<8x32xf32>
    %291 = arith.index_cast %c7_i32 : i32 to index
    %c0_100 = arith.constant 0 : index
    %c0_101 = arith.constant 0 : index
    %292 = vector.load %arg8[%291, %c0_100, %c0_101] : memref<8x8x32xf32, #tpu.memory_space<vmem>>, vector<1x8x32xf32>
    %293 = vector.shape_cast %292 : vector<1x8x32xf32> to vector<8x32xf32>
    %294 = vector.shape_cast %290 : vector<8x32xf32> to vector<1x8x32xf32>
    tpu.vector_store %arg8[%291, %c0_100, %c0_101], %294 {strides = array<i32>} : memref<8x8x32xf32, #tpu.memory_space<vmem>>, vector<1x8x32xf32>,
    %c8_i32 = arith.constant 8 : i32
    %c0_102 = arith.constant 0 : index
    %c0_103 = arith.constant 0 : index
    %c0_104 = arith.constant 0 : index
    %295 = vector.load %arg6[%c0_102, %c0_103, %c0_104] : memref<2x8x32xf32, #tpu.memory_space<vmem>>, vector<1x8x32xf32>
    %296 = vector.shape_cast %295 : vector<1x8x32xf32> to vector<8x32xf32>
    %297 = vector.shape_cast %287 : vector<8x32xf32> to vector<1x8x32xf32>
    tpu.vector_store %arg6[%c0_102, %c0_103, %c0_104], %297 {strides = array<i32>} : memref<2x8x32xf32, #tpu.memory_space<vmem>>, vector<1x8x32xf32>,
    %c0_105 = arith.constant 0 : index
    %c0_106 = arith.constant 0 : index
    %c0_107 = arith.constant 0 : index
    %298 = vector.load %arg7[%c0_105, %c0_106, %c0_107] : memref<2x8x32xf32, #tpu.memory_space<vmem>>, vector<1x8x32xf32>
    %299 = vector.shape_cast %298 : vector<1x8x32xf32> to vector<8x32xf32>
    %300 = vector.shape_cast %288 : vector<8x32xf32> to vector<1x8x32xf32>
    tpu.vector_store %arg7[%c0_105, %c0_106, %c0_107], %300 {strides = array<i32>} : memref<2x8x32xf32, #tpu.memory_space<vmem>>, vector<1x8x32xf32>,
    %c1 = arith.constant 1 : index
    %c0_108 = arith.constant 0 : index
    %c0_109 = arith.constant 0 : index
    %301 = vector.load %arg3[%c1, %c0_108, %c0_109] : memref<2x32x128xf32, #tpu.memory_space<vmem>>, vector<1x32x128xf32>
    %302 = vector.shape_cast %301 : vector<1x32x128xf32> to vector<32x128xf32>
    %c0_110 = arith.constant 0 : index
    %c0_111 = arith.constant 0 : index
    %c0_112 = arith.constant 0 : index
    %303 = vector.load %arg8[%c0_110, %c0_111, %c0_112] : memref<8x8x32xf32, #tpu.memory_space<vmem>>, vector<8x8x32xf32>
    %304 = vector.shape_cast %303 : vector<8x8x32xf32> to vector<64x32xf32>
    %c1_113 = arith.constant 1 : index
    %c0_114 = arith.constant 0 : index
    %c0_115 = arith.constant 0 : index
    %305 = vector.load %arg2[%c1_113, %c0_114, %c0_115] : memref<2x32x128xf32, #tpu.memory_space<vmem>>, vector<1x32x128xf32>
    %306 = vector.shape_cast %305 : vector<1x32x128xf32> to vector<32x128xf32>
    %cst_116 = arith.constant dense<0.000000e+00> : vector<64x128xf32>
    %307 = tpu.matmul %304, %306, %cst_116 {dimension_numbers = #tpu.dot_dimension_numbers<[1], [0], [0], [1], [0, 0, 1, 1], [], []>} : vector<64x32xf32>, vector<32x128xf32>, vector<64x128xf32> -> vector<64x128xf32>
    %c1_117 = arith.constant 1 : index
    %c0_118 = arith.constant 0 : index
    %c0_119 = arith.constant 0 : index
    %308 = vector.load %arg4[%c1_117, %c0_118, %c0_119] : memref<2x1x128xf32, #tpu.memory_space<vmem>>, vector<1x1x128xf32>
    %309 = vector.shape_cast %308 : vector<1x1x128xf32> to vector<1x128xf32>
    %310 = vector.broadcast %309 : vector<1x128xf32> to vector<64x128xf32>
    %311 = arith.addf %307, %310 : vector<64x128xf32>
    %312 = vector.shape_cast %311 : vector<64x128xf32> to vector<8x8x128xf32>
    %c0_120 = arith.constant 0 : index
    %c0_121 = arith.constant 0 : index
    %c0_122 = arith.constant 0 : index
    %313 = vector.load %arg9[%c0_120, %c0_121, %c0_122] : memref<8x8x128xf32, #tpu.memory_space<vmem>>, vector<8x8x128xf32>
    tpu.vector_store %arg9[%c0_120, %c0_121, %c0_122], %312 {strides = array<i32>} : memref<8x8x128xf32, #tpu.memory_space<vmem>>, vector<8x8x128xf32>,
    %cst_123 = arith.constant 0.000000e+00 : f32
    %314 = vector.broadcast %cst_123 : f32 to vector<8x32xf32>
    %cst_124 = arith.constant 0.000000e+00 : f32
    %315 = vector.broadcast %cst_124 : f32 to vector<8x32xf32>
    %c0_i32_125 = arith.constant 0 : i32
    %316 = arith.index_cast %c0_i32_125 : i32 to index
    %c0_126 = arith.constant 0 : index
    %c0_127 = arith.constant 0 : index
    %317 = vector.load %arg9[%316, %c0_126, %c0_127] : memref<8x8x128xf32, #tpu.memory_space<vmem>>, vector<1x8x128xf32>
    %318 = vector.shape_cast %317 : vector<1x8x128xf32> to vector<8x128xf32>
    %cst_128 = arith.constant dense<0.000000e+00> : vector<8x128xf32>
    %319 = tpu.matmul %314, %302, %cst_128 {dimension_numbers = #tpu.dot_dimension_numbers<[1], [0], [0], [1], [0, 0, 1, 1], [], []>} : vector<8x32xf32>, vector<32x128xf32>, vector<8x128xf32> -> vector<8x128xf32>
    %320 = arith.addf %318, %319 : vector<8x128xf32>
    %321 = math.tanh %320 : vector<8x128xf32>
    %322 = arith.negf %320 : vector<8x128xf32>
    %323 = math.exp %322 : vector<8x128xf32>
    %cst_129 = arith.constant 1.000000e+00 : f32
    %324 = vector.broadcast %cst_129 : f32 to vector<8x128xf32>
    %325 = arith.addf %324, %323 : vector<8x128xf32>
    %326 = arith.divf %324, %325 : vector<8x128xf32>
    %327 = arith.select %7, %321, %326 : vector<8x128xi1>, vector<8x128xf32>
    %328 = vector.extract_strided_slice %327 {offsets = [0, 0], sizes = [8, 32], strides = [1, 1]} : vector<8x128xf32> to vector<8x32xf32>
    %329 = vector.extract_strided_slice %327 {offsets = [0, 32], sizes = [8, 32], strides = [1, 1]} : vector<8x128xf32> to vector<8x32xf32>
    %330 = vector.extract_strided_slice %327 {offsets = [0, 64], sizes = [8, 32], strides = [1, 1]} : vector<8x128xf32> to vector<8x32xf32>
    %331 = vector.extract_strided_slice %327 {offsets = [0, 96], sizes = [8, 32], strides = [1, 1]} : vector<8x128xf32> to vector<8x32xf32>
    %332 = arith.mulf %329, %315 : vector<8x32xf32>
    %333 = arith.mulf %328, %330 : vector<8x32xf32>
    %334 = arith.addf %332, %333 : vector<8x32xf32>
    %335 = math.tanh %334 : vector<8x32xf32>
    %336 = arith.mulf %331, %335 : vector<8x32xf32>
    %337 = arith.index_cast %c0_i32_125 : i32 to index
    %c0_130 = arith.constant 0 : index
    %c0_131 = arith.constant 0 : index
    %338 = vector.load %arg1[%337, %c0_130, %c0_131] : memref<8x8x32xf32, #tpu.memory_space<vmem>>, vector<1x8x32xf32>
    %339 = vector.shape_cast %338 : vector<1x8x32xf32> to vector<8x32xf32>
    %cst_132 = arith.constant 5.000000e-01 : f32
    %340 = vector.broadcast %cst_132 : f32 to vector<8x32xf32>
    %341 = arith.cmpf ogt, %339, %340 : vector<8x32xf32>
    %342 = arith.select %341, %336, %314 : vector<8x32xi1>, vector<8x32xf32>
    %343 = arith.select %341, %334, %315 : vector<8x32xi1>, vector<8x32xf32>
    %cst_133 = arith.constant 0.000000e+00 : f32
    %344 = vector.broadcast %cst_133 : f32 to vector<8x32xf32>
    %345 = arith.select %341, %336, %344 : vector<8x32xi1>, vector<8x32xf32>
    %346 = arith.index_cast %c0_i32_125 : i32 to index
    %c0_134 = arith.constant 0 : index
    %c0_135 = arith.constant 0 : index
    %347 = vector.load %arg5[%346, %c0_134, %c0_135] : memref<8x8x32xf32, #tpu.memory_space<vmem>>, vector<1x8x32xf32>
    %348 = vector.shape_cast %347 : vector<1x8x32xf32> to vector<8x32xf32>
    %349 = vector.shape_cast %345 : vector<8x32xf32> to vector<1x8x32xf32>
    tpu.vector_store %arg5[%346, %c0_134, %c0_135], %349 {strides = array<i32>} : memref<8x8x32xf32, #tpu.memory_space<vmem>>, vector<1x8x32xf32>,
    %c1_i32_136 = arith.constant 1 : i32
    %350 = arith.index_cast %c1_i32_136 : i32 to index
    %c0_137 = arith.constant 0 : index
    %c0_138 = arith.constant 0 : index
    %351 = vector.load %arg9[%350, %c0_137, %c0_138] : memref<8x8x128xf32, #tpu.memory_space<vmem>>, vector<1x8x128xf32>
    %352 = vector.shape_cast %351 : vector<1x8x128xf32> to vector<8x128xf32>
    %cst_139 = arith.constant dense<0.000000e+00> : vector<8x128xf32>
    %353 = tpu.matmul %342, %302, %cst_139 {dimension_numbers = #tpu.dot_dimension_numbers<[1], [0], [0], [1], [0, 0, 1, 1], [], []>} : vector<8x32xf32>, vector<32x128xf32>, vector<8x128xf32> -> vector<8x128xf32>
    %354 = arith.addf %352, %353 : vector<8x128xf32>
    %355 = math.tanh %354 : vector<8x128xf32>
    %356 = arith.negf %354 : vector<8x128xf32>
    %357 = math.exp %356 : vector<8x128xf32>
    %cst_140 = arith.constant 1.000000e+00 : f32
    %358 = vector.broadcast %cst_140 : f32 to vector<8x128xf32>
    %359 = arith.addf %358, %357 : vector<8x128xf32>
    %360 = arith.divf %358, %359 : vector<8x128xf32>
    %361 = arith.select %7, %355, %360 : vector<8x128xi1>, vector<8x128xf32>
    %362 = vector.extract_strided_slice %361 {offsets = [0, 0], sizes = [8, 32], strides = [1, 1]} : vector<8x128xf32> to vector<8x32xf32>
    %363 = vector.extract_strided_slice %361 {offsets = [0, 32], sizes = [8, 32], strides = [1, 1]} : vector<8x128xf32> to vector<8x32xf32>
    %364 = vector.extract_strided_slice %361 {offsets = [0, 64], sizes = [8, 32], strides = [1, 1]} : vector<8x128xf32> to vector<8x32xf32>
    %365 = vector.extract_strided_slice %361 {offsets = [0, 96], sizes = [8, 32], strides = [1, 1]} : vector<8x128xf32> to vector<8x32xf32>
    %366 = arith.mulf %363, %343 : vector<8x32xf32>
    %367 = arith.mulf %362, %364 : vector<8x32xf32>
    %368 = arith.addf %366, %367 : vector<8x32xf32>
    %369 = math.tanh %368 : vector<8x32xf32>
    %370 = arith.mulf %365, %369 : vector<8x32xf32>
    %371 = arith.index_cast %c1_i32_136 : i32 to index
    %c0_141 = arith.constant 0 : index
    %c0_142 = arith.constant 0 : index
    %372 = vector.load %arg1[%371, %c0_141, %c0_142] : memref<8x8x32xf32, #tpu.memory_space<vmem>>, vector<1x8x32xf32>
    %373 = vector.shape_cast %372 : vector<1x8x32xf32> to vector<8x32xf32>
    %cst_143 = arith.constant 5.000000e-01 : f32
    %374 = vector.broadcast %cst_143 : f32 to vector<8x32xf32>
    %375 = arith.cmpf ogt, %373, %374 : vector<8x32xf32>
    %376 = arith.select %375, %370, %342 : vector<8x32xi1>, vector<8x32xf32>
    %377 = arith.select %375, %368, %343 : vector<8x32xi1>, vector<8x32xf32>
    %cst_144 = arith.constant 0.000000e+00 : f32
    %378 = vector.broadcast %cst_144 : f32 to vector<8x32xf32>
    %379 = arith.select %375, %370, %378 : vector<8x32xi1>, vector<8x32xf32>
    %380 = arith.index_cast %c1_i32_136 : i32 to index
    %c0_145 = arith.constant 0 : index
    %c0_146 = arith.constant 0 : index
    %381 = vector.load %arg5[%380, %c0_145, %c0_146] : memref<8x8x32xf32, #tpu.memory_space<vmem>>, vector<1x8x32xf32>
    %382 = vector.shape_cast %381 : vector<1x8x32xf32> to vector<8x32xf32>
    %383 = vector.shape_cast %379 : vector<8x32xf32> to vector<1x8x32xf32>
    tpu.vector_store %arg5[%380, %c0_145, %c0_146], %383 {strides = array<i32>} : memref<8x8x32xf32, #tpu.memory_space<vmem>>, vector<1x8x32xf32>,
    %c2_i32_147 = arith.constant 2 : i32
    %384 = arith.index_cast %c2_i32_147 : i32 to index
    %c0_148 = arith.constant 0 : index
    %c0_149 = arith.constant 0 : index
    %385 = vector.load %arg9[%384, %c0_148, %c0_149] : memref<8x8x128xf32, #tpu.memory_space<vmem>>, vector<1x8x128xf32>
    %386 = vector.shape_cast %385 : vector<1x8x128xf32> to vector<8x128xf32>
    %cst_150 = arith.constant dense<0.000000e+00> : vector<8x128xf32>
    %387 = tpu.matmul %376, %302, %cst_150 {dimension_numbers = #tpu.dot_dimension_numbers<[1], [0], [0], [1], [0, 0, 1, 1], [], []>} : vector<8x32xf32>, vector<32x128xf32>, vector<8x128xf32> -> vector<8x128xf32>
    %388 = arith.addf %386, %387 : vector<8x128xf32>
    %389 = math.tanh %388 : vector<8x128xf32>
    %390 = arith.negf %388 : vector<8x128xf32>
    %391 = math.exp %390 : vector<8x128xf32>
    %cst_151 = arith.constant 1.000000e+00 : f32
    %392 = vector.broadcast %cst_151 : f32 to vector<8x128xf32>
    %393 = arith.addf %392, %391 : vector<8x128xf32>
    %394 = arith.divf %392, %393 : vector<8x128xf32>
    %395 = arith.select %7, %389, %394 : vector<8x128xi1>, vector<8x128xf32>
    %396 = vector.extract_strided_slice %395 {offsets = [0, 0], sizes = [8, 32], strides = [1, 1]} : vector<8x128xf32> to vector<8x32xf32>
    %397 = vector.extract_strided_slice %395 {offsets = [0, 32], sizes = [8, 32], strides = [1, 1]} : vector<8x128xf32> to vector<8x32xf32>
    %398 = vector.extract_strided_slice %395 {offsets = [0, 64], sizes = [8, 32], strides = [1, 1]} : vector<8x128xf32> to vector<8x32xf32>
    %399 = vector.extract_strided_slice %395 {offsets = [0, 96], sizes = [8, 32], strides = [1, 1]} : vector<8x128xf32> to vector<8x32xf32>
    %400 = arith.mulf %397, %377 : vector<8x32xf32>
    %401 = arith.mulf %396, %398 : vector<8x32xf32>
    %402 = arith.addf %400, %401 : vector<8x32xf32>
    %403 = math.tanh %402 : vector<8x32xf32>
    %404 = arith.mulf %399, %403 : vector<8x32xf32>
    %405 = arith.index_cast %c2_i32_147 : i32 to index
    %c0_152 = arith.constant 0 : index
    %c0_153 = arith.constant 0 : index
    %406 = vector.load %arg1[%405, %c0_152, %c0_153] : memref<8x8x32xf32, #tpu.memory_space<vmem>>, vector<1x8x32xf32>
    %407 = vector.shape_cast %406 : vector<1x8x32xf32> to vector<8x32xf32>
    %cst_154 = arith.constant 5.000000e-01 : f32
    %408 = vector.broadcast %cst_154 : f32 to vector<8x32xf32>
    %409 = arith.cmpf ogt, %407, %408 : vector<8x32xf32>
    %410 = arith.select %409, %404, %376 : vector<8x32xi1>, vector<8x32xf32>
    %411 = arith.select %409, %402, %377 : vector<8x32xi1>, vector<8x32xf32>
    %cst_155 = arith.constant 0.000000e+00 : f32
    %412 = vector.broadcast %cst_155 : f32 to vector<8x32xf32>
    %413 = arith.select %409, %404, %412 : vector<8x32xi1>, vector<8x32xf32>
    %414 = arith.index_cast %c2_i32_147 : i32 to index
    %c0_156 = arith.constant 0 : index
    %c0_157 = arith.constant 0 : index
    %415 = vector.load %arg5[%414, %c0_156, %c0_157] : memref<8x8x32xf32, #tpu.memory_space<vmem>>, vector<1x8x32xf32>
    %416 = vector.shape_cast %415 : vector<1x8x32xf32> to vector<8x32xf32>
    %417 = vector.shape_cast %413 : vector<8x32xf32> to vector<1x8x32xf32>
    tpu.vector_store %arg5[%414, %c0_156, %c0_157], %417 {strides = array<i32>} : memref<8x8x32xf32, #tpu.memory_space<vmem>>, vector<1x8x32xf32>,
    %c3_i32_158 = arith.constant 3 : i32
    %418 = arith.index_cast %c3_i32_158 : i32 to index
    %c0_159 = arith.constant 0 : index
    %c0_160 = arith.constant 0 : index
    %419 = vector.load %arg9[%418, %c0_159, %c0_160] : memref<8x8x128xf32, #tpu.memory_space<vmem>>, vector<1x8x128xf32>
    %420 = vector.shape_cast %419 : vector<1x8x128xf32> to vector<8x128xf32>
    %cst_161 = arith.constant dense<0.000000e+00> : vector<8x128xf32>
    %421 = tpu.matmul %410, %302, %cst_161 {dimension_numbers = #tpu.dot_dimension_numbers<[1], [0], [0], [1], [0, 0, 1, 1], [], []>} : vector<8x32xf32>, vector<32x128xf32>, vector<8x128xf32> -> vector<8x128xf32>
    %422 = arith.addf %420, %421 : vector<8x128xf32>
    %423 = math.tanh %422 : vector<8x128xf32>
    %424 = arith.negf %422 : vector<8x128xf32>
    %425 = math.exp %424 : vector<8x128xf32>
    %cst_162 = arith.constant 1.000000e+00 : f32
    %426 = vector.broadcast %cst_162 : f32 to vector<8x128xf32>
    %427 = arith.addf %426, %425 : vector<8x128xf32>
    %428 = arith.divf %426, %427 : vector<8x128xf32>
    %429 = arith.select %7, %423, %428 : vector<8x128xi1>, vector<8x128xf32>
    %430 = vector.extract_strided_slice %429 {offsets = [0, 0], sizes = [8, 32], strides = [1, 1]} : vector<8x128xf32> to vector<8x32xf32>
    %431 = vector.extract_strided_slice %429 {offsets = [0, 32], sizes = [8, 32], strides = [1, 1]} : vector<8x128xf32> to vector<8x32xf32>
    %432 = vector.extract_strided_slice %429 {offsets = [0, 64], sizes = [8, 32], strides = [1, 1]} : vector<8x128xf32> to vector<8x32xf32>
    %433 = vector.extract_strided_slice %429 {offsets = [0, 96], sizes = [8, 32], strides = [1, 1]} : vector<8x128xf32> to vector<8x32xf32>
    %434 = arith.mulf %431, %411 : vector<8x32xf32>
    %435 = arith.mulf %430, %432 : vector<8x32xf32>
    %436 = arith.addf %434, %435 : vector<8x32xf32>
    %437 = math.tanh %436 : vector<8x32xf32>
    %438 = arith.mulf %433, %437 : vector<8x32xf32>
    %439 = arith.index_cast %c3_i32_158 : i32 to index
    %c0_163 = arith.constant 0 : index
    %c0_164 = arith.constant 0 : index
    %440 = vector.load %arg1[%439, %c0_163, %c0_164] : memref<8x8x32xf32, #tpu.memory_space<vmem>>, vector<1x8x32xf32>
    %441 = vector.shape_cast %440 : vector<1x8x32xf32> to vector<8x32xf32>
    %cst_165 = arith.constant 5.000000e-01 : f32
    %442 = vector.broadcast %cst_165 : f32 to vector<8x32xf32>
    %443 = arith.cmpf ogt, %441, %442 : vector<8x32xf32>
    %444 = arith.select %443, %438, %410 : vector<8x32xi1>, vector<8x32xf32>
    %445 = arith.select %443, %436, %411 : vector<8x32xi1>, vector<8x32xf32>
    %cst_166 = arith.constant 0.000000e+00 : f32
    %446 = vector.broadcast %cst_166 : f32 to vector<8x32xf32>
    %447 = arith.select %443, %438, %446 : vector<8x32xi1>, vector<8x32xf32>
    %448 = arith.index_cast %c3_i32_158 : i32 to index
    %c0_167 = arith.constant 0 : index
    %c0_168 = arith.constant 0 : index
    %449 = vector.load %arg5[%448, %c0_167, %c0_168] : memref<8x8x32xf32, #tpu.memory_space<vmem>>, vector<1x8x32xf32>
    %450 = vector.shape_cast %449 : vector<1x8x32xf32> to vector<8x32xf32>
    %451 = vector.shape_cast %447 : vector<8x32xf32> to vector<1x8x32xf32>
    tpu.vector_store %arg5[%448, %c0_167, %c0_168], %451 {strides = array<i32>} : memref<8x8x32xf32, #tpu.memory_space<vmem>>, vector<1x8x32xf32>,
    %c4_i32_169 = arith.constant 4 : i32
    %452 = arith.index_cast %c4_i32_169 : i32 to index
    %c0_170 = arith.constant 0 : index
    %c0_171 = arith.constant 0 : index
    %453 = vector.load %arg9[%452, %c0_170, %c0_171] : memref<8x8x128xf32, #tpu.memory_space<vmem>>, vector<1x8x128xf32>
    %454 = vector.shape_cast %453 : vector<1x8x128xf32> to vector<8x128xf32>
    %cst_172 = arith.constant dense<0.000000e+00> : vector<8x128xf32>
    %455 = tpu.matmul %444, %302, %cst_172 {dimension_numbers = #tpu.dot_dimension_numbers<[1], [0], [0], [1], [0, 0, 1, 1], [], []>} : vector<8x32xf32>, vector<32x128xf32>, vector<8x128xf32> -> vector<8x128xf32>
    %456 = arith.addf %454, %455 : vector<8x128xf32>
    %457 = math.tanh %456 : vector<8x128xf32>
    %458 = arith.negf %456 : vector<8x128xf32>
    %459 = math.exp %458 : vector<8x128xf32>
    %cst_173 = arith.constant 1.000000e+00 : f32
    %460 = vector.broadcast %cst_173 : f32 to vector<8x128xf32>
    %461 = arith.addf %460, %459 : vector<8x128xf32>
    %462 = arith.divf %460, %461 : vector<8x128xf32>
    %463 = arith.select %7, %457, %462 : vector<8x128xi1>, vector<8x128xf32>
    %464 = vector.extract_strided_slice %463 {offsets = [0, 0], sizes = [8, 32], strides = [1, 1]} : vector<8x128xf32> to vector<8x32xf32>
    %465 = vector.extract_strided_slice %463 {offsets = [0, 32], sizes = [8, 32], strides = [1, 1]} : vector<8x128xf32> to vector<8x32xf32>
    %466 = vector.extract_strided_slice %463 {offsets = [0, 64], sizes = [8, 32], strides = [1, 1]} : vector<8x128xf32> to vector<8x32xf32>
    %467 = vector.extract_strided_slice %463 {offsets = [0, 96], sizes = [8, 32], strides = [1, 1]} : vector<8x128xf32> to vector<8x32xf32>
    %468 = arith.mulf %465, %445 : vector<8x32xf32>
    %469 = arith.mulf %464, %466 : vector<8x32xf32>
    %470 = arith.addf %468, %469 : vector<8x32xf32>
    %471 = math.tanh %470 : vector<8x32xf32>
    %472 = arith.mulf %467, %471 : vector<8x32xf32>
    %473 = arith.index_cast %c4_i32_169 : i32 to index
    %c0_174 = arith.constant 0 : index
    %c0_175 = arith.constant 0 : index
    %474 = vector.load %arg1[%473, %c0_174, %c0_175] : memref<8x8x32xf32, #tpu.memory_space<vmem>>, vector<1x8x32xf32>
    %475 = vector.shape_cast %474 : vector<1x8x32xf32> to vector<8x32xf32>
    %cst_176 = arith.constant 5.000000e-01 : f32
    %476 = vector.broadcast %cst_176 : f32 to vector<8x32xf32>
    %477 = arith.cmpf ogt, %475, %476 : vector<8x32xf32>
    %478 = arith.select %477, %472, %444 : vector<8x32xi1>, vector<8x32xf32>
    %479 = arith.select %477, %470, %445 : vector<8x32xi1>, vector<8x32xf32>
    %cst_177 = arith.constant 0.000000e+00 : f32
    %480 = vector.broadcast %cst_177 : f32 to vector<8x32xf32>
    %481 = arith.select %477, %472, %480 : vector<8x32xi1>, vector<8x32xf32>
    %482 = arith.index_cast %c4_i32_169 : i32 to index
    %c0_178 = arith.constant 0 : index
    %c0_179 = arith.constant 0 : index
    %483 = vector.load %arg5[%482, %c0_178, %c0_179] : memref<8x8x32xf32, #tpu.memory_space<vmem>>, vector<1x8x32xf32>
    %484 = vector.shape_cast %483 : vector<1x8x32xf32> to vector<8x32xf32>
    %485 = vector.shape_cast %481 : vector<8x32xf32> to vector<1x8x32xf32>
    tpu.vector_store %arg5[%482, %c0_178, %c0_179], %485 {strides = array<i32>} : memref<8x8x32xf32, #tpu.memory_space<vmem>>, vector<1x8x32xf32>,
    %c5_i32_180 = arith.constant 5 : i32
    %486 = arith.index_cast %c5_i32_180 : i32 to index
    %c0_181 = arith.constant 0 : index
    %c0_182 = arith.constant 0 : index
    %487 = vector.load %arg9[%486, %c0_181, %c0_182] : memref<8x8x128xf32, #tpu.memory_space<vmem>>, vector<1x8x128xf32>
    %488 = vector.shape_cast %487 : vector<1x8x128xf32> to vector<8x128xf32>
    %cst_183 = arith.constant dense<0.000000e+00> : vector<8x128xf32>
    %489 = tpu.matmul %478, %302, %cst_183 {dimension_numbers = #tpu.dot_dimension_numbers<[1], [0], [0], [1], [0, 0, 1, 1], [], []>} : vector<8x32xf32>, vector<32x128xf32>, vector<8x128xf32> -> vector<8x128xf32>
    %490 = arith.addf %488, %489 : vector<8x128xf32>
    %491 = math.tanh %490 : vector<8x128xf32>
    %492 = arith.negf %490 : vector<8x128xf32>
    %493 = math.exp %492 : vector<8x128xf32>
    %cst_184 = arith.constant 1.000000e+00 : f32
    %494 = vector.broadcast %cst_184 : f32 to vector<8x128xf32>
    %495 = arith.addf %494, %493 : vector<8x128xf32>
    %496 = arith.divf %494, %495 : vector<8x128xf32>
    %497 = arith.select %7, %491, %496 : vector<8x128xi1>, vector<8x128xf32>
    %498 = vector.extract_strided_slice %497 {offsets = [0, 0], sizes = [8, 32], strides = [1, 1]} : vector<8x128xf32> to vector<8x32xf32>
    %499 = vector.extract_strided_slice %497 {offsets = [0, 32], sizes = [8, 32], strides = [1, 1]} : vector<8x128xf32> to vector<8x32xf32>
    %500 = vector.extract_strided_slice %497 {offsets = [0, 64], sizes = [8, 32], strides = [1, 1]} : vector<8x128xf32> to vector<8x32xf32>
    %501 = vector.extract_strided_slice %497 {offsets = [0, 96], sizes = [8, 32], strides = [1, 1]} : vector<8x128xf32> to vector<8x32xf32>
    %502 = arith.mulf %499, %479 : vector<8x32xf32>
    %503 = arith.mulf %498, %500 : vector<8x32xf32>
    %504 = arith.addf %502, %503 : vector<8x32xf32>
    %505 = math.tanh %504 : vector<8x32xf32>
    %506 = arith.mulf %501, %505 : vector<8x32xf32>
    %507 = arith.index_cast %c5_i32_180 : i32 to index
    %c0_185 = arith.constant 0 : index
    %c0_186 = arith.constant 0 : index
    %508 = vector.load %arg1[%507, %c0_185, %c0_186] : memref<8x8x32xf32, #tpu.memory_space<vmem>>, vector<1x8x32xf32>
    %509 = vector.shape_cast %508 : vector<1x8x32xf32> to vector<8x32xf32>
    %cst_187 = arith.constant 5.000000e-01 : f32
    %510 = vector.broadcast %cst_187 : f32 to vector<8x32xf32>
    %511 = arith.cmpf ogt, %509, %510 : vector<8x32xf32>
    %512 = arith.select %511, %506, %478 : vector<8x32xi1>, vector<8x32xf32>
    %513 = arith.select %511, %504, %479 : vector<8x32xi1>, vector<8x32xf32>
    %cst_188 = arith.constant 0.000000e+00 : f32
    %514 = vector.broadcast %cst_188 : f32 to vector<8x32xf32>
    %515 = arith.select %511, %506, %514 : vector<8x32xi1>, vector<8x32xf32>
    %516 = arith.index_cast %c5_i32_180 : i32 to index
    %c0_189 = arith.constant 0 : index
    %c0_190 = arith.constant 0 : index
    %517 = vector.load %arg5[%516, %c0_189, %c0_190] : memref<8x8x32xf32, #tpu.memory_space<vmem>>, vector<1x8x32xf32>
    %518 = vector.shape_cast %517 : vector<1x8x32xf32> to vector<8x32xf32>
    %519 = vector.shape_cast %515 : vector<8x32xf32> to vector<1x8x32xf32>
    tpu.vector_store %arg5[%516, %c0_189, %c0_190], %519 {strides = array<i32>} : memref<8x8x32xf32, #tpu.memory_space<vmem>>, vector<1x8x32xf32>,
    %c6_i32_191 = arith.constant 6 : i32
    %520 = arith.index_cast %c6_i32_191 : i32 to index
    %c0_192 = arith.constant 0 : index
    %c0_193 = arith.constant 0 : index
    %521 = vector.load %arg9[%520, %c0_192, %c0_193] : memref<8x8x128xf32, #tpu.memory_space<vmem>>, vector<1x8x128xf32>
    %522 = vector.shape_cast %521 : vector<1x8x128xf32> to vector<8x128xf32>
    %cst_194 = arith.constant dense<0.000000e+00> : vector<8x128xf32>
    %523 = tpu.matmul %512, %302, %cst_194 {dimension_numbers = #tpu.dot_dimension_numbers<[1], [0], [0], [1], [0, 0, 1, 1], [], []>} : vector<8x32xf32>, vector<32x128xf32>, vector<8x128xf32> -> vector<8x128xf32>
    %524 = arith.addf %522, %523 : vector<8x128xf32>
    %525 = math.tanh %524 : vector<8x128xf32>
    %526 = arith.negf %524 : vector<8x128xf32>
    %527 = math.exp %526 : vector<8x128xf32>
    %cst_195 = arith.constant 1.000000e+00 : f32
    %528 = vector.broadcast %cst_195 : f32 to vector<8x128xf32>
    %529 = arith.addf %528, %527 : vector<8x128xf32>
    %530 = arith.divf %528, %529 : vector<8x128xf32>
    %531 = arith.select %7, %525, %530 : vector<8x128xi1>, vector<8x128xf32>
    %532 = vector.extract_strided_slice %531 {offsets = [0, 0], sizes = [8, 32], strides = [1, 1]} : vector<8x128xf32> to vector<8x32xf32>
    %533 = vector.extract_strided_slice %531 {offsets = [0, 32], sizes = [8, 32], strides = [1, 1]} : vector<8x128xf32> to vector<8x32xf32>
    %534 = vector.extract_strided_slice %531 {offsets = [0, 64], sizes = [8, 32], strides = [1, 1]} : vector<8x128xf32> to vector<8x32xf32>
    %535 = vector.extract_strided_slice %531 {offsets = [0, 96], sizes = [8, 32], strides = [1, 1]} : vector<8x128xf32> to vector<8x32xf32>
    %536 = arith.mulf %533, %513 : vector<8x32xf32>
    %537 = arith.mulf %532, %534 : vector<8x32xf32>
    %538 = arith.addf %536, %537 : vector<8x32xf32>
    %539 = math.tanh %538 : vector<8x32xf32>
    %540 = arith.mulf %535, %539 : vector<8x32xf32>
    %541 = arith.index_cast %c6_i32_191 : i32 to index
    %c0_196 = arith.constant 0 : index
    %c0_197 = arith.constant 0 : index
    %542 = vector.load %arg1[%541, %c0_196, %c0_197] : memref<8x8x32xf32, #tpu.memory_space<vmem>>, vector<1x8x32xf32>
    %543 = vector.shape_cast %542 : vector<1x8x32xf32> to vector<8x32xf32>
    %cst_198 = arith.constant 5.000000e-01 : f32
    %544 = vector.broadcast %cst_198 : f32 to vector<8x32xf32>
    %545 = arith.cmpf ogt, %543, %544 : vector<8x32xf32>
    %546 = arith.select %545, %540, %512 : vector<8x32xi1>, vector<8x32xf32>
    %547 = arith.select %545, %538, %513 : vector<8x32xi1>, vector<8x32xf32>
    %cst_199 = arith.constant 0.000000e+00 : f32
    %548 = vector.broadcast %cst_199 : f32 to vector<8x32xf32>
    %549 = arith.select %545, %540, %548 : vector<8x32xi1>, vector<8x32xf32>
    %550 = arith.index_cast %c6_i32_191 : i32 to index
    %c0_200 = arith.constant 0 : index
    %c0_201 = arith.constant 0 : index
    %551 = vector.load %arg5[%550, %c0_200, %c0_201] : memref<8x8x32xf32, #tpu.memory_space<vmem>>, vector<1x8x32xf32>
    %552 = vector.shape_cast %551 : vector<1x8x32xf32> to vector<8x32xf32>
    %553 = vector.shape_cast %549 : vector<8x32xf32> to vector<1x8x32xf32>
    tpu.vector_store %arg5[%550, %c0_200, %c0_201], %553 {strides = array<i32>} : memref<8x8x32xf32, #tpu.memory_space<vmem>>, vector<1x8x32xf32>,
    %c7_i32_202 = arith.constant 7 : i32
    %554 = arith.index_cast %c7_i32_202 : i32 to index
    %c0_203 = arith.constant 0 : index
    %c0_204 = arith.constant 0 : index
    %555 = vector.load %arg9[%554, %c0_203, %c0_204] : memref<8x8x128xf32, #tpu.memory_space<vmem>>, vector<1x8x128xf32>
    %556 = vector.shape_cast %555 : vector<1x8x128xf32> to vector<8x128xf32>
    %cst_205 = arith.constant dense<0.000000e+00> : vector<8x128xf32>
    %557 = tpu.matmul %546, %302, %cst_205 {dimension_numbers = #tpu.dot_dimension_numbers<[1], [0], [0], [1], [0, 0, 1, 1], [], []>} : vector<8x32xf32>, vector<32x128xf32>, vector<8x128xf32> -> vector<8x128xf32>
    %558 = arith.addf %556, %557 : vector<8x128xf32>
    %559 = math.tanh %558 : vector<8x128xf32>
    %560 = arith.negf %558 : vector<8x128xf32>
    %561 = math.exp %560 : vector<8x128xf32>
    %cst_206 = arith.constant 1.000000e+00 : f32
    %562 = vector.broadcast %cst_206 : f32 to vector<8x128xf32>
    %563 = arith.addf %562, %561 : vector<8x128xf32>
    %564 = arith.divf %562, %563 : vector<8x128xf32>
    %565 = arith.select %7, %559, %564 : vector<8x128xi1>, vector<8x128xf32>
    %566 = vector.extract_strided_slice %565 {offsets = [0, 0], sizes = [8, 32], strides = [1, 1]} : vector<8x128xf32> to vector<8x32xf32>
    %567 = vector.extract_strided_slice %565 {offsets = [0, 32], sizes = [8, 32], strides = [1, 1]} : vector<8x128xf32> to vector<8x32xf32>
    %568 = vector.extract_strided_slice %565 {offsets = [0, 64], sizes = [8, 32], strides = [1, 1]} : vector<8x128xf32> to vector<8x32xf32>
    %569 = vector.extract_strided_slice %565 {offsets = [0, 96], sizes = [8, 32], strides = [1, 1]} : vector<8x128xf32> to vector<8x32xf32>
    %570 = arith.mulf %567, %547 : vector<8x32xf32>
    %571 = arith.mulf %566, %568 : vector<8x32xf32>
    %572 = arith.addf %570, %571 : vector<8x32xf32>
    %573 = math.tanh %572 : vector<8x32xf32>
    %574 = arith.mulf %569, %573 : vector<8x32xf32>
    %575 = arith.index_cast %c7_i32_202 : i32 to index
    %c0_207 = arith.constant 0 : index
    %c0_208 = arith.constant 0 : index
    %576 = vector.load %arg1[%575, %c0_207, %c0_208] : memref<8x8x32xf32, #tpu.memory_space<vmem>>, vector<1x8x32xf32>
    %577 = vector.shape_cast %576 : vector<1x8x32xf32> to vector<8x32xf32>
    %cst_209 = arith.constant 5.000000e-01 : f32
    %578 = vector.broadcast %cst_209 : f32 to vector<8x32xf32>
    %579 = arith.cmpf ogt, %577, %578 : vector<8x32xf32>
    %580 = arith.select %579, %574, %546 : vector<8x32xi1>, vector<8x32xf32>
    %581 = arith.select %579, %572, %547 : vector<8x32xi1>, vector<8x32xf32>
    %cst_210 = arith.constant 0.000000e+00 : f32
    %582 = vector.broadcast %cst_210 : f32 to vector<8x32xf32>
    %583 = arith.select %579, %574, %582 : vector<8x32xi1>, vector<8x32xf32>
    %584 = arith.index_cast %c7_i32_202 : i32 to index
    %c0_211 = arith.constant 0 : index
    %c0_212 = arith.constant 0 : index
    %585 = vector.load %arg5[%584, %c0_211, %c0_212] : memref<8x8x32xf32, #tpu.memory_space<vmem>>, vector<1x8x32xf32>
    %586 = vector.shape_cast %585 : vector<1x8x32xf32> to vector<8x32xf32>
    %587 = vector.shape_cast %583 : vector<8x32xf32> to vector<1x8x32xf32>
    tpu.vector_store %arg5[%584, %c0_211, %c0_212], %587 {strides = array<i32>} : memref<8x8x32xf32, #tpu.memory_space<vmem>>, vector<1x8x32xf32>,
    %c8_i32_213 = arith.constant 8 : i32
    %c1_214 = arith.constant 1 : index
    %c0_215 = arith.constant 0 : index
    %c0_216 = arith.constant 0 : index
    %588 = vector.load %arg6[%c1_214, %c0_215, %c0_216] : memref<2x8x32xf32, #tpu.memory_space<vmem>>, vector<1x8x32xf32>
    %589 = vector.shape_cast %588 : vector<1x8x32xf32> to vector<8x32xf32>
    %590 = vector.shape_cast %580 : vector<8x32xf32> to vector<1x8x32xf32>
    tpu.vector_store %arg6[%c1_214, %c0_215, %c0_216], %590 {strides = array<i32>} : memref<2x8x32xf32, #tpu.memory_space<vmem>>, vector<1x8x32xf32>,
    %c1_217 = arith.constant 1 : index
    %c0_218 = arith.constant 0 : index
    %c0_219 = arith.constant 0 : index
    %591 = vector.load %arg7[%c1_217, %c0_218, %c0_219] : memref<2x8x32xf32, #tpu.memory_space<vmem>>, vector<1x8x32xf32>
    %592 = vector.shape_cast %591 : vector<1x8x32xf32> to vector<8x32xf32>
    %593 = vector.shape_cast %581 : vector<8x32xf32> to vector<1x8x32xf32>
    tpu.vector_store %arg7[%c1_217, %c0_218, %c0_219], %593 {strides = array<i32>} : memref<2x8x32xf32, #tpu.memory_space<vmem>>, vector<1x8x32xf32>,
    return
  }
}

</mosaic_0001>

<llo_original>
// kernel: tpu_custom_call.1
$region0: #{tpu_custom_call.1}
  #allocation0 [shape = 'u32[]', space=smem, size = 0x4, offset = 0x4, fixed_abs, tag = 'smem constant byte address 0x4 - core index']
  #allocation1 [shape = 'u32[144,128]{1,0:T(1,128)}', space=vmem, size = 0x12000, scoped, tag = 'internal scratch']
  #allocation2 [shape = 'f32[8,8,32]{2,1,0:T(8,128)}', space=vmem, size = 0x8000, scoped, tag = 'scratch operand']
  #allocation3 [shape = 'f32[8,8,128]{2,1,0:T(8,128)}', space=vmem, size = 0x8000, scoped, tag = 'scratch operand']
  %s0 = inlined_call_operand.hbm [shape: f32[8,8,32], index: 0, kind: input, shape index: {}]
  %s1 = inlined_call_operand.hbm [shape: f32[8,8,32], index: 1, kind: input, shape index: {}]
  %s2 = inlined_call_operand.hbm [shape: f32[2,32,128], index: 2, kind: input, shape index: {}]
  %s3 = inlined_call_operand.hbm [shape: f32[2,32,128], index: 3, kind: input, shape index: {}]
  %s4 = inlined_call_operand.vmem [shape: f32[2,1,128], index: 4, kind: input, shape index: {}]
  %s5 = inlined_call_operand.hbm [shape: f32[8,8,32], index: 5, kind: output, shape index: {0}]
  %s6 = inlined_call_operand.hbm [shape: f32[2,8,32], index: 6, kind: output, shape index: {1}]
  %s7 = inlined_call_operand.hbm [shape: f32[2,8,32], index: 7, kind: output, shape index: {2}]
  %8 = xla_tuple %s5, %s6, %s7
  %s9 = sld [smem:[#allocation0]]
  $region62: #{tpu_custom_call.1} parent=0
    _
  %s11 = ssub.s32 1, %s9
  %s12 = scalar_select 0, %s11, %s9
  $region1: #{tpu_custom_call.1} parent=0
    #allocation4 [shape = 'u8[32768]{0}', space=vmem, size = 0x8000, scoped, tag = 'input window, operand 0, single buffered']
    #allocation5 [shape = 's32[1]{0}', space=sflag, size = 0x4, scoped, tag = 'scoped memory for tpu_custom_call.1']
    #allocation6 [shape = 's32[1]{0}', space=sflag, size = 0x4, scoped, tag = 'scoped memory for tpu_custom_call.1']
    #allocation7 [shape = 'u8[32768]{0}', space=vmem, size = 0x8000, scoped, tag = 'input window, operand 1, single buffered']
    #allocation8 [shape = 's32[1]{0}', space=sflag, size = 0x4, scoped, tag = 'scoped memory for tpu_custom_call.1']
    #allocation9 [shape = 'u8[32768]{0}', space=vmem, size = 0x8000, scoped, tag = 'input window, operand 2, single buffered']
    #allocation10 [shape = 'u8[32768]{0}', space=vmem, size = 0x8000, scoped, tag = 'input window, operand 3, single buffered']
    #allocation11 [shape = 's32[1]{0}', space=sflag, size = 0x4, scoped, tag = 'scoped memory for tpu_custom_call.1']
    #allocation12 [shape = 'u8[32768]{0}', space=vmem, size = 0x8000, scoped, tag = 'output window, operand 0, single buffered']
    #allocation13 [shape = 'u8[8192]{0}', space=vmem, size = 0x2000, scoped, tag = 'output window, operand 1, single buffered']
    #allocation14 [shape = 's32[1]{0}', space=sflag, size = 0x4, scoped, tag = 'scoped memory for tpu_custom_call.1']
    #allocation15 [shape = 'u8[8192]{0}', space=vmem, size = 0x2000, scoped, tag = 'output window, operand 2, single buffered']
    %13 = vsyncpa [#allocation5], 0
    %14 = vsyncpa [#allocation8], 0
    %15 = vsyncpa [#allocation11], 0
    %16 = vsyncpa [#allocation6], 0
    %17 = vsyncpa [#allocation14], 0
    // Predicated region
    $region2: #{tpu_custom_call.1} parent=1 // pred_check
      _
    $region3: #{tpu_custom_call.1} parent=1 // pred_check_branch
      %19 = sbr.rel (0) target = $region5
    $region4: #{tpu_custom_call.1} parent=1 // pred_region
      %s21 = ssub.s32 1024, 1024
      %22 = vsyncadd [#allocation5], %s21
      %s23 = sshll.u32 [#allocation4], 4
      %s24 = int_to_ptr.vmem [resolvable:$true] %s23
      %29 = dma.hbm_to_vmem [thread:$0]  %s0, 1024, %s24, [#allocation5], 128, 128, 8
    $region5: #{tpu_custom_call.1} parent=1 // pred_fallthru
      _
    // Predicated region
    $region6: #{tpu_custom_call.1} parent=1 // pred_check
      _
    $region7: #{tpu_custom_call.1} parent=1 // pred_check_branch
      %31 = sbr.rel (0) target = $region9
    $region8: #{tpu_custom_call.1} parent=1 // pred_region
      %s33 = ssub.s32 1024, 1024
      %34 = vsyncadd [#allocation8], %s33
      %s35 = sshll.u32 [#allocation7], 4
      %s36 = int_to_ptr.vmem [resolvable:$true] %s35
      %41 = dma.hbm_to_vmem [thread:$0]  %s1, 1024, %s36, [#allocation8], 128, 128, 8
    $region9: #{tpu_custom_call.1} parent=1 // pred_fallthru
      _
    // Predicated region
    $region10: #{tpu_custom_call.1} parent=1 // pred_check
      _
    $region11: #{tpu_custom_call.1} parent=1 // pred_check_branch
      %43 = sbr.rel (0) target = $region13
    $region12: #{tpu_custom_call.1} parent=1 // pred_region
      %s45 = ssub.s32 1024, 1024
      %46 = vsyncadd [#allocation8], %s45
      %s47 = sshll.u32 [#allocation9], 4
      %s48 = int_to_ptr.vmem [resolvable:$true] %s47
      %53 = dma.hbm_to_vmem [thread:$0]  %s2, 1024, %s48, [#allocation8], 128, 128, 8
    $region13: #{tpu_custom_call.1} parent=1 // pred_fallthru
      _
    // Predicated region
    $region14: #{tpu_custom_call.1} parent=1 // pred_check
      _
    $region15: #{tpu_custom_call.1} parent=1 // pred_check_branch
      %55 = sbr.rel (0) target = $region17
    $region16: #{tpu_custom_call.1} parent=1 // pred_region
      %s57 = ssub.s32 1024, 1024
      %58 = vsyncadd [#allocation11], %s57
      %s59 = sshll.u32 [#allocation10], 4
      %s60 = int_to_ptr.vmem [resolvable:$true] %s59
      %65 = dma.hbm_to_vmem [thread:$0]  %s3, 1024, %s60, [#allocation11], 128, 128, 8
    $region17: #{tpu_custom_call.1} parent=1 // pred_fallthru
      _
    // Predicated region
    $region18: #{tpu_custom_call.1} parent=1 // pred_check
      _
    $region19: #{tpu_custom_call.1} parent=1 // pred_check_branch
      %67 = sbr.rel (0) target = $region21
    $region20: #{tpu_custom_call.1} parent=1 // pred_region
      _
    $region21: #{tpu_custom_call.1} parent=1 // pred_fallthru
      _
    // Predicated region
    $region22: #{tpu_custom_call.1} parent=1 // pred_check
      _
    $region23: #{tpu_custom_call.1} parent=1 // pred_check_branch
      %69 = sbr.rel (0) target = $region25
    $region24: #{tpu_custom_call.1} parent=1 // pred_region
      %70 = dma.done [#allocation5], 1024
    $region25: #{tpu_custom_call.1} parent=1 // pred_fallthru
      _
    // Predicated region
    $region26: #{tpu_custom_call.1} parent=1 // pred_check
      _
    $region27: #{tpu_custom_call.1} parent=1 // pred_check_branch
      %72 = sbr.rel (0) target = $region29
    $region28: #{tpu_custom_call.1} parent=1 // pred_region
      %73 = dma.done [#allocation8], 1024
    $region29: #{tpu_custom_call.1} parent=1 // pred_fallthru
      _
    // Predicated region
    $region30: #{tpu_custom_call.1} parent=1 // pred_check
      _
    $region31: #{tpu_custom_call.1} parent=1 // pred_check_branch
      %75 = sbr.rel (0) target = $region33
    $region32: #{tpu_custom_call.1} parent=1 // pred_region
      %76 = dma.done [#allocation8], 1024
    $region33: #{tpu_custom_call.1} parent=1 // pred_fallthru
      _
    // Predicated region
    $region34: #{tpu_custom_call.1} parent=1 // pred_check
      _
    $region35: #{tpu_custom_call.1} parent=1 // pred_check_branch
      %78 = sbr.rel (0) target = $region37
    $region36: #{tpu_custom_call.1} parent=1 // pred_region
      %79 = dma.done [#allocation11], 1024
    $region37: #{tpu_custom_call.1} parent=1 // pred_fallthru
      _
    %v80 = vld [vmem:[#allocation4] sm:$0xff]
    %v81 = vld [vmem:[#allocation4 + $0x8] sm:$0xff]
    %v82 = vld [vmem:[#allocation4 + $0x10] sm:$0xff]
    %v83 = vld [vmem:[#allocation4 + $0x18] sm:$0xff]
    %v84 = vld [vmem:[#allocation4 + $0x20] sm:$0xff]
    %v85 = vld [vmem:[#allocation4 + $0x28] sm:$0xff]
    %v86 = vld [vmem:[#allocation4 + $0x30] sm:$0xff]
    %v87 = vld [vmem:[#allocation4 + $0x38] sm:$0xff]
    %vm88 = vcmask 261120
    %89 = vst.msk [vmem:[#allocation2] sm:$0xff] %vm88, %v80
    %90 = vst.msk [vmem:[#allocation2 + $0x8] sm:$0xff] %vm88, %v81
    %91 = vst.msk [vmem:[#allocation2 + $0x10] sm:$0xff] %vm88, %v82
    %92 = vst.msk [vmem:[#allocation2 + $0x18] sm:$0xff] %vm88, %v83
    %93 = vst.msk [vmem:[#allocation2 + $0x20] sm:$0xff] %vm88, %v84
    %94 = vst.msk [vmem:[#allocation2 + $0x28] sm:$0xff] %vm88, %v85
    %95 = vst.msk [vmem:[#allocation2 + $0x30] sm:$0xff] %vm88, %v86
    %96 = vst.msk [vmem:[#allocation2 + $0x38] sm:$0xff] %vm88, %v87
    %v97 = vlaneseq
    %v98 = vand.u32 %v97, 127
    %vm99 = vcmp.ge.s32.totalorder %v98, 64
    %vm100 = vcmp.lt.s32.totalorder %v98, 96
    %vm101 = vmand %vm99, %vm100
    %v102 = vld [vmem:[#allocation10] sm:$0xff]
    %v103 = vld [vmem:[#allocation10 + $0x8] sm:$0xff]
    %v104 = vld [vmem:[#allocation10 + $0x10] sm:$0xff]
    %v105 = vld [vmem:[#allocation10 + $0x18] sm:$0xff]
    %v106 = vld [vmem:[#allocation2] sm:$0xff]
    %v107 = vld [vmem:[#allocation2 + $0x8] sm:$0xff]
    %v108 = vld [vmem:[#allocation2 + $0x10] sm:$0xff]
    %v109 = vld [vmem:[#allocation2 + $0x18] sm:$0xff]
    %v110 = vld [vmem:[#allocation2 + $0x20] sm:$0xff]
    %v111 = vld [vmem:[#allocation2 + $0x28] sm:$0xff]
    %v112 = vld [vmem:[#allocation2 + $0x30] sm:$0xff]
    %v113 = vld [vmem:[#allocation2 + $0x38] sm:$0xff]
    %v114 = vld [vmem:[#allocation9] sm:$0xff]
    %v115 = vld [vmem:[#allocation9 + $0x8] sm:$0xff]
    %v116 = vld [vmem:[#allocation9 + $0x10] sm:$0xff]
    %v117 = vld [vmem:[#allocation9 + $0x18] sm:$0xff]
    %v118 = vld [vmem:[%s4] sm:$0x1]
    %v120 = vlaneseq
    %v121 = vshrl.u32 %v120, 7
    %v122 = vsub.s32 0, %v121
    %v123 = vrot.slane %v118, %v122
    %v126 = vsel %vm88, %v106, 0
    %v129 = vsel %vm88, %v107, 0
    %v132 = vsel %vm88, %v108, 0
    %v135 = vsel %vm88, %v109, 0
    %v138 = vsel %vm88, %v110, 0
    %v141 = vsel %vm88, %v111, 0
    %v144 = vsel %vm88, %v112, 0
    %v147 = vsel %vm88, %v113, 0
    %149 = vmatprep.subr.mxu0 0.0
    %150 = vmatpush1.msra.mxu0 0.0
    %151 = vmatprep.subr.mxu0 0.0
    %152 = vmatpush1.msra.mxu0 0.0
    %153 = vmatprep.subr.mxu0 0.0
    %154 = vmatpush1.msra.mxu0 0.0
    %155 = vmatprep.subr.mxu0 0.0
    %156 = vmatpush1.msra.mxu0 0.0
    %157 = vmatprep.subr.mxu0 0.0
    %158 = vmatpush1.msra.mxu0 0.0
    %159 = vmatprep.subr.mxu0 0.0
    %160 = vmatpush1.msra.mxu0 0.0
    %161 = vmatprep.subr.mxu0 0.0
    %162 = vmatpush1.msra.mxu0 0.0
    %163 = vmatprep.subr.mxu0 0.0
    %164 = vmatpush1.msra.mxu0 0.0
    %165 = vmatprep.subr.mxu0 0.0
    %166 = vmatpush1.msra.mxu0 0.0
    %167 = vmatprep.subr.mxu0 0.0
    %168 = vmatpush1.msra.mxu0 0.0
    %169 = vmatprep.subr.mxu0 0.0
    %170 = vmatpush1.msra.mxu0 0.0
    %171 = vmatprep.subr.mxu0 0.0
    %172 = vmatpush1.msra.mxu0 0.0
    %173 = vmatprep.subr.mxu0 0.0
    %174 = vmatpush1.msra.mxu0 %v117
    %175 = vmatprep.subr.mxu0 0.0
    %176 = vmatpush1.msra.mxu0 %v116
    %177 = vmatprep.subr.mxu0 0.0
    %178 = vmatpush1.msra.mxu0 %v115
    %179 = vmatprep.subr.mxu0 0.0
    %180 = vmatpush1.msra.mxu0 %v114
    %181 = vmatprep.subr.mxu0 0.0
    %182 = vmatpush2.msra.mxu0 0.0
    %183 = vmatprep.subr.mxu0 0.0
    %184 = vmatpush2.msra.mxu0 0.0
    %185 = vmatprep.subr.mxu0 0.0
    %186 = vmatpush2.msra.mxu0 0.0
    %187 = vmatprep.subr.mxu0 0.0
    %188 = vmatpush2.msra.mxu0 0.0
    %189 = vmatprep.subr.mxu0 0.0
    %190 = vmatpush2.msra.mxu0 0.0
    %191 = vmatprep.subr.mxu0 0.0
    %192 = vmatpush2.msra.mxu0 0.0
    %193 = vmatprep.subr.mxu0 0.0
    %194 = vmatpush2.msra.mxu0 0.0
    %195 = vmatprep.subr.mxu0 0.0
    %196 = vmatpush2.msra.mxu0 0.0
    %197 = vmatprep.subr.mxu0 0.0
    %198 = vmatpush2.msra.mxu0 0.0
    %199 = vmatprep.subr.mxu0 0.0
    %200 = vmatpush2.msra.mxu0 0.0
    %201 = vmatprep.subr.mxu0 0.0
    %202 = vmatpush2.msra.mxu0 0.0
    %203 = vmatprep.subr.mxu0 0.0
    %204 = vmatpush2.msra.mxu0 0.0
    %205 = vmatprep.subr.mxu0 0.0
    %206 = vmatpush2.msra.mxu0 0.0
    %207 = vmatprep.subr.mxu0 0.0
    %208 = vmatpush2.msra.mxu0 0.0
    %209 = vmatprep.subr.mxu0 0.0
    %210 = vmatpush2.msra.mxu0 0.0
    %211 = vmatprep.subr.mxu0 0.0
    %212 = vmatpush2.msra.mxu0 0.0
    %213 = vmatprep.mubr.f32.mxu0 0.0
    %214 = vmatmul.mubr.f32.gmra.mxu0 %v126
    %v215 = vpop.f32.mrf.mxu0
    %v216 = vadd.f32 %v123, %v215
    %v217 = vpop.f32.mrf.mxu0
    %218 = vmatprep.mubr.f32.mxu0 0.0
    %219 = vmatmul.mubr.f32.gmra.mxu0 %v129
    %v220 = vpop.f32.mrf.mxu0
    %v221 = vadd.f32 %v123, %v220
    %v222 = vpop.f32.mrf.mxu0
    %223 = vmatprep.mubr.f32.mxu0 0.0
    %224 = vmatmul.mubr.f32.gmra.mxu0 %v132
    %v225 = vpop.f32.mrf.mxu0
    %v226 = vadd.f32 %v123, %v225
    %v227 = vpop.f32.mrf.mxu0
    %228 = vmatprep.mubr.f32.mxu0 0.0
    %229 = vmatmul.mubr.f32.gmra.mxu0 %v135
    %v230 = vpop.f32.mrf.mxu0
    %v231 = vadd.f32 %v123, %v230
    %v232 = vpop.f32.mrf.mxu0
    %233 = vmatprep.mubr.f32.mxu0 0.0
    %234 = vmatmul.mubr.f32.gmra.mxu0 %v138
    %v235 = vpop.f32.mrf.mxu0
    %v236 = vadd.f32 %v123, %v235
    %v237 = vpop.f32.mrf.mxu0
    %238 = vmatprep.mubr.f32.mxu0 0.0
    %239 = vmatmul.mubr.f32.gmra.mxu0 %v141
    %v240 = vpop.f32.mrf.mxu0
    %v241 = vadd.f32 %v123, %v240
    %v242 = vpop.f32.mrf.mxu0
    %243 = vmatprep.mubr.f32.mxu0 0.0
    %244 = vmatmul.mubr.f32.gmra.mxu0 %v144
    %v245 = vpop.f32.mrf.mxu0
    %v246 = vadd.f32 %v123, %v245
    %v247 = vpop.f32.mrf.mxu0
    %248 = vmatprep.mubr.f32.mxu0 0.0
    %249 = vmatmul.mubr.f32.gmra.mxu0 %v147
    %v250 = vpop.f32.mrf.mxu0
    %v251 = vadd.f32 %v123, %v250
    %v252 = vpop.f32.mrf.mxu0
    %253 = vdwg.mxu0
    %254 = vst [vmem:[#allocation3] sm:$0xff] %v216
    %255 = vst [vmem:[#allocation3 + $0x8] sm:$0xff] %v221
    %256 = vst [vmem:[#allocation3 + $0x10] sm:$0xff] %v226
    %257 = vst [vmem:[#allocation3 + $0x18] sm:$0xff] %v231
    %258 = vst [vmem:[#allocation3 + $0x20] sm:$0xff] %v236
    %259 = vst [vmem:[#allocation3 + $0x28] sm:$0xff] %v241
    %260 = vst [vmem:[#allocation3 + $0x30] sm:$0xff] %v246
    %261 = vst [vmem:[#allocation3 + $0x38] sm:$0xff] %v251
    %v262 = vld [vmem:[#allocation3] sm:$0xff]
    %v264 = vsel %vm88, 0.0, 0
    %266 = vmatprep.subr.mxu0 0.0
    %267 = vmatpush1.msra.mxu0 0.0
    %268 = vmatprep.subr.mxu0 0.0
    %269 = vmatpush1.msra.mxu0 0.0
    %270 = vmatprep.subr.mxu0 0.0
    %271 = vmatpush1.msra.mxu0 0.0
    %272 = vmatprep.subr.mxu0 0.0
    %273 = vmatpush1.msra.mxu0 0.0
    %274 = vmatprep.subr.mxu0 0.0
    %275 = vmatpush1.msra.mxu0 0.0
    %276 = vmatprep.subr.mxu0 0.0
    %277 = vmatpush1.msra.mxu0 0.0
    %278 = vmatprep.subr.mxu0 0.0
    %279 = vmatpush1.msra.mxu0 0.0
    %280 = vmatprep.subr.mxu0 0.0
    %281 = vmatpush1.msra.mxu0 0.0
    %282 = vmatprep.subr.mxu0 0.0
    %283 = vmatpush1.msra.mxu0 0.0
    %284 = vmatprep.subr.mxu0 0.0
    %285 = vmatpush1.msra.mxu0 0.0
    %286 = vmatprep.subr.mxu0 0.0
    %287 = vmatpush1.msra.mxu0 0.0
    %288 = vmatprep.subr.mxu0 0.0
    %289 = vmatpush1.msra.mxu0 0.0
    %290 = vmatprep.subr.mxu0 0.0
    %291 = vmatpush1.msra.mxu0 %v105
    %292 = vmatprep.subr.mxu0 0.0
    %293 = vmatpush1.msra.mxu0 %v104
    %294 = vmatprep.subr.mxu0 0.0
    %295 = vmatpush1.msra.mxu0 %v103
    %296 = vmatprep.subr.mxu0 0.0
    %297 = vmatpush1.msra.mxu0 %v102
    %298 = vmatprep.subr.mxu0 0.0
    %299 = vmatpush2.msra.mxu0 0.0
    %300 = vmatprep.subr.mxu0 0.0
    %301 = vmatpush2.msra.mxu0 0.0
    %302 = vmatprep.subr.mxu0 0.0
    %303 = vmatpush2.msra.mxu0 0.0
    %304 = vmatprep.subr.mxu0 0.0
    %305 = vmatpush2.msra.mxu0 0.0
    %306 = vmatprep.subr.mxu0 0.0
    %307 = vmatpush2.msra.mxu0 0.0
    %308 = vmatprep.subr.mxu0 0.0
    %309 = vmatpush2.msra.mxu0 0.0
    %310 = vmatprep.subr.mxu0 0.0
    %311 = vmatpush2.msra.mxu0 0.0
    %312 = vmatprep.subr.mxu0 0.0
    %313 = vmatpush2.msra.mxu0 0.0
    %314 = vmatprep.subr.mxu0 0.0
    %315 = vmatpush2.msra.mxu0 0.0
    %316 = vmatprep.subr.mxu0 0.0
    %317 = vmatpush2.msra.mxu0 0.0
    %318 = vmatprep.subr.mxu0 0.0
    %319 = vmatpush2.msra.mxu0 0.0
    %320 = vmatprep.subr.mxu0 0.0
    %321 = vmatpush2.msra.mxu0 0.0
    %322 = vmatprep.subr.mxu0 0.0
    %323 = vmatpush2.msra.mxu0 0.0
    %324 = vmatprep.subr.mxu0 0.0
    %325 = vmatpush2.msra.mxu0 0.0
    %326 = vmatprep.subr.mxu0 0.0
    %327 = vmatpush2.msra.mxu0 0.0
    %328 = vmatprep.subr.mxu0 0.0
    %329 = vmatpush2.msra.mxu0 0.0
    %330 = vmatprep.mubr.f32.mxu0 0.0
    %331 = vmatmul.mubr.f32.gmra.mxu0 %v264
    %v332 = vpop.f32.mrf.mxu0
    %v333 = vadd.f32 0.0, %v332
    %v334 = vpop.f32.mrf.mxu0
    %335 = vdwg.mxu0
    %v336 = vadd.f32 %v262, %v333
    %v337 = vtanh.pop %v336
    %v338 = vxor.u32 %v336, 2147483648
    %v339 = vmul.f32 %v338, 1.442695
    %v340 = vpow.pop %v339
    %v341 = vadd.f32 %v340, 1.0
    %v342 = vrcp.pop %v341
    %v343 = vmul.f32 1.0, %v342
    %v344 = vsel %vm101, %v337, %v343
    %v345 = vmul.f32 %v344, 0.0
    %347 = vrot.lane.b32.xlu0 %v344, 64
    %v348 = vpop.permute.xlu0 %347
    %v350 = vmul.f32 %v344, %v348
    %352 = vrot.lane.b32.xlu0 %v350, 32
    %v353 = vpop.permute.xlu0 %352
    %v355 = vadd.f32 %v345, %v353
    %v356 = vtanh.pop %v355
    %358 = vrot.lane.b32.xlu0 %v356, 64
    %v359 = vpop.permute.xlu0 %358
    %v361 = vmul.f32 %v344, %v359
    %v362 = vld [vmem:[#allocation7] sm:$0xff]
    %vm363 = vcmp.gt.f32.partialorder %v362, 0.5
    %365 = vrot.lane.b32.xlu0 %v361, 32
    %v366 = vpop.permute.xlu0 %365
    %v368 = vsel %vm363, %v366, 0.0
    %370 = vrot.lane.b32.xlu0 %v355, 96
    %v371 = vpop.permute.xlu0 %370
    %v373 = vsel %vm363, %v371, 0.0
    %374 = vst.msk [vmem:[#allocation2] sm:$0xff] %vm88, %v368
    %s375 = scalar_lea.vmem [#allocation3], 8
    %v376 = vld [vmem:[%s375] sm:$0xff]
    %v378 = vsel %vm88, %v368, 0
    %380 = vmatprep.subr.mxu0 0.0
    %381 = vmatpush1.msra.mxu0 0.0
    %382 = vmatprep.subr.mxu0 0.0
    %383 = vmatpush1.msra.mxu0 0.0
    %384 = vmatprep.subr.mxu0 0.0
    %385 = vmatpush1.msra.mxu0 0.0
    %386 = vmatprep.subr.mxu0 0.0
    %387 = vmatpush1.msra.mxu0 0.0
    %388 = vmatprep.subr.mxu0 0.0
    %389 = vmatpush1.msra.mxu0 0.0
    %390 = vmatprep.subr.mxu0 0.0
    %391 = vmatpush1.msra.mxu0 0.0
    %392 = vmatprep.subr.mxu0 0.0
    %393 = vmatpush1.msra.mxu0 0.0
    %394 = vmatprep.subr.mxu0 0.0
    %395 = vmatpush1.msra.mxu0 0.0
    %396 = vmatprep.subr.mxu0 0.0
    %397 = vmatpush1.msra.mxu0 0.0
    %398 = vmatprep.subr.mxu0 0.0
    %399 = vmatpush1.msra.mxu0 0.0
    %400 = vmatprep.subr.mxu0 0.0
    %401 = vmatpush1.msra.mxu0 0.0
    %402 = vmatprep.subr.mxu0 0.0
    %403 = vmatpush1.msra.mxu0 0.0
    %404 = vmatprep.subr.mxu0 0.0
    %405 = vmatpush1.msra.mxu0 %v105
    %406 = vmatprep.subr.mxu0 0.0
    %407 = vmatpush1.msra.mxu0 %v104
    %408 = vmatprep.subr.mxu0 0.0
    %409 = vmatpush1.msra.mxu0 %v103
    %410 = vmatprep.subr.mxu0 0.0
    %411 = vmatpush1.msra.mxu0 %v102
    %412 = vmatprep.subr.mxu0 0.0
    %413 = vmatpush2.msra.mxu0 0.0
    %414 = vmatprep.subr.mxu0 0.0
    %415 = vmatpush2.msra.mxu0 0.0
    %416 = vmatprep.subr.mxu0 0.0
    %417 = vmatpush2.msra.mxu0 0.0
    %418 = vmatprep.subr.mxu0 0.0
    %419 = vmatpush2.msra.mxu0 0.0
    %420 = vmatprep.subr.mxu0 0.0
    %421 = vmatpush2.msra.mxu0 0.0
    %422 = vmatprep.subr.mxu0 0.0
    %423 = vmatpush2.msra.mxu0 0.0
    %424 = vmatprep.subr.mxu0 0.0
    %425 = vmatpush2.msra.mxu0 0.0
    %426 = vmatprep.subr.mxu0 0.0
    %427 = vmatpush2.msra.mxu0 0.0
    %428 = vmatprep.subr.mxu0 0.0
    %429 = vmatpush2.msra.mxu0 0.0
    %430 = vmatprep.subr.mxu0 0.0
    %431 = vmatpush2.msra.mxu0 0.0
    %432 = vmatprep.subr.mxu0 0.0
    %433 = vmatpush2.msra.mxu0 0.0
    %434 = vmatprep.subr.mxu0 0.0
    %435 = vmatpush2.msra.mxu0 0.0
    %436 = vmatprep.subr.mxu0 0.0
    %437 = vmatpush2.msra.mxu0 0.0
    %438 = vmatprep.subr.mxu0 0.0
    %439 = vmatpush2.msra.mxu0 0.0
    %440 = vmatprep.subr.mxu0 0.0
    %441 = vmatpush2.msra.mxu0 0.0
    %442 = vmatprep.subr.mxu0 0.0
    %443 = vmatpush2.msra.mxu0 0.0
    %444 = vmatprep.mubr.f32.mxu0 0.0
    %445 = vmatmul.mubr.f32.gmra.mxu0 %v378
    %v446 = vpop.f32.mrf.mxu0
    %v447 = vadd.f32 0.0, %v446
    %v448 = vpop.f32.mrf.mxu0
    %449 = vdwg.mxu0
    %v450 = vadd.f32 %v376, %v447
    %v451 = vtanh.pop %v450
    %v452 = vxor.u32 %v450, 2147483648
    %v453 = vmul.f32 %v452, 1.442695
    %v454 = vpow.pop %v453
    %v455 = vadd.f32 %v454, 1.0
    %v456 = vrcp.pop %v455
    %v457 = vmul.f32 1.0, %v456
    %v458 = vsel %vm101, %v451, %v457
    %460 = vrot.lane.b32.xlu0 %v373, 32
    %v461 = vpop.permute.xlu0 %460
    %v463 = vmul.f32 %v458, %v461
    %465 = vrot.lane.b32.xlu0 %v458, 64
    %v466 = vpop.permute.xlu0 %465
    %v468 = vmul.f32 %v458, %v466
    %470 = vrot.lane.b32.xlu0 %v468, 32
    %v471 = vpop.permute.xlu0 %470
    %v473 = vadd.f32 %v463, %v471
    %v474 = vtanh.pop %v473
    %476 = vrot.lane.b32.xlu0 %v474, 64
    %v477 = vpop.permute.xlu0 %476
    %v479 = vmul.f32 %v458, %v477
    %s480 = scalar_lea.vmem [#allocation7], 8
    %v481 = vld [vmem:[%s480] sm:$0xff]
    %vm482 = vcmp.gt.f32.partialorder %v481, 0.5
    %484 = vrot.lane.b32.xlu0 %v479, 32
    %v485 = vpop.permute.xlu0 %484
    %v487 = vsel %vm482, %v485, %v368
    %489 = vrot.lane.b32.xlu0 %v473, 96
    %v490 = vpop.permute.xlu0 %489
    %v492 = vsel %vm482, %v490, %v373
    %v493 = vsel %vm482, %v485, 0.0
    %s494 = scalar_lea.vmem [#allocation2], 8
    %495 = vst.msk [vmem:[%s494] sm:$0xff] %vm88, %v493
    %s496 = scalar_lea.vmem [#allocation3], 16
    %v497 = vld [vmem:[%s496] sm:$0xff]
    %v499 = vsel %vm88, %v487, 0
    %501 = vmatprep.subr.mxu0 0.0
    %502 = vmatpush1.msra.mxu0 0.0
    %503 = vmatprep.subr.mxu0 0.0
    %504 = vmatpush1.msra.mxu0 0.0
    %505 = vmatprep.subr.mxu0 0.0
    %506 = vmatpush1.msra.mxu0 0.0
    %507 = vmatprep.subr.mxu0 0.0
    %508 = vmatpush1.msra.mxu0 0.0
    %509 = vmatprep.subr.mxu0 0.0
    %510 = vmatpush1.msra.mxu0 0.0
    %511 = vmatprep.subr.mxu0 0.0
    %512 = vmatpush1.msra.mxu0 0.0
    %513 = vmatprep.subr.mxu0 0.0
    %514 = vmatpush1.msra.mxu0 0.0
    %515 = vmatprep.subr.mxu0 0.0
    %516 = vmatpush1.msra.mxu0 0.0
    %517 = vmatprep.subr.mxu0 0.0
    %518 = vmatpush1.msra.mxu0 0.0
    %519 = vmatprep.subr.mxu0 0.0
    %520 = vmatpush1.msra.mxu0 0.0
    %521 = vmatprep.subr.mxu0 0.0
    %522 = vmatpush1.msra.mxu0 0.0
    %523 = vmatprep.subr.mxu0 0.0
    %524 = vmatpush1.msra.mxu0 0.0
    %525 = vmatprep.subr.mxu0 0.0
    %526 = vmatpush1.msra.mxu0 %v105
    %527 = vmatprep.subr.mxu0 0.0
    %528 = vmatpush1.msra.mxu0 %v104
    %529 = vmatprep.subr.mxu0 0.0
    %530 = vmatpush1.msra.mxu0 %v103
    %531 = vmatprep.subr.mxu0 0.0
    %532 = vmatpush1.msra.mxu0 %v102
    %533 = vmatprep.subr.mxu0 0.0
    %534 = vmatpush2.msra.mxu0 0.0
    %535 = vmatprep.subr.mxu0 0.0
    %536 = vmatpush2.msra.mxu0 0.0
    %537 = vmatprep.subr.mxu0 0.0
    %538 = vmatpush2.msra.mxu0 0.0
    %539 = vmatprep.subr.mxu0 0.0
    %540 = vmatpush2.msra.mxu0 0.0
    %541 = vmatprep.subr.mxu0 0.0
    %542 = vmatpush2.msra.mxu0 0.0
    %543 = vmatprep.subr.mxu0 0.0
    %544 = vmatpush2.msra.mxu0 0.0
    %545 = vmatprep.subr.mxu0 0.0
    %546 = vmatpush2.msra.mxu0 0.0
    %547 = vmatprep.subr.mxu0 0.0
    %548 = vmatpush2.msra.mxu0 0.0
    %549 = vmatprep.subr.mxu0 0.0
    %550 = vmatpush2.msra.mxu0 0.0
    %551 = vmatprep.subr.mxu0 0.0
    %552 = vmatpush2.msra.mxu0 0.0
    %553 = vmatprep.subr.mxu0 0.0
    %554 = vmatpush2.msra.mxu0 0.0
    %555 = vmatprep.subr.mxu0 0.0
    %556 = vmatpush2.msra.mxu0 0.0
    %557 = vmatprep.subr.mxu0 0.0
    %558 = vmatpush2.msra.mxu0 0.0
    %559 = vmatprep.subr.mxu0 0.0
    %560 = vmatpush2.msra.mxu0 0.0
    %561 = vmatprep.subr.mxu0 0.0
    %562 = vmatpush2.msra.mxu0 0.0
    %563 = vmatprep.subr.mxu0 0.0
    %564 = vmatpush2.msra.mxu0 0.0
    %565 = vmatprep.mubr.f32.mxu0 0.0
    %566 = vmatmul.mubr.f32.gmra.mxu0 %v499
    %v567 = vpop.f32.mrf.mxu0
    %v568 = vadd.f32 0.0, %v567
    %v569 = vpop.f32.mrf.mxu0
    %570 = vdwg.mxu0
    %v571 = vadd.f32 %v497, %v568
    %v572 = vtanh.pop %v571
    %v573 = vxor.u32 %v571, 2147483648
    %v574 = vmul.f32 %v573, 1.442695
    %v575 = vpow.pop %v574
    %v576 = vadd.f32 %v575, 1.0
    %v577 = vrcp.pop %v576
    %v578 = vmul.f32 1.0, %v577
    %v579 = vsel %vm101, %v572, %v578
    %581 = vrot.lane.b32.xlu0 %v492, 32
    %v582 = vpop.permute.xlu0 %581
    %v584 = vmul.f32 %v579, %v582
    %586 = vrot.lane.b32.xlu0 %v579, 64
    %v587 = vpop.permute.xlu0 %586
    %v589 = vmul.f32 %v579, %v587
    %591 = vrot.lane.b32.xlu0 %v589, 32
    %v592 = vpop.permute.xlu0 %591
    %v594 = vadd.f32 %v584, %v592
    %v595 = vtanh.pop %v594
    %597 = vrot.lane.b32.xlu0 %v595, 64
    %v598 = vpop.permute.xlu0 %597
    %v600 = vmul.f32 %v579, %v598
    %s601 = scalar_lea.vmem [#allocation7], 16
    %v602 = vld [vmem:[%s601] sm:$0xff]
    %vm603 = vcmp.gt.f32.partialorder %v602, 0.5
    %605 = vrot.lane.b32.xlu0 %v600, 32
    %v606 = vpop.permute.xlu0 %605
    %v608 = vsel %vm603, %v606, %v487
    %610 = vrot.lane.b32.xlu0 %v594, 96
    %v611 = vpop.permute.xlu0 %610
    %v613 = vsel %vm603, %v611, %v492
    %v614 = vsel %vm603, %v606, 0.0
    %s615 = scalar_lea.vmem [#allocation2], 16
    %616 = vst.msk [vmem:[%s615] sm:$0xff] %vm88, %v614
    %s617 = scalar_lea.vmem [#allocation3], 24
    %v618 = vld [vmem:[%s617] sm:$0xff]
    %v620 = vsel %vm88, %v608, 0
    %622 = vmatprep.subr.mxu0 0.0
    %623 = vmatpush1.msra.mxu0 0.0
    %624 = vmatprep.subr.mxu0 0.0
    %625 = vmatpush1.msra.mxu0 0.0
    %626 = vmatprep.subr.mxu0 0.0
    %627 = vmatpush1.msra.mxu0 0.0
    %628 = vmatprep.subr.mxu0 0.0
    %629 = vmatpush1.msra.mxu0 0.0
    %630 = vmatprep.subr.mxu0 0.0
    %631 = vmatpush1.msra.mxu0 0.0
    %632 = vmatprep.subr.mxu0 0.0
    %633 = vmatpush1.msra.mxu0 0.0
    %634 = vmatprep.subr.mxu0 0.0
    %635 = vmatpush1.msra.mxu0 0.0
    %636 = vmatprep.subr.mxu0 0.0
    %637 = vmatpush1.msra.mxu0 0.0
    %638 = vmatprep.subr.mxu0 0.0
    %639 = vmatpush1.msra.mxu0 0.0
    %640 = vmatprep.subr.mxu0 0.0
    %641 = vmatpush1.msra.mxu0 0.0
    %642 = vmatprep.subr.mxu0 0.0
    %643 = vmatpush1.msra.mxu0 0.0
    %644 = vmatprep.subr.mxu0 0.0
    %645 = vmatpush1.msra.mxu0 0.0
    %646 = vmatprep.subr.mxu0 0.0
    %647 = vmatpush1.msra.mxu0 %v105
    %648 = vmatprep.subr.mxu0 0.0
    %649 = vmatpush1.msra.mxu0 %v104
    %650 = vmatprep.subr.mxu0 0.0
    %651 = vmatpush1.msra.mxu0 %v103
    %652 = vmatprep.subr.mxu0 0.0
    %653 = vmatpush1.msra.mxu0 %v102
    %654 = vmatprep.subr.mxu0 0.0
    %655 = vmatpush2.msra.mxu0 0.0
    %656 = vmatprep.subr.mxu0 0.0
    %657 = vmatpush2.msra.mxu0 0.0
    %658 = vmatprep.subr.mxu0 0.0
    %659 = vmatpush2.msra.mxu0 0.0
    %660 = vmatprep.subr.mxu0 0.0
    %661 = vmatpush2.msra.mxu0 0.0
    %662 = vmatprep.subr.mxu0 0.0
    %663 = vmatpush2.msra.mxu0 0.0
    %664 = vmatprep.subr.mxu0 0.0
    %665 = vmatpush2.msra.mxu0 0.0
    %666 = vmatprep.subr.mxu0 0.0
    %667 = vmatpush2.msra.mxu0 0.0
    %668 = vmatprep.subr.mxu0 0.0
    %669 = vmatpush2.msra.mxu0 0.0
    %670 = vmatprep.subr.mxu0 0.0
    %671 = vmatpush2.msra.mxu0 0.0
    %672 = vmatprep.subr.mxu0 0.0
    %673 = vmatpush2.msra.mxu0 0.0
    %674 = vmatprep.subr.mxu0 0.0
    %675 = vmatpush2.msra.mxu0 0.0
    %676 = vmatprep.subr.mxu0 0.0
    %677 = vmatpush2.msra.mxu0 0.0
    %678 = vmatprep.subr.mxu0 0.0
    %679 = vmatpush2.msra.mxu0 0.0
    %680 = vmatprep.subr.mxu0 0.0
    %681 = vmatpush2.msra.mxu0 0.0
    %682 = vmatprep.subr.mxu0 0.0
    %683 = vmatpush2.msra.mxu0 0.0
    %684 = vmatprep.subr.mxu0 0.0
    %685 = vmatpush2.msra.mxu0 0.0
    %686 = vmatprep.mubr.f32.mxu0 0.0
    %687 = vmatmul.mubr.f32.gmra.mxu0 %v620
    %v688 = vpop.f32.mrf.mxu0
    %v689 = vadd.f32 0.0, %v688
    %v690 = vpop.f32.mrf.mxu0
    %691 = vdwg.mxu0
    %v692 = vadd.f32 %v618, %v689
    %v693 = vtanh.pop %v692
    %v694 = vxor.u32 %v692, 2147483648
    %v695 = vmul.f32 %v694, 1.442695
    %v696 = vpow.pop %v695
    %v697 = vadd.f32 %v696, 1.0
    %v698 = vrcp.pop %v697
    %v699 = vmul.f32 1.0, %v698
    %v700 = vsel %vm101, %v693, %v699
    %702 = vrot.lane.b32.xlu0 %v613, 32
    %v703 = vpop.permute.xlu0 %702
    %v705 = vmul.f32 %v700, %v703
    %707 = vrot.lane.b32.xlu0 %v700, 64
    %v708 = vpop.permute.xlu0 %707
    %v710 = vmul.f32 %v700, %v708
    %712 = vrot.lane.b32.xlu0 %v710, 32
    %v713 = vpop.permute.xlu0 %712
    %v715 = vadd.f32 %v705, %v713
    %v716 = vtanh.pop %v715
    %718 = vrot.lane.b32.xlu0 %v716, 64
    %v719 = vpop.permute.xlu0 %718
    %v721 = vmul.f32 %v700, %v719
    %s722 = scalar_lea.vmem [#allocation7], 24
    %v723 = vld [vmem:[%s722] sm:$0xff]
    %vm724 = vcmp.gt.f32.partialorder %v723, 0.5
    %726 = vrot.lane.b32.xlu0 %v721, 32
    %v727 = vpop.permute.xlu0 %726
    %v729 = vsel %vm724, %v727, %v608
    %731 = vrot.lane.b32.xlu0 %v715, 96
    %v732 = vpop.permute.xlu0 %731
    %v734 = vsel %vm724, %v732, %v613
    %v735 = vsel %vm724, %v727, 0.0
    %s736 = scalar_lea.vmem [#allocation2], 24
    %737 = vst.msk [vmem:[%s736] sm:$0xff] %vm88, %v735
    %s738 = scalar_lea.vmem [#allocation3], 32
    %v739 = vld [vmem:[%s738] sm:$0xff]
    %v741 = vsel %vm88, %v729, 0
    %743 = vmatprep.subr.mxu0 0.0
    %744 = vmatpush1.msra.mxu0 0.0
    %745 = vmatprep.subr.mxu0 0.0
    %746 = vmatpush1.msra.mxu0 0.0
    %747 = vmatprep.subr.mxu0 0.0
    %748 = vmatpush1.msra.mxu0 0.0
    %749 = vmatprep.subr.mxu0 0.0
    %750 = vmatpush1.msra.mxu0 0.0
    %751 = vmatprep.subr.mxu0 0.0
    %752 = vmatpush1.msra.mxu0 0.0
    %753 = vmatprep.subr.mxu0 0.0
    %754 = vmatpush1.msra.mxu0 0.0
    %755 = vmatprep.subr.mxu0 0.0
    %756 = vmatpush1.msra.mxu0 0.0
    %757 = vmatprep.subr.mxu0 0.0
    %758 = vmatpush1.msra.mxu0 0.0
    %759 = vmatprep.subr.mxu0 0.0
    %760 = vmatpush1.msra.mxu0 0.0
    %761 = vmatprep.subr.mxu0 0.0
    %762 = vmatpush1.msra.mxu0 0.0
    %763 = vmatprep.subr.mxu0 0.0
    %764 = vmatpush1.msra.mxu0 0.0
    %765 = vmatprep.subr.mxu0 0.0
    %766 = vmatpush1.msra.mxu0 0.0
    %767 = vmatprep.subr.mxu0 0.0
    %768 = vmatpush1.msra.mxu0 %v105
    %769 = vmatprep.subr.mxu0 0.0
    %770 = vmatpush1.msra.mxu0 %v104
    %771 = vmatprep.subr.mxu0 0.0
    %772 = vmatpush1.msra.mxu0 %v103
    %773 = vmatprep.subr.mxu0 0.0
    %774 = vmatpush1.msra.mxu0 %v102
    %775 = vmatprep.subr.mxu0 0.0
    %776 = vmatpush2.msra.mxu0 0.0
    %777 = vmatprep.subr.mxu0 0.0
    %778 = vmatpush2.msra.mxu0 0.0
    %779 = vmatprep.subr.mxu0 0.0
    %780 = vmatpush2.msra.mxu0 0.0
    %781 = vmatprep.subr.mxu0 0.0
    %782 = vmatpush2.msra.mxu0 0.0
    %783 = vmatprep.subr.mxu0 0.0
    %784 = vmatpush2.msra.mxu0 0.0
    %785 = vmatprep.subr.mxu0 0.0
    %786 = vmatpush2.msra.mxu0 0.0
    %787 = vmatprep.subr.mxu0 0.0
    %788 = vmatpush2.msra.mxu0 0.0
    %789 = vmatprep.subr.mxu0 0.0
    %790 = vmatpush2.msra.mxu0 0.0
    %791 = vmatprep.subr.mxu0 0.0
    %792 = vmatpush2.msra.mxu0 0.0
    %793 = vmatprep.subr.mxu0 0.0
    %794 = vmatpush2.msra.mxu0 0.0
    %795 = vmatprep.subr.mxu0 0.0
    %796 = vmatpush2.msra.mxu0 0.0
    %797 = vmatprep.subr.mxu0 0.0
    %798 = vmatpush2.msra.mxu0 0.0
    %799 = vmatprep.subr.mxu0 0.0
    %800 = vmatpush2.msra.mxu0 0.0
    %801 = vmatprep.subr.mxu0 0.0
    %802 = vmatpush2.msra.mxu0 0.0
    %803 = vmatprep.subr.mxu0 0.0
    %804 = vmatpush2.msra.mxu0 0.0
    %805 = vmatprep.subr.mxu0 0.0
    %806 = vmatpush2.msra.mxu0 0.0
    %807 = vmatprep.mubr.f32.mxu0 0.0
    %808 = vmatmul.mubr.f32.gmra.mxu0 %v741
    %v809 = vpop.f32.mrf.mxu0
    %v810 = vadd.f32 0.0, %v809
    %v811 = vpop.f32.mrf.mxu0
    %812 = vdwg.mxu0
    %v813 = vadd.f32 %v739, %v810
    %v814 = vtanh.pop %v813
    %v815 = vxor.u32 %v813, 2147483648
    %v816 = vmul.f32 %v815, 1.442695
    %v817 = vpow.pop %v816
    %v818 = vadd.f32 %v817, 1.0
    %v819 = vrcp.pop %v818
    %v820 = vmul.f32 1.0, %v819
    %v821 = vsel %vm101, %v814, %v820
    %823 = vrot.lane.b32.xlu0 %v734, 32
    %v824 = vpop.permute.xlu0 %823
    %v826 = vmul.f32 %v821, %v824
    %828 = vrot.lane.b32.xlu0 %v821, 64
    %v829 = vpop.permute.xlu0 %828
    %v831 = vmul.f32 %v821, %v829
    %833 = vrot.lane.b32.xlu0 %v831, 32
    %v834 = vpop.permute.xlu0 %833
    %v836 = vadd.f32 %v826, %v834
    %v837 = vtanh.pop %v836
    %839 = vrot.lane.b32.xlu0 %v837, 64
    %v840 = vpop.permute.xlu0 %839
    %v842 = vmul.f32 %v821, %v840
    %s843 = scalar_lea.vmem [#allocation7], 32
    %v844 = vld [vmem:[%s843] sm:$0xff]
    %vm845 = vcmp.gt.f32.partialorder %v844, 0.5
    %847 = vrot.lane.b32.xlu0 %v842, 32
    %v848 = vpop.permute.xlu0 %847
    %v850 = vsel %vm845, %v848, %v729
    %852 = vrot.lane.b32.xlu0 %v836, 96
    %v853 = vpop.permute.xlu0 %852
    %v855 = vsel %vm845, %v853, %v734
    %v856 = vsel %vm845, %v848, 0.0
    %s857 = scalar_lea.vmem [#allocation2], 32
    %858 = vst.msk [vmem:[%s857] sm:$0xff] %vm88, %v856
    %s859 = scalar_lea.vmem [#allocation3], 40
    %v860 = vld [vmem:[%s859] sm:$0xff]
    %v862 = vsel %vm88, %v850, 0
    %864 = vmatprep.subr.mxu0 0.0
    %865 = vmatpush1.msra.mxu0 0.0
    %866 = vmatprep.subr.mxu0 0.0
    %867 = vmatpush1.msra.mxu0 0.0
    %868 = vmatprep.subr.mxu0 0.0
    %869 = vmatpush1.msra.mxu0 0.0
    %870 = vmatprep.subr.mxu0 0.0
    %871 = vmatpush1.msra.mxu0 0.0
    %872 = vmatprep.subr.mxu0 0.0
    %873 = vmatpush1.msra.mxu0 0.0
    %874 = vmatprep.subr.mxu0 0.0
    %875 = vmatpush1.msra.mxu0 0.0
    %876 = vmatprep.subr.mxu0 0.0
    %877 = vmatpush1.msra.mxu0 0.0
    %878 = vmatprep.subr.mxu0 0.0
    %879 = vmatpush1.msra.mxu0 0.0
    %880 = vmatprep.subr.mxu0 0.0
    %881 = vmatpush1.msra.mxu0 0.0
    %882 = vmatprep.subr.mxu0 0.0
    %883 = vmatpush1.msra.mxu0 0.0
    %884 = vmatprep.subr.mxu0 0.0
    %885 = vmatpush1.msra.mxu0 0.0
    %886 = vmatprep.subr.mxu0 0.0
    %887 = vmatpush1.msra.mxu0 0.0
    %888 = vmatprep.subr.mxu0 0.0
    %889 = vmatpush1.msra.mxu0 %v105
    %890 = vmatprep.subr.mxu0 0.0
    %891 = vmatpush1.msra.mxu0 %v104
    %892 = vmatprep.subr.mxu0 0.0
    %893 = vmatpush1.msra.mxu0 %v103
    %894 = vmatprep.subr.mxu0 0.0
    %895 = vmatpush1.msra.mxu0 %v102
    %896 = vmatprep.subr.mxu0 0.0
    %897 = vmatpush2.msra.mxu0 0.0
    %898 = vmatprep.subr.mxu0 0.0
    %899 = vmatpush2.msra.mxu0 0.0
    %900 = vmatprep.subr.mxu0 0.0
    %901 = vmatpush2.msra.mxu0 0.0
    %902 = vmatprep.subr.mxu0 0.0
    %903 = vmatpush2.msra.mxu0 0.0
    %904 = vmatprep.subr.mxu0 0.0
    %905 = vmatpush2.msra.mxu0 0.0
    %906 = vmatprep.subr.mxu0 0.0
    %907 = vmatpush2.msra.mxu0 0.0
    %908 = vmatprep.subr.mxu0 0.0
    %909 = vmatpush2.msra.mxu0 0.0
    %910 = vmatprep.subr.mxu0 0.0
    %911 = vmatpush2.msra.mxu0 0.0
    %912 = vmatprep.subr.mxu0 0.0
    %913 = vmatpush2.msra.mxu0 0.0
    %914 = vmatprep.subr.mxu0 0.0
    %915 = vmatpush2.msra.mxu0 0.0
    %916 = vmatprep.subr.mxu0 0.0
    %917 = vmatpush2.msra.mxu0 0.0
    %918 = vmatprep.subr.mxu0 0.0
    %919 = vmatpush2.msra.mxu0 0.0
    %920 = vmatprep.subr.mxu0 0.0
    %921 = vmatpush2.msra.mxu0 0.0
    %922 = vmatprep.subr.mxu0 0.0
    %923 = vmatpush2.msra.mxu0 0.0
    %924 = vmatprep.subr.mxu0 0.0
    %925 = vmatpush2.msra.mxu0 0.0
    %926 = vmatprep.subr.mxu0 0.0
    %927 = vmatpush2.msra.mxu0 0.0
    %928 = vmatprep.mubr.f32.mxu0 0.0
    %929 = vmatmul.mubr.f32.gmra.mxu0 %v862
    %v930 = vpop.f32.mrf.mxu0
    %v931 = vadd.f32 0.0, %v930
    %v932 = vpop.f32.mrf.mxu0
    %933 = vdwg.mxu0
    %v934 = vadd.f32 %v860, %v931
    %v935 = vtanh.pop %v934
    %v936 = vxor.u32 %v934, 2147483648
    %v937 = vmul.f32 %v936, 1.442695
    %v938 = vpow.pop %v937
    %v939 = vadd.f32 %v938, 1.0
    %v940 = vrcp.pop %v939
    %v941 = vmul.f32 1.0, %v940
    %v942 = vsel %vm101, %v935, %v941
    %944 = vrot.lane.b32.xlu0 %v855, 32
    %v945 = vpop.permute.xlu0 %944
    %v947 = vmul.f32 %v942, %v945
    %949 = vrot.lane.b32.xlu0 %v942, 64
    %v950 = vpop.permute.xlu0 %949
    %v952 = vmul.f32 %v942, %v950
    %954 = vrot.lane.b32.xlu0 %v952, 32
    %v955 = vpop.permute.xlu0 %954
    %v957 = vadd.f32 %v947, %v955
    %v958 = vtanh.pop %v957
    %960 = vrot.lane.b32.xlu0 %v958, 64
    %v961 = vpop.permute.xlu0 %960
    %v963 = vmul.f32 %v942, %v961
    %s964 = scalar_lea.vmem [#allocation7], 40
    %v965 = vld [vmem:[%s964] sm:$0xff]
    %vm966 = vcmp.gt.f32.partialorder %v965, 0.5
    %968 = vrot.lane.b32.xlu0 %v963, 32
    %v969 = vpop.permute.xlu0 %968
    %v971 = vsel %vm966, %v969, %v850
    %973 = vrot.lane.b32.xlu0 %v957, 96
    %v974 = vpop.permute.xlu0 %973
    %v976 = vsel %vm966, %v974, %v855
    %v977 = vsel %vm966, %v969, 0.0
    %s978 = scalar_lea.vmem [#allocation2], 40
    %979 = vst.msk [vmem:[%s978] sm:$0xff] %vm88, %v977
    %s980 = scalar_lea.vmem [#allocation3], 48
    %v981 = vld [vmem:[%s980] sm:$0xff]
    %v983 = vsel %vm88, %v971, 0
    %985 = vmatprep.subr.mxu0 0.0
    %986 = vmatpush1.msra.mxu0 0.0
    %987 = vmatprep.subr.mxu0 0.0
    %988 = vmatpush1.msra.mxu0 0.0
    %989 = vmatprep.subr.mxu0 0.0
    %990 = vmatpush1.msra.mxu0 0.0
    %991 = vmatprep.subr.mxu0 0.0
    %992 = vmatpush1.msra.mxu0 0.0
    %993 = vmatprep.subr.mxu0 0.0
    %994 = vmatpush1.msra.mxu0 0.0
    %995 = vmatprep.subr.mxu0 0.0
    %996 = vmatpush1.msra.mxu0 0.0
    %997 = vmatprep.subr.mxu0 0.0
    %998 = vmatpush1.msra.mxu0 0.0
    %999 = vmatprep.subr.mxu0 0.0
    %1000 = vmatpush1.msra.mxu0 0.0
    %1001 = vmatprep.subr.mxu0 0.0
    %1002 = vmatpush1.msra.mxu0 0.0
    %1003 = vmatprep.subr.mxu0 0.0
    %1004 = vmatpush1.msra.mxu0 0.0
    %1005 = vmatprep.subr.mxu0 0.0
    %1006 = vmatpush1.msra.mxu0 0.0
    %1007 = vmatprep.subr.mxu0 0.0
    %1008 = vmatpush1.msra.mxu0 0.0
    %1009 = vmatprep.subr.mxu0 0.0
    %1010 = vmatpush1.msra.mxu0 %v105
    %1011 = vmatprep.subr.mxu0 0.0
    %1012 = vmatpush1.msra.mxu0 %v104
    %1013 = vmatprep.subr.mxu0 0.0
    %1014 = vmatpush1.msra.mxu0 %v103
    %1015 = vmatprep.subr.mxu0 0.0
    %1016 = vmatpush1.msra.mxu0 %v102
    %1017 = vmatprep.subr.mxu0 0.0
    %1018 = vmatpush2.msra.mxu0 0.0
    %1019 = vmatprep.subr.mxu0 0.0
    %1020 = vmatpush2.msra.mxu0 0.0
    %1021 = vmatprep.subr.mxu0 0.0
    %1022 = vmatpush2.msra.mxu0 0.0
    %1023 = vmatprep.subr.mxu0 0.0
    %1024 = vmatpush2.msra.mxu0 0.0
    %1025 = vmatprep.subr.mxu0 0.0
    %1026 = vmatpush2.msra.mxu0 0.0
    %1027 = vmatprep.subr.mxu0 0.0
    %1028 = vmatpush2.msra.mxu0 0.0
    %1029 = vmatprep.subr.mxu0 0.0
    %1030 = vmatpush2.msra.mxu0 0.0
    %1031 = vmatprep.subr.mxu0 0.0
    %1032 = vmatpush2.msra.mxu0 0.0
    %1033 = vmatprep.subr.mxu0 0.0
    %1034 = vmatpush2.msra.mxu0 0.0
    %1035 = vmatprep.subr.mxu0 0.0
    %1036 = vmatpush2.msra.mxu0 0.0
    %1037 = vmatprep.subr.mxu0 0.0
    %1038 = vmatpush2.msra.mxu0 0.0
    %1039 = vmatprep.subr.mxu0 0.0
    %1040 = vmatpush2.msra.mxu0 0.0
    %1041 = vmatprep.subr.mxu0 0.0
    %1042 = vmatpush2.msra.mxu0 0.0
    %1043 = vmatprep.subr.mxu0 0.0
    %1044 = vmatpush2.msra.mxu0 0.0
    %1045 = vmatprep.subr.mxu0 0.0
    %1046 = vmatpush2.msra.mxu0 0.0
    %1047 = vmatprep.subr.mxu0 0.0
    %1048 = vmatpush2.msra.mxu0 0.0
    %1049 = vmatprep.mubr.f32.mxu0 0.0
    %1050 = vmatmul.mubr.f32.gmra.mxu0 %v983
    %v1051 = vpop.f32.mrf.mxu0
    %v1052 = vadd.f32 0.0, %v1051
    %v1053 = vpop.f32.mrf.mxu0
    %1054 = vdwg.mxu0
    %v1055 = vadd.f32 %v981, %v1052
    %v1056 = vtanh.pop %v1055
    %v1057 = vxor.u32 %v1055, 2147483648
    %v1058 = vmul.f32 %v1057, 1.442695
    %v1059 = vpow.pop %v1058
    %v1060 = vadd.f32 %v1059, 1.0
    %v1061 = vrcp.pop %v1060
    %v1062 = vmul.f32 1.0, %v1061
    %v1063 = vsel %vm101, %v1056, %v1062
    %1065 = vrot.lane.b32.xlu0 %v976, 32
    %v1066 = vpop.permute.xlu0 %1065
    %v1068 = vmul.f32 %v1063, %v1066
    %1070 = vrot.lane.b32.xlu0 %v1063, 64
    %v1071 = vpop.permute.xlu0 %1070
    %v1073 = vmul.f32 %v1063, %v1071
    %1075 = vrot.lane.b32.xlu0 %v1073, 32
    %v1076 = vpop.permute.xlu0 %1075
    %v1078 = vadd.f32 %v1068, %v1076
    %v1079 = vtanh.pop %v1078
    %1081 = vrot.lane.b32.xlu0 %v1079, 64
    %v1082 = vpop.permute.xlu0 %1081
    %v1084 = vmul.f32 %v1063, %v1082
    %s1085 = scalar_lea.vmem [#allocation7], 48
    %v1086 = vld [vmem:[%s1085] sm:$0xff]
    %vm1087 = vcmp.gt.f32.partialorder %v1086, 0.5
    %1089 = vrot.lane.b32.xlu0 %v1084, 32
    %v1090 = vpop.permute.xlu0 %1089
    %v1092 = vsel %vm1087, %v1090, %v971
    %1094 = vrot.lane.b32.xlu0 %v1078, 96
    %v1095 = vpop.permute.xlu0 %1094
    %v1097 = vsel %vm1087, %v1095, %v976
    %v1098 = vsel %vm1087, %v1090, 0.0
    %s1099 = scalar_lea.vmem [#allocation2], 48
    %1100 = vst.msk [vmem:[%s1099] sm:$0xff] %vm88, %v1098
    %s1101 = scalar_lea.vmem [#allocation3], 56
    %v1102 = vld [vmem:[%s1101] sm:$0xff]
    %v1104 = vsel %vm88, %v1092, 0
    %1106 = vmatprep.subr.mxu0 0.0
    %1107 = vmatpush1.msra.mxu0 0.0
    %1108 = vmatprep.subr.mxu0 0.0
    %1109 = vmatpush1.msra.mxu0 0.0
    %1110 = vmatprep.subr.mxu0 0.0
    %1111 = vmatpush1.msra.mxu0 0.0
    %1112 = vmatprep.subr.mxu0 0.0
    %1113 = vmatpush1.msra.mxu0 0.0
    %1114 = vmatprep.subr.mxu0 0.0
    %1115 = vmatpush1.msra.mxu0 0.0
    %1116 = vmatprep.subr.mxu0 0.0
    %1117 = vmatpush1.msra.mxu0 0.0
    %1118 = vmatprep.subr.mxu0 0.0
    %1119 = vmatpush1.msra.mxu0 0.0
    %1120 = vmatprep.subr.mxu0 0.0
    %1121 = vmatpush1.msra.mxu0 0.0
    %1122 = vmatprep.subr.mxu0 0.0
    %1123 = vmatpush1.msra.mxu0 0.0
    %1124 = vmatprep.subr.mxu0 0.0
    %1125 = vmatpush1.msra.mxu0 0.0
    %1126 = vmatprep.subr.mxu0 0.0
    %1127 = vmatpush1.msra.mxu0 0.0
    %1128 = vmatprep.subr.mxu0 0.0
    %1129 = vmatpush1.msra.mxu0 0.0
    %1130 = vmatprep.subr.mxu0 0.0
    %1131 = vmatpush1.msra.mxu0 %v105
    %1132 = vmatprep.subr.mxu0 0.0
    %1133 = vmatpush1.msra.mxu0 %v104
    %1134 = vmatprep.subr.mxu0 0.0
    %1135 = vmatpush1.msra.mxu0 %v103
    %1136 = vmatprep.subr.mxu0 0.0
    %1137 = vmatpush1.msra.mxu0 %v102
    %1138 = vmatprep.subr.mxu0 0.0
    %1139 = vmatpush2.msra.mxu0 0.0
    %1140 = vmatprep.subr.mxu0 0.0
    %1141 = vmatpush2.msra.mxu0 0.0
    %1142 = vmatprep.subr.mxu0 0.0
    %1143 = vmatpush2.msra.mxu0 0.0
    %1144 = vmatprep.subr.mxu0 0.0
    %1145 = vmatpush2.msra.mxu0 0.0
    %1146 = vmatprep.subr.mxu0 0.0
    %1147 = vmatpush2.msra.mxu0 0.0
    %1148 = vmatprep.subr.mxu0 0.0
    %1149 = vmatpush2.msra.mxu0 0.0
    %1150 = vmatprep.subr.mxu0 0.0
    %1151 = vmatpush2.msra.mxu0 0.0
    %1152 = vmatprep.subr.mxu0 0.0
    %1153 = vmatpush2.msra.mxu0 0.0
    %1154 = vmatprep.subr.mxu0 0.0
    %1155 = vmatpush2.msra.mxu0 0.0
    %1156 = vmatprep.subr.mxu0 0.0
    %1157 = vmatpush2.msra.mxu0 0.0
    %1158 = vmatprep.subr.mxu0 0.0
    %1159 = vmatpush2.msra.mxu0 0.0
    %1160 = vmatprep.subr.mxu0 0.0
    %1161 = vmatpush2.msra.mxu0 0.0
    %1162 = vmatprep.subr.mxu0 0.0
    %1163 = vmatpush2.msra.mxu0 0.0
    %1164 = vmatprep.subr.mxu0 0.0
    %1165 = vmatpush2.msra.mxu0 0.0
    %1166 = vmatprep.subr.mxu0 0.0
    %1167 = vmatpush2.msra.mxu0 0.0
    %1168 = vmatprep.subr.mxu0 0.0
    %1169 = vmatpush2.msra.mxu0 0.0
    %1170 = vmatprep.mubr.f32.mxu0 0.0
    %1171 = vmatmul.mubr.f32.gmra.mxu0 %v1104
    %v1172 = vpop.f32.mrf.mxu0
    %v1173 = vadd.f32 0.0, %v1172
    %v1174 = vpop.f32.mrf.mxu0
    %1175 = vdwg.mxu0
    %v1176 = vadd.f32 %v1102, %v1173
    %v1177 = vtanh.pop %v1176
    %v1178 = vxor.u32 %v1176, 2147483648
    %v1179 = vmul.f32 %v1178, 1.442695
    %v1180 = vpow.pop %v1179
    %v1181 = vadd.f32 %v1180, 1.0
    %v1182 = vrcp.pop %v1181
    %v1183 = vmul.f32 1.0, %v1182
    %v1184 = vsel %vm101, %v1177, %v1183
    %1186 = vrot.lane.b32.xlu0 %v1097, 32
    %v1187 = vpop.permute.xlu0 %1186
    %v1189 = vmul.f32 %v1184, %v1187
    %1191 = vrot.lane.b32.xlu0 %v1184, 64
    %v1192 = vpop.permute.xlu0 %1191
    %v1194 = vmul.f32 %v1184, %v1192
    %1196 = vrot.lane.b32.xlu0 %v1194, 32
    %v1197 = vpop.permute.xlu0 %1196
    %v1199 = vadd.f32 %v1189, %v1197
    %v1200 = vtanh.pop %v1199
    %1202 = vrot.lane.b32.xlu0 %v1200, 64
    %v1203 = vpop.permute.xlu0 %1202
    %v1205 = vmul.f32 %v1184, %v1203
    %s1206 = scalar_lea.vmem [#allocation7], 56
    %v1207 = vld [vmem:[%s1206] sm:$0xff]
    %vm1208 = vcmp.gt.f32.partialorder %v1207, 0.5
    %1210 = vrot.lane.b32.xlu0 %v1205, 32
    %v1211 = vpop.permute.xlu0 %1210
    %v1213 = vsel %vm1208, %v1211, %v1092
    %1215 = vrot.lane.b32.xlu0 %v1199, 96
    %v1216 = vpop.permute.xlu0 %1215
    %v1218 = vsel %vm1208, %v1216, %v1097
    %v1219 = vsel %vm1208, %v1211, 0.0
    %s1220 = scalar_lea.vmem [#allocation2], 56
    %1221 = vst.msk [vmem:[%s1220] sm:$0xff] %vm88, %v1219
    %1222 = vst.msk [vmem:[#allocation13] sm:$0xff] %vm88, %v1213
    %1223 = vst.msk [vmem:[#allocation15] sm:$0xff] %vm88, %v1218
    %s1224 = scalar_lea.vmem [#allocation10], 32
    %v1225 = vld [vmem:[%s1224] sm:$0xff]
    %v1226 = vld [vmem:[%s1224 + $0x8] sm:$0xff]
    %v1227 = vld [vmem:[%s1224 + $0x10] sm:$0xff]
    %v1228 = vld [vmem:[%s1224 + $0x18] sm:$0xff]
    %v1229 = vld [vmem:[#allocation2] sm:$0xff]
    %v1230 = vld [vmem:[#allocation2 + $0x8] sm:$0xff]
    %v1231 = vld [vmem:[#allocation2 + $0x10] sm:$0xff]
    %v1232 = vld [vmem:[#allocation2 + $0x18] sm:$0xff]
    %v1233 = vld [vmem:[#allocation2 + $0x20] sm:$0xff]
    %v1234 = vld [vmem:[#allocation2 + $0x28] sm:$0xff]
    %v1235 = vld [vmem:[#allocation2 + $0x30] sm:$0xff]
    %v1236 = vld [vmem:[#allocation2 + $0x38] sm:$0xff]
    %s1237 = scalar_lea.vmem [#allocation9], 32
    %v1238 = vld [vmem:[%s1237] sm:$0xff]
    %v1239 = vld [vmem:[%s1237 + $0x8] sm:$0xff]
    %v1240 = vld [vmem:[%s1237 + $0x10] sm:$0xff]
    %v1241 = vld [vmem:[%s1237 + $0x18] sm:$0xff]
    %s1242 = scalar_lea.vmem %s4, 1
    %v1243 = vld [vmem:[%s1242] sm:$0x1]
    %v1245 = vlaneseq
    %v1246 = vshrl.u32 %v1245, 7
    %v1247 = vsub.s32 0, %v1246
    %v1248 = vrot.slane %v1243, %v1247
    %v1251 = vsel %vm88, %v1229, 0
    %v1254 = vsel %vm88, %v1230, 0
    %v1257 = vsel %vm88, %v1231, 0
    %v1260 = vsel %vm88, %v1232, 0
    %v1263 = vsel %vm88, %v1233, 0
    %v1266 = vsel %vm88, %v1234, 0
    %v1269 = vsel %vm88, %v1235, 0
    %v1272 = vsel %vm88, %v1236, 0
    %1274 = vmatprep.subr.mxu0 0.0
    %1275 = vmatpush1.msra.mxu0 0.0
    %1276 = vmatprep.subr.mxu0 0.0
    %1277 = vmatpush1.msra.mxu0 0.0
    %1278 = vmatprep.subr.mxu0 0.0
    %1279 = vmatpush1.msra.mxu0 0.0
    %1280 = vmatprep.subr.mxu0 0.0
    %1281 = vmatpush1.msra.mxu0 0.0
    %1282 = vmatprep.subr.mxu0 0.0
    %1283 = vmatpush1.msra.mxu0 0.0
    %1284 = vmatprep.subr.mxu0 0.0
    %1285 = vmatpush1.msra.mxu0 0.0
    %1286 = vmatprep.subr.mxu0 0.0
    %1287 = vmatpush1.msra.mxu0 0.0
    %1288 = vmatprep.subr.mxu0 0.0
    %1289 = vmatpush1.msra.mxu0 0.0
    %1290 = vmatprep.subr.mxu0 0.0
    %1291 = vmatpush1.msra.mxu0 0.0
    %1292 = vmatprep.subr.mxu0 0.0
    %1293 = vmatpush1.msra.mxu0 0.0
    %1294 = vmatprep.subr.mxu0 0.0
    %1295 = vmatpush1.msra.mxu0 0.0
    %1296 = vmatprep.subr.mxu0 0.0
    %1297 = vmatpush1.msra.mxu0 0.0
    %1298 = vmatprep.subr.mxu0 0.0
    %1299 = vmatpush1.msra.mxu0 %v1241
    %1300 = vmatprep.subr.mxu0 0.0
    %1301 = vmatpush1.msra.mxu0 %v1240
    %1302 = vmatprep.subr.mxu0 0.0
    %1303 = vmatpush1.msra.mxu0 %v1239
    %1304 = vmatprep.subr.mxu0 0.0
    %1305 = vmatpush1.msra.mxu0 %v1238
    %1306 = vmatprep.subr.mxu0 0.0
    %1307 = vmatpush2.msra.mxu0 0.0
    %1308 = vmatprep.subr.mxu0 0.0
    %1309 = vmatpush2.msra.mxu0 0.0
    %1310 = vmatprep.subr.mxu0 0.0
    %1311 = vmatpush2.msra.mxu0 0.0
    %1312 = vmatprep.subr.mxu0 0.0
    %1313 = vmatpush2.msra.mxu0 0.0
    %1314 = vmatprep.subr.mxu0 0.0
    %1315 = vmatpush2.msra.mxu0 0.0
    %1316 = vmatprep.subr.mxu0 0.0
    %1317 = vmatpush2.msra.mxu0 0.0
    %1318 = vmatprep.subr.mxu0 0.0
    %1319 = vmatpush2.msra.mxu0 0.0
    %1320 = vmatprep.subr.mxu0 0.0
    %1321 = vmatpush2.msra.mxu0 0.0
    %1322 = vmatprep.subr.mxu0 0.0
    %1323 = vmatpush2.msra.mxu0 0.0
    %1324 = vmatprep.subr.mxu0 0.0
    %1325 = vmatpush2.msra.mxu0 0.0
    %1326 = vmatprep.subr.mxu0 0.0
    %1327 = vmatpush2.msra.mxu0 0.0
    %1328 = vmatprep.subr.mxu0 0.0
    %1329 = vmatpush2.msra.mxu0 0.0
    %1330 = vmatprep.subr.mxu0 0.0
    %1331 = vmatpush2.msra.mxu0 0.0
    %1332 = vmatprep.subr.mxu0 0.0
    %1333 = vmatpush2.msra.mxu0 0.0
    %1334 = vmatprep.subr.mxu0 0.0
    %1335 = vmatpush2.msra.mxu0 0.0
    %1336 = vmatprep.subr.mxu0 0.0
    %1337 = vmatpush2.msra.mxu0 0.0
    %1338 = vmatprep.mubr.f32.mxu0 0.0
    %1339 = vmatmul.mubr.f32.gmra.mxu0 %v1251
    %v1340 = vpop.f32.mrf.mxu0
    %v1341 = vadd.f32 %v1248, %v1340
    %v1342 = vpop.f32.mrf.mxu0
    %1343 = vmatprep.mubr.f32.mxu0 0.0
    %1344 = vmatmul.mubr.f32.gmra.mxu0 %v1254
    %v1345 = vpop.f32.mrf.mxu0
    %v1346 = vadd.f32 %v1248, %v1345
    %v1347 = vpop.f32.mrf.mxu0
    %1348 = vmatprep.mubr.f32.mxu0 0.0
    %1349 = vmatmul.mubr.f32.gmra.mxu0 %v1257
    %v1350 = vpop.f32.mrf.mxu0
    %v1351 = vadd.f32 %v1248, %v1350
    %v1352 = vpop.f32.mrf.mxu0
    %1353 = vmatprep.mubr.f32.mxu0 0.0
    %1354 = vmatmul.mubr.f32.gmra.mxu0 %v1260
    %v1355 = vpop.f32.mrf.mxu0
    %v1356 = vadd.f32 %v1248, %v1355
    %v1357 = vpop.f32.mrf.mxu0
    %1358 = vmatprep.mubr.f32.mxu0 0.0
    %1359 = vmatmul.mubr.f32.gmra.mxu0 %v1263
    %v1360 = vpop.f32.mrf.mxu0
    %v1361 = vadd.f32 %v1248, %v1360
    %v1362 = vpop.f32.mrf.mxu0
    %1363 = vmatprep.mubr.f32.mxu0 0.0
    %1364 = vmatmul.mubr.f32.gmra.mxu0 %v1266
    %v1365 = vpop.f32.mrf.mxu0
    %v1366 = vadd.f32 %v1248, %v1365
    %v1367 = vpop.f32.mrf.mxu0
    %1368 = vmatprep.mubr.f32.mxu0 0.0
    %1369 = vmatmul.mubr.f32.gmra.mxu0 %v1269
    %v1370 = vpop.f32.mrf.mxu0
    %v1371 = vadd.f32 %v1248, %v1370
    %v1372 = vpop.f32.mrf.mxu0
    %1373 = vmatprep.mubr.f32.mxu0 0.0
    %1374 = vmatmul.mubr.f32.gmra.mxu0 %v1272
    %v1375 = vpop.f32.mrf.mxu0
    %v1376 = vadd.f32 %v1248, %v1375
    %v1377 = vpop.f32.mrf.mxu0
    %1378 = vdwg.mxu0
    %1379 = vst [vmem:[#allocation3] sm:$0xff] %v1341
    %1380 = vst [vmem:[#allocation3 + $0x8] sm:$0xff] %v1346
    %1381 = vst [vmem:[#allocation3 + $0x10] sm:$0xff] %v1351
    %1382 = vst [vmem:[#allocation3 + $0x18] sm:$0xff] %v1356
    %1383 = vst [vmem:[#allocation3 + $0x20] sm:$0xff] %v1361
    %1384 = vst [vmem:[#allocation3 + $0x28] sm:$0xff] %v1366
    %1385 = vst [vmem:[#allocation3 + $0x30] sm:$0xff] %v1371
    %1386 = vst [vmem:[#allocation3 + $0x38] sm:$0xff] %v1376
    %v1387 = vld [vmem:[#allocation3] sm:$0xff]
    %1388 = vmatprep.subr.mxu0 0.0
    %1389 = vmatpush1.msra.mxu0 0.0
    %1390 = vmatprep.subr.mxu0 0.0
    %1391 = vmatpush1.msra.mxu0 0.0
    %1392 = vmatprep.subr.mxu0 0.0
    %1393 = vmatpush1.msra.mxu0 0.0
    %1394 = vmatprep.subr.mxu0 0.0
    %1395 = vmatpush1.msra.mxu0 0.0
    %1396 = vmatprep.subr.mxu0 0.0
    %1397 = vmatpush1.msra.mxu0 0.0
    %1398 = vmatprep.subr.mxu0 0.0
    %1399 = vmatpush1.msra.mxu0 0.0
    %1400 = vmatprep.subr.mxu0 0.0
    %1401 = vmatpush1.msra.mxu0 0.0
    %1402 = vmatprep.subr.mxu0 0.0
    %1403 = vmatpush1.msra.mxu0 0.0
    %1404 = vmatprep.subr.mxu0 0.0
    %1405 = vmatpush1.msra.mxu0 0.0
    %1406 = vmatprep.subr.mxu0 0.0
    %1407 = vmatpush1.msra.mxu0 0.0
    %1408 = vmatprep.subr.mxu0 0.0
    %1409 = vmatpush1.msra.mxu0 0.0
    %1410 = vmatprep.subr.mxu0 0.0
    %1411 = vmatpush1.msra.mxu0 0.0
    %1412 = vmatprep.subr.mxu0 0.0
    %1413 = vmatpush1.msra.mxu0 %v1228
    %1414 = vmatprep.subr.mxu0 0.0
    %1415 = vmatpush1.msra.mxu0 %v1227
    %1416 = vmatprep.subr.mxu0 0.0
    %1417 = vmatpush1.msra.mxu0 %v1226
    %1418 = vmatprep.subr.mxu0 0.0
    %1419 = vmatpush1.msra.mxu0 %v1225
    %1420 = vmatprep.subr.mxu0 0.0
    %1421 = vmatpush2.msra.mxu0 0.0
    %1422 = vmatprep.subr.mxu0 0.0
    %1423 = vmatpush2.msra.mxu0 0.0
    %1424 = vmatprep.subr.mxu0 0.0
    %1425 = vmatpush2.msra.mxu0 0.0
    %1426 = vmatprep.subr.mxu0 0.0
    %1427 = vmatpush2.msra.mxu0 0.0
    %1428 = vmatprep.subr.mxu0 0.0
    %1429 = vmatpush2.msra.mxu0 0.0
    %1430 = vmatprep.subr.mxu0 0.0
    %1431 = vmatpush2.msra.mxu0 0.0
    %1432 = vmatprep.subr.mxu0 0.0
    %1433 = vmatpush2.msra.mxu0 0.0
    %1434 = vmatprep.subr.mxu0 0.0
    %1435 = vmatpush2.msra.mxu0 0.0
    %1436 = vmatprep.subr.mxu0 0.0
    %1437 = vmatpush2.msra.mxu0 0.0
    %1438 = vmatprep.subr.mxu0 0.0
    %1439 = vmatpush2.msra.mxu0 0.0
    %1440 = vmatprep.subr.mxu0 0.0
    %1441 = vmatpush2.msra.mxu0 0.0
    %1442 = vmatprep.subr.mxu0 0.0
    %1443 = vmatpush2.msra.mxu0 0.0
    %1444 = vmatprep.subr.mxu0 0.0
    %1445 = vmatpush2.msra.mxu0 0.0
    %1446 = vmatprep.subr.mxu0 0.0
    %1447 = vmatpush2.msra.mxu0 0.0
    %1448 = vmatprep.subr.mxu0 0.0
    %1449 = vmatpush2.msra.mxu0 0.0
    %1450 = vmatprep.subr.mxu0 0.0
    %1451 = vmatpush2.msra.mxu0 0.0
    %1452 = vmatprep.mubr.f32.mxu0 0.0
    %1453 = vmatmul.mubr.f32.gmra.mxu0 %v264
    %v1454 = vpop.f32.mrf.mxu0
    %v1455 = vadd.f32 0.0, %v1454
    %v1456 = vpop.f32.mrf.mxu0
    %1457 = vdwg.mxu0
    %v1458 = vadd.f32 %v1387, %v1455
    %v1459 = vtanh.pop %v1458
    %v1460 = vxor.u32 %v1458, 2147483648
    %v1461 = vmul.f32 %v1460, 1.442695
    %v1462 = vpow.pop %v1461
    %v1463 = vadd.f32 %v1462, 1.0
    %v1464 = vrcp.pop %v1463
    %v1465 = vmul.f32 1.0, %v1464
    %v1466 = vsel %vm101, %v1459, %v1465
    %v1467 = vmul.f32 %v1466, 0.0
    %1469 = vrot.lane.b32.xlu0 %v1466, 64
    %v1470 = vpop.permute.xlu0 %1469
    %v1472 = vmul.f32 %v1466, %v1470
    %1474 = vrot.lane.b32.xlu0 %v1472, 32
    %v1475 = vpop.permute.xlu0 %1474
    %v1477 = vadd.f32 %v1467, %v1475
    %v1478 = vtanh.pop %v1477
    %1480 = vrot.lane.b32.xlu0 %v1478, 64
    %v1481 = vpop.permute.xlu0 %1480
    %v1483 = vmul.f32 %v1466, %v1481
    %v1484 = vld [vmem:[#allocation7] sm:$0xff]
    %vm1485 = vcmp.gt.f32.partialorder %v1484, 0.5
    %1487 = vrot.lane.b32.xlu0 %v1483, 32
    %v1488 = vpop.permute.xlu0 %1487
    %v1490 = vsel %vm1485, %v1488, 0.0
    %1492 = vrot.lane.b32.xlu0 %v1477, 96
    %v1493 = vpop.permute.xlu0 %1492
    %v1495 = vsel %vm1485, %v1493, 0.0
    %1496 = vst.msk [vmem:[#allocation12] sm:$0xff] %vm88, %v1490
    %v1497 = vld [vmem:[%s375] sm:$0xff]
    %v1499 = vsel %vm88, %v1490, 0
    %1501 = vmatprep.subr.mxu0 0.0
    %1502 = vmatpush1.msra.mxu0 0.0
    %1503 = vmatprep.subr.mxu0 0.0
    %1504 = vmatpush1.msra.mxu0 0.0
    %1505 = vmatprep.subr.mxu0 0.0
    %1506 = vmatpush1.msra.mxu0 0.0
    %1507 = vmatprep.subr.mxu0 0.0
    %1508 = vmatpush1.msra.mxu0 0.0
    %1509 = vmatprep.subr.mxu0 0.0
    %1510 = vmatpush1.msra.mxu0 0.0
    %1511 = vmatprep.subr.mxu0 0.0
    %1512 = vmatpush1.msra.mxu0 0.0
    %1513 = vmatprep.subr.mxu0 0.0
    %1514 = vmatpush1.msra.mxu0 0.0
    %1515 = vmatprep.subr.mxu0 0.0
    %1516 = vmatpush1.msra.mxu0 0.0
    %1517 = vmatprep.subr.mxu0 0.0
    %1518 = vmatpush1.msra.mxu0 0.0
    %1519 = vmatprep.subr.mxu0 0.0
    %1520 = vmatpush1.msra.mxu0 0.0
    %1521 = vmatprep.subr.mxu0 0.0
    %1522 = vmatpush1.msra.mxu0 0.0
    %1523 = vmatprep.subr.mxu0 0.0
    %1524 = vmatpush1.msra.mxu0 0.0
    %1525 = vmatprep.subr.mxu0 0.0
    %1526 = vmatpush1.msra.mxu0 %v1228
    %1527 = vmatprep.subr.mxu0 0.0
    %1528 = vmatpush1.msra.mxu0 %v1227
    %1529 = vmatprep.subr.mxu0 0.0
    %1530 = vmatpush1.msra.mxu0 %v1226
    %1531 = vmatprep.subr.mxu0 0.0
    %1532 = vmatpush1.msra.mxu0 %v1225
    %1533 = vmatprep.subr.mxu0 0.0
    %1534 = vmatpush2.msra.mxu0 0.0
    %1535 = vmatprep.subr.mxu0 0.0
    %1536 = vmatpush2.msra.mxu0 0.0
    %1537 = vmatprep.subr.mxu0 0.0
    %1538 = vmatpush2.msra.mxu0 0.0
    %1539 = vmatprep.subr.mxu0 0.0
    %1540 = vmatpush2.msra.mxu0 0.0
    %1541 = vmatprep.subr.mxu0 0.0
    %1542 = vmatpush2.msra.mxu0 0.0
    %1543 = vmatprep.subr.mxu0 0.0
    %1544 = vmatpush2.msra.mxu0 0.0
    %1545 = vmatprep.subr.mxu0 0.0
    %1546 = vmatpush2.msra.mxu0 0.0
    %1547 = vmatprep.subr.mxu0 0.0
    %1548 = vmatpush2.msra.mxu0 0.0
    %1549 = vmatprep.subr.mxu0 0.0
    %1550 = vmatpush2.msra.mxu0 0.0
    %1551 = vmatprep.subr.mxu0 0.0
    %1552 = vmatpush2.msra.mxu0 0.0
    %1553 = vmatprep.subr.mxu0 0.0
    %1554 = vmatpush2.msra.mxu0 0.0
    %1555 = vmatprep.subr.mxu0 0.0
    %1556 = vmatpush2.msra.mxu0 0.0
    %1557 = vmatprep.subr.mxu0 0.0
    %1558 = vmatpush2.msra.mxu0 0.0
    %1559 = vmatprep.subr.mxu0 0.0
    %1560 = vmatpush2.msra.mxu0 0.0
    %1561 = vmatprep.subr.mxu0 0.0
    %1562 = vmatpush2.msra.mxu0 0.0
    %1563 = vmatprep.subr.mxu0 0.0
    %1564 = vmatpush2.msra.mxu0 0.0
    %1565 = vmatprep.mubr.f32.mxu0 0.0
    %1566 = vmatmul.mubr.f32.gmra.mxu0 %v1499
    %v1567 = vpop.f32.mrf.mxu0
    %v1568 = vadd.f32 0.0, %v1567
    %v1569 = vpop.f32.mrf.mxu0
    %1570 = vdwg.mxu0
    %v1571 = vadd.f32 %v1497, %v1568
    %v1572 = vtanh.pop %v1571
    %v1573 = vxor.u32 %v1571, 2147483648
    %v1574 = vmul.f32 %v1573, 1.442695
    %v1575 = vpow.pop %v1574
    %v1576 = vadd.f32 %v1575, 1.0
    %v1577 = vrcp.pop %v1576
    %v1578 = vmul.f32 1.0, %v1577
    %v1579 = vsel %vm101, %v1572, %v1578
    %1581 = vrot.lane.b32.xlu0 %v1495, 32
    %v1582 = vpop.permute.xlu0 %1581
    %v1584 = vmul.f32 %v1579, %v1582
    %1586 = vrot.lane.b32.xlu0 %v1579, 64
    %v1587 = vpop.permute.xlu0 %1586
    %v1589 = vmul.f32 %v1579, %v1587
    %1591 = vrot.lane.b32.xlu0 %v1589, 32
    %v1592 = vpop.permute.xlu0 %1591
    %v1594 = vadd.f32 %v1584, %v1592
    %v1595 = vtanh.pop %v1594
    %1597 = vrot.lane.b32.xlu0 %v1595, 64
    %v1598 = vpop.permute.xlu0 %1597
    %v1600 = vmul.f32 %v1579, %v1598
    %v1601 = vld [vmem:[%s480] sm:$0xff]
    %vm1602 = vcmp.gt.f32.partialorder %v1601, 0.5
    %1604 = vrot.lane.b32.xlu0 %v1600, 32
    %v1605 = vpop.permute.xlu0 %1604
    %v1607 = vsel %vm1602, %v1605, %v1490
    %1609 = vrot.lane.b32.xlu0 %v1594, 96
    %v1610 = vpop.permute.xlu0 %1609
    %v1612 = vsel %vm1602, %v1610, %v1495
    %v1613 = vsel %vm1602, %v1605, 0.0
    %s1614 = scalar_lea.vmem [#allocation12], 8
    %1615 = vst.msk [vmem:[%s1614] sm:$0xff] %vm88, %v1613
    %v1616 = vld [vmem:[%s496] sm:$0xff]
    %v1618 = vsel %vm88, %v1607, 0
    %1620 = vmatprep.subr.mxu0 0.0
    %1621 = vmatpush1.msra.mxu0 0.0
    %1622 = vmatprep.subr.mxu0 0.0
    %1623 = vmatpush1.msra.mxu0 0.0
    %1624 = vmatprep.subr.mxu0 0.0
    %1625 = vmatpush1.msra.mxu0 0.0
    %1626 = vmatprep.subr.mxu0 0.0
    %1627 = vmatpush1.msra.mxu0 0.0
    %1628 = vmatprep.subr.mxu0 0.0
    %1629 = vmatpush1.msra.mxu0 0.0
    %1630 = vmatprep.subr.mxu0 0.0
    %1631 = vmatpush1.msra.mxu0 0.0
    %1632 = vmatprep.subr.mxu0 0.0
    %1633 = vmatpush1.msra.mxu0 0.0
    %1634 = vmatprep.subr.mxu0 0.0
    %1635 = vmatpush1.msra.mxu0 0.0
    %1636 = vmatprep.subr.mxu0 0.0
    %1637 = vmatpush1.msra.mxu0 0.0
    %1638 = vmatprep.subr.mxu0 0.0
    %1639 = vmatpush1.msra.mxu0 0.0
    %1640 = vmatprep.subr.mxu0 0.0
    %1641 = vmatpush1.msra.mxu0 0.0
    %1642 = vmatprep.subr.mxu0 0.0
    %1643 = vmatpush1.msra.mxu0 0.0
    %1644 = vmatprep.subr.mxu0 0.0
    %1645 = vmatpush1.msra.mxu0 %v1228
    %1646 = vmatprep.subr.mxu0 0.0
    %1647 = vmatpush1.msra.mxu0 %v1227
    %1648 = vmatprep.subr.mxu0 0.0
    %1649 = vmatpush1.msra.mxu0 %v1226
    %1650 = vmatprep.subr.mxu0 0.0
    %1651 = vmatpush1.msra.mxu0 %v1225
    %1652 = vmatprep.subr.mxu0 0.0
    %1653 = vmatpush2.msra.mxu0 0.0
    %1654 = vmatprep.subr.mxu0 0.0
    %1655 = vmatpush2.msra.mxu0 0.0
    %1656 = vmatprep.subr.mxu0 0.0
    %1657 = vmatpush2.msra.mxu0 0.0
    %1658 = vmatprep.subr.mxu0 0.0
    %1659 = vmatpush2.msra.mxu0 0.0
    %1660 = vmatprep.subr.mxu0 0.0
    %1661 = vmatpush2.msra.mxu0 0.0
    %1662 = vmatprep.subr.mxu0 0.0
    %1663 = vmatpush2.msra.mxu0 0.0
    %1664 = vmatprep.subr.mxu0 0.0
    %1665 = vmatpush2.msra.mxu0 0.0
    %1666 = vmatprep.subr.mxu0 0.0
    %1667 = vmatpush2.msra.mxu0 0.0
    %1668 = vmatprep.subr.mxu0 0.0
    %1669 = vmatpush2.msra.mxu0 0.0
    %1670 = vmatprep.subr.mxu0 0.0
    %1671 = vmatpush2.msra.mxu0 0.0
    %1672 = vmatprep.subr.mxu0 0.0
    %1673 = vmatpush2.msra.mxu0 0.0
    %1674 = vmatprep.subr.mxu0 0.0
    %1675 = vmatpush2.msra.mxu0 0.0
    %1676 = vmatprep.subr.mxu0 0.0
    %1677 = vmatpush2.msra.mxu0 0.0
    %1678 = vmatprep.subr.mxu0 0.0
    %1679 = vmatpush2.msra.mxu0 0.0
    %1680 = vmatprep.subr.mxu0 0.0
    %1681 = vmatpush2.msra.mxu0 0.0
    %1682 = vmatprep.subr.mxu0 0.0
    %1683 = vmatpush2.msra.mxu0 0.0
    %1684 = vmatprep.mubr.f32.mxu0 0.0
    %1685 = vmatmul.mubr.f32.gmra.mxu0 %v1618
    %v1686 = vpop.f32.mrf.mxu0
    %v1687 = vadd.f32 0.0, %v1686
    %v1688 = vpop.f32.mrf.mxu0
    %1689 = vdwg.mxu0
    %v1690 = vadd.f32 %v1616, %v1687
    %v1691 = vtanh.pop %v1690
    %v1692 = vxor.u32 %v1690, 2147483648
    %v1693 = vmul.f32 %v1692, 1.442695
    %v1694 = vpow.pop %v1693
    %v1695 = vadd.f32 %v1694, 1.0
    %v1696 = vrcp.pop %v1695
    %v1697 = vmul.f32 1.0, %v1696
    %v1698 = vsel %vm101, %v1691, %v1697
    %1700 = vrot.lane.b32.xlu0 %v1612, 32
    %v1701 = vpop.permute.xlu0 %1700
    %v1703 = vmul.f32 %v1698, %v1701
    %1705 = vrot.lane.b32.xlu0 %v1698, 64
    %v1706 = vpop.permute.xlu0 %1705
    %v1708 = vmul.f32 %v1698, %v1706
    %1710 = vrot.lane.b32.xlu0 %v1708, 32
    %v1711 = vpop.permute.xlu0 %1710
    %v1713 = vadd.f32 %v1703, %v1711
    %v1714 = vtanh.pop %v1713
    %1716 = vrot.lane.b32.xlu0 %v1714, 64
    %v1717 = vpop.permute.xlu0 %1716
    %v1719 = vmul.f32 %v1698, %v1717
    %v1720 = vld [vmem:[%s601] sm:$0xff]
    %vm1721 = vcmp.gt.f32.partialorder %v1720, 0.5
    %1723 = vrot.lane.b32.xlu0 %v1719, 32
    %v1724 = vpop.permute.xlu0 %1723
    %v1726 = vsel %vm1721, %v1724, %v1607
    %1728 = vrot.lane.b32.xlu0 %v1713, 96
    %v1729 = vpop.permute.xlu0 %1728
    %v1731 = vsel %vm1721, %v1729, %v1612
    %v1732 = vsel %vm1721, %v1724, 0.0
    %s1733 = scalar_lea.vmem [#allocation12], 16
    %1734 = vst.msk [vmem:[%s1733] sm:$0xff] %vm88, %v1732
    %v1735 = vld [vmem:[%s617] sm:$0xff]
    %v1737 = vsel %vm88, %v1726, 0
    %1739 = vmatprep.subr.mxu0 0.0
    %1740 = vmatpush1.msra.mxu0 0.0
    %1741 = vmatprep.subr.mxu0 0.0
    %1742 = vmatpush1.msra.mxu0 0.0
    %1743 = vmatprep.subr.mxu0 0.0
    %1744 = vmatpush1.msra.mxu0 0.0
    %1745 = vmatprep.subr.mxu0 0.0
    %1746 = vmatpush1.msra.mxu0 0.0
    %1747 = vmatprep.subr.mxu0 0.0
    %1748 = vmatpush1.msra.mxu0 0.0
    %1749 = vmatprep.subr.mxu0 0.0
    %1750 = vmatpush1.msra.mxu0 0.0
    %1751 = vmatprep.subr.mxu0 0.0
    %1752 = vmatpush1.msra.mxu0 0.0
    %1753 = vmatprep.subr.mxu0 0.0
    %1754 = vmatpush1.msra.mxu0 0.0
    %1755 = vmatprep.subr.mxu0 0.0
    %1756 = vmatpush1.msra.mxu0 0.0
    %1757 = vmatprep.subr.mxu0 0.0
    %1758 = vmatpush1.msra.mxu0 0.0
    %1759 = vmatprep.subr.mxu0 0.0
    %1760 = vmatpush1.msra.mxu0 0.0
    %1761 = vmatprep.subr.mxu0 0.0
    %1762 = vmatpush1.msra.mxu0 0.0
    %1763 = vmatprep.subr.mxu0 0.0
    %1764 = vmatpush1.msra.mxu0 %v1228
    %1765 = vmatprep.subr.mxu0 0.0
    %1766 = vmatpush1.msra.mxu0 %v1227
    %1767 = vmatprep.subr.mxu0 0.0
    %1768 = vmatpush1.msra.mxu0 %v1226
    %1769 = vmatprep.subr.mxu0 0.0
    %1770 = vmatpush1.msra.mxu0 %v1225
    %1771 = vmatprep.subr.mxu0 0.0
    %1772 = vmatpush2.msra.mxu0 0.0
    %1773 = vmatprep.subr.mxu0 0.0
    %1774 = vmatpush2.msra.mxu0 0.0
    %1775 = vmatprep.subr.mxu0 0.0
    %1776 = vmatpush2.msra.mxu0 0.0
    %1777 = vmatprep.subr.mxu0 0.0
    %1778 = vmatpush2.msra.mxu0 0.0
    %1779 = vmatprep.subr.mxu0 0.0
    %1780 = vmatpush2.msra.mxu0 0.0
    %1781 = vmatprep.subr.mxu0 0.0
    %1782 = vmatpush2.msra.mxu0 0.0
    %1783 = vmatprep.subr.mxu0 0.0
    %1784 = vmatpush2.msra.mxu0 0.0
    %1785 = vmatprep.subr.mxu0 0.0
    %1786 = vmatpush2.msra.mxu0 0.0
    %1787 = vmatprep.subr.mxu0 0.0
    %1788 = vmatpush2.msra.mxu0 0.0
    %1789 = vmatprep.subr.mxu0 0.0
    %1790 = vmatpush2.msra.mxu0 0.0
    %1791 = vmatprep.subr.mxu0 0.0
    %1792 = vmatpush2.msra.mxu0 0.0
    %1793 = vmatprep.subr.mxu0 0.0
    %1794 = vmatpush2.msra.mxu0 0.0
    %1795 = vmatprep.subr.mxu0 0.0
    %1796 = vmatpush2.msra.mxu0 0.0
    %1797 = vmatprep.subr.mxu0 0.0
    %1798 = vmatpush2.msra.mxu0 0.0
    %1799 = vmatprep.subr.mxu0 0.0
    %1800 = vmatpush2.msra.mxu0 0.0
    %1801 = vmatprep.subr.mxu0 0.0
    %1802 = vmatpush2.msra.mxu0 0.0
    %1803 = vmatprep.mubr.f32.mxu0 0.0
    %1804 = vmatmul.mubr.f32.gmra.mxu0 %v1737
    %v1805 = vpop.f32.mrf.mxu0
    %v1806 = vadd.f32 0.0, %v1805
    %v1807 = vpop.f32.mrf.mxu0
    %1808 = vdwg.mxu0
    %v1809 = vadd.f32 %v1735, %v1806
    %v1810 = vtanh.pop %v1809
    %v1811 = vxor.u32 %v1809, 2147483648
    %v1812 = vmul.f32 %v1811, 1.442695
    %v1813 = vpow.pop %v1812
    %v1814 = vadd.f32 %v1813, 1.0
    %v1815 = vrcp.pop %v1814
    %v1816 = vmul.f32 1.0, %v1815
    %v1817 = vsel %vm101, %v1810, %v1816
    %1819 = vrot.lane.b32.xlu0 %v1731, 32
    %v1820 = vpop.permute.xlu0 %1819
    %v1822 = vmul.f32 %v1817, %v1820
    %1824 = vrot.lane.b32.xlu0 %v1817, 64
    %v1825 = vpop.permute.xlu0 %1824
    %v1827 = vmul.f32 %v1817, %v1825
    %1829 = vrot.lane.b32.xlu0 %v1827, 32
    %v1830 = vpop.permute.xlu0 %1829
    %v1832 = vadd.f32 %v1822, %v1830
    %v1833 = vtanh.pop %v1832
    %1835 = vrot.lane.b32.xlu0 %v1833, 64
    %v1836 = vpop.permute.xlu0 %1835
    %v1838 = vmul.f32 %v1817, %v1836
    %v1839 = vld [vmem:[%s722] sm:$0xff]
    %vm1840 = vcmp.gt.f32.partialorder %v1839, 0.5
    %1842 = vrot.lane.b32.xlu0 %v1838, 32
    %v1843 = vpop.permute.xlu0 %1842
    %v1845 = vsel %vm1840, %v1843, %v1726
    %1847 = vrot.lane.b32.xlu0 %v1832, 96
    %v1848 = vpop.permute.xlu0 %1847
    %v1850 = vsel %vm1840, %v1848, %v1731
    %v1851 = vsel %vm1840, %v1843, 0.0
    %s1852 = scalar_lea.vmem [#allocation12], 24
    %1853 = vst.msk [vmem:[%s1852] sm:$0xff] %vm88, %v1851
    %v1854 = vld [vmem:[%s738] sm:$0xff]
    %v1856 = vsel %vm88, %v1845, 0
    %1858 = vmatprep.subr.mxu0 0.0
    %1859 = vmatpush1.msra.mxu0 0.0
    %1860 = vmatprep.subr.mxu0 0.0
    %1861 = vmatpush1.msra.mxu0 0.0
    %1862 = vmatprep.subr.mxu0 0.0
    %1863 = vmatpush1.msra.mxu0 0.0
    %1864 = vmatprep.subr.mxu0 0.0
    %1865 = vmatpush1.msra.mxu0 0.0
    %1866 = vmatprep.subr.mxu0 0.0
    %1867 = vmatpush1.msra.mxu0 0.0
    %1868 = vmatprep.subr.mxu0 0.0
    %1869 = vmatpush1.msra.mxu0 0.0
    %1870 = vmatprep.subr.mxu0 0.0
    %1871 = vmatpush1.msra.mxu0 0.0
    %1872 = vmatprep.subr.mxu0 0.0
    %1873 = vmatpush1.msra.mxu0 0.0
    %1874 = vmatprep.subr.mxu0 0.0
    %1875 = vmatpush1.msra.mxu0 0.0
    %1876 = vmatprep.subr.mxu0 0.0
    %1877 = vmatpush1.msra.mxu0 0.0
    %1878 = vmatprep.subr.mxu0 0.0
    %1879 = vmatpush1.msra.mxu0 0.0
    %1880 = vmatprep.subr.mxu0 0.0
    %1881 = vmatpush1.msra.mxu0 0.0
    %1882 = vmatprep.subr.mxu0 0.0
    %1883 = vmatpush1.msra.mxu0 %v1228
    %1884 = vmatprep.subr.mxu0 0.0
    %1885 = vmatpush1.msra.mxu0 %v1227
    %1886 = vmatprep.subr.mxu0 0.0
    %1887 = vmatpush1.msra.mxu0 %v1226
    %1888 = vmatprep.subr.mxu0 0.0
    %1889 = vmatpush1.msra.mxu0 %v1225
    %1890 = vmatprep.subr.mxu0 0.0
    %1891 = vmatpush2.msra.mxu0 0.0
    %1892 = vmatprep.subr.mxu0 0.0
    %1893 = vmatpush2.msra.mxu0 0.0
    %1894 = vmatprep.subr.mxu0 0.0
    %1895 = vmatpush2.msra.mxu0 0.0
    %1896 = vmatprep.subr.mxu0 0.0
    %1897 = vmatpush2.msra.mxu0 0.0
    %1898 = vmatprep.subr.mxu0 0.0
    %1899 = vmatpush2.msra.mxu0 0.0
    %1900 = vmatprep.subr.mxu0 0.0
    %1901 = vmatpush2.msra.mxu0 0.0
    %1902 = vmatprep.subr.mxu0 0.0
    %1903 = vmatpush2.msra.mxu0 0.0
    %1904 = vmatprep.subr.mxu0 0.0
    %1905 = vmatpush2.msra.mxu0 0.0
    %1906 = vmatprep.subr.mxu0 0.0
    %1907 = vmatpush2.msra.mxu0 0.0
    %1908 = vmatprep.subr.mxu0 0.0
    %1909 = vmatpush2.msra.mxu0 0.0
    %1910 = vmatprep.subr.mxu0 0.0
    %1911 = vmatpush2.msra.mxu0 0.0
    %1912 = vmatprep.subr.mxu0 0.0
    %1913 = vmatpush2.msra.mxu0 0.0
    %1914 = vmatprep.subr.mxu0 0.0
    %1915 = vmatpush2.msra.mxu0 0.0
    %1916 = vmatprep.subr.mxu0 0.0
    %1917 = vmatpush2.msra.mxu0 0.0
    %1918 = vmatprep.subr.mxu0 0.0
    %1919 = vmatpush2.msra.mxu0 0.0
    %1920 = vmatprep.subr.mxu0 0.0
    %1921 = vmatpush2.msra.mxu0 0.0
    %1922 = vmatprep.mubr.f32.mxu0 0.0
    %1923 = vmatmul.mubr.f32.gmra.mxu0 %v1856
    %v1924 = vpop.f32.mrf.mxu0
    %v1925 = vadd.f32 0.0, %v1924
    %v1926 = vpop.f32.mrf.mxu0
    %1927 = vdwg.mxu0
    %v1928 = vadd.f32 %v1854, %v1925
    %v1929 = vtanh.pop %v1928
    %v1930 = vxor.u32 %v1928, 2147483648
    %v1931 = vmul.f32 %v1930, 1.442695
    %v1932 = vpow.pop %v1931
    %v1933 = vadd.f32 %v1932, 1.0
    %v1934 = vrcp.pop %v1933
    %v1935 = vmul.f32 1.0, %v1934
    %v1936 = vsel %vm101, %v1929, %v1935
    %1938 = vrot.lane.b32.xlu0 %v1850, 32
    %v1939 = vpop.permute.xlu0 %1938
    %v1941 = vmul.f32 %v1936, %v1939
    %1943 = vrot.lane.b32.xlu0 %v1936, 64
    %v1944 = vpop.permute.xlu0 %1943
    %v1946 = vmul.f32 %v1936, %v1944
    %1948 = vrot.lane.b32.xlu0 %v1946, 32
    %v1949 = vpop.permute.xlu0 %1948
    %v1951 = vadd.f32 %v1941, %v1949
    %v1952 = vtanh.pop %v1951
    %1954 = vrot.lane.b32.xlu0 %v1952, 64
    %v1955 = vpop.permute.xlu0 %1954
    %v1957 = vmul.f32 %v1936, %v1955
    %v1958 = vld [vmem:[%s843] sm:$0xff]
    %vm1959 = vcmp.gt.f32.partialorder %v1958, 0.5
    %1961 = vrot.lane.b32.xlu0 %v1957, 32
    %v1962 = vpop.permute.xlu0 %1961
    %v1964 = vsel %vm1959, %v1962, %v1845
    %1966 = vrot.lane.b32.xlu0 %v1951, 96
    %v1967 = vpop.permute.xlu0 %1966
    %v1969 = vsel %vm1959, %v1967, %v1850
    %v1970 = vsel %vm1959, %v1962, 0.0
    %s1971 = scalar_lea.vmem [#allocation12], 32
    %1972 = vst.msk [vmem:[%s1971] sm:$0xff] %vm88, %v1970
    %v1973 = vld [vmem:[%s859] sm:$0xff]
    %v1975 = vsel %vm88, %v1964, 0
    %1977 = vmatprep.subr.mxu0 0.0
    %1978 = vmatpush1.msra.mxu0 0.0
    %1979 = vmatprep.subr.mxu0 0.0
    %1980 = vmatpush1.msra.mxu0 0.0
    %1981 = vmatprep.subr.mxu0 0.0
    %1982 = vmatpush1.msra.mxu0 0.0
    %1983 = vmatprep.subr.mxu0 0.0
    %1984 = vmatpush1.msra.mxu0 0.0
    %1985 = vmatprep.subr.mxu0 0.0
    %1986 = vmatpush1.msra.mxu0 0.0
    %1987 = vmatprep.subr.mxu0 0.0
    %1988 = vmatpush1.msra.mxu0 0.0
    %1989 = vmatprep.subr.mxu0 0.0
    %1990 = vmatpush1.msra.mxu0 0.0
    %1991 = vmatprep.subr.mxu0 0.0
    %1992 = vmatpush1.msra.mxu0 0.0
    %1993 = vmatprep.subr.mxu0 0.0
    %1994 = vmatpush1.msra.mxu0 0.0
    %1995 = vmatprep.subr.mxu0 0.0
    %1996 = vmatpush1.msra.mxu0 0.0
    %1997 = vmatprep.subr.mxu0 0.0
    %1998 = vmatpush1.msra.mxu0 0.0
    %1999 = vmatprep.subr.mxu0 0.0
    %2000 = vmatpush1.msra.mxu0 0.0
    %2001 = vmatprep.subr.mxu0 0.0
    %2002 = vmatpush1.msra.mxu0 %v1228
    %2003 = vmatprep.subr.mxu0 0.0
    %2004 = vmatpush1.msra.mxu0 %v1227
    %2005 = vmatprep.subr.mxu0 0.0
    %2006 = vmatpush1.msra.mxu0 %v1226
    %2007 = vmatprep.subr.mxu0 0.0
    %2008 = vmatpush1.msra.mxu0 %v1225
    %2009 = vmatprep.subr.mxu0 0.0
    %2010 = vmatpush2.msra.mxu0 0.0
    %2011 = vmatprep.subr.mxu0 0.0
    %2012 = vmatpush2.msra.mxu0 0.0
    %2013 = vmatprep.subr.mxu0 0.0
    %2014 = vmatpush2.msra.mxu0 0.0
    %2015 = vmatprep.subr.mxu0 0.0
    %2016 = vmatpush2.msra.mxu0 0.0
    %2017 = vmatprep.subr.mxu0 0.0
    %2018 = vmatpush2.msra.mxu0 0.0
    %2019 = vmatprep.subr.mxu0 0.0
    %2020 = vmatpush2.msra.mxu0 0.0
    %2021 = vmatprep.subr.mxu0 0.0
    %2022 = vmatpush2.msra.mxu0 0.0
    %2023 = vmatprep.subr.mxu0 0.0
    %2024 = vmatpush2.msra.mxu0 0.0
    %2025 = vmatprep.subr.mxu0 0.0
    %2026 = vmatpush2.msra.mxu0 0.0
    %2027 = vmatprep.subr.mxu0 0.0
    %2028 = vmatpush2.msra.mxu0 0.0
    %2029 = vmatprep.subr.mxu0 0.0
    %2030 = vmatpush2.msra.mxu0 0.0
    %2031 = vmatprep.subr.mxu0 0.0
    %2032 = vmatpush2.msra.mxu0 0.0
    %2033 = vmatprep.subr.mxu0 0.0
    %2034 = vmatpush2.msra.mxu0 0.0
    %2035 = vmatprep.subr.mxu0 0.0
    %2036 = vmatpush2.msra.mxu0 0.0
    %2037 = vmatprep.subr.mxu0 0.0
    %2038 = vmatpush2.msra.mxu0 0.0
    %2039 = vmatprep.subr.mxu0 0.0
    %2040 = vmatpush2.msra.mxu0 0.0
    %2041 = vmatprep.mubr.f32.mxu0 0.0
    %2042 = vmatmul.mubr.f32.gmra.mxu0 %v1975
    %v2043 = vpop.f32.mrf.mxu0
    %v2044 = vadd.f32 0.0, %v2043
    %v2045 = vpop.f32.mrf.mxu0
    %2046 = vdwg.mxu0
    %v2047 = vadd.f32 %v1973, %v2044
    %v2048 = vtanh.pop %v2047
    %v2049 = vxor.u32 %v2047, 2147483648
    %v2050 = vmul.f32 %v2049, 1.442695
    %v2051 = vpow.pop %v2050
    %v2052 = vadd.f32 %v2051, 1.0
    %v2053 = vrcp.pop %v2052
    %v2054 = vmul.f32 1.0, %v2053
    %v2055 = vsel %vm101, %v2048, %v2054
    %2057 = vrot.lane.b32.xlu0 %v1969, 32
    %v2058 = vpop.permute.xlu0 %2057
    %v2060 = vmul.f32 %v2055, %v2058
    %2062 = vrot.lane.b32.xlu0 %v2055, 64
    %v2063 = vpop.permute.xlu0 %2062
    %v2065 = vmul.f32 %v2055, %v2063
    %2067 = vrot.lane.b32.xlu0 %v2065, 32
    %v2068 = vpop.permute.xlu0 %2067
    %v2070 = vadd.f32 %v2060, %v2068
    %v2071 = vtanh.pop %v2070
    %2073 = vrot.lane.b32.xlu0 %v2071, 64
    %v2074 = vpop.permute.xlu0 %2073
    %v2076 = vmul.f32 %v2055, %v2074
    %v2077 = vld [vmem:[%s964] sm:$0xff]
    %vm2078 = vcmp.gt.f32.partialorder %v2077, 0.5
    %2080 = vrot.lane.b32.xlu0 %v2076, 32
    %v2081 = vpop.permute.xlu0 %2080
    %v2083 = vsel %vm2078, %v2081, %v1964
    %2085 = vrot.lane.b32.xlu0 %v2070, 96
    %v2086 = vpop.permute.xlu0 %2085
    %v2088 = vsel %vm2078, %v2086, %v1969
    %v2089 = vsel %vm2078, %v2081, 0.0
    %s2090 = scalar_lea.vmem [#allocation12], 40
    %2091 = vst.msk [vmem:[%s2090] sm:$0xff] %vm88, %v2089
    %v2092 = vld [vmem:[%s980] sm:$0xff]
    %v2094 = vsel %vm88, %v2083, 0
    %2096 = vmatprep.subr.mxu0 0.0
    %2097 = vmatpush1.msra.mxu0 0.0
    %2098 = vmatprep.subr.mxu0 0.0
    %2099 = vmatpush1.msra.mxu0 0.0
    %2100 = vmatprep.subr.mxu0 0.0
    %2101 = vmatpush1.msra.mxu0 0.0
    %2102 = vmatprep.subr.mxu0 0.0
    %2103 = vmatpush1.msra.mxu0 0.0
    %2104 = vmatprep.subr.mxu0 0.0
    %2105 = vmatpush1.msra.mxu0 0.0
    %2106 = vmatprep.subr.mxu0 0.0
    %2107 = vmatpush1.msra.mxu0 0.0
    %2108 = vmatprep.subr.mxu0 0.0
    %2109 = vmatpush1.msra.mxu0 0.0
    %2110 = vmatprep.subr.mxu0 0.0
    %2111 = vmatpush1.msra.mxu0 0.0
    %2112 = vmatprep.subr.mxu0 0.0
    %2113 = vmatpush1.msra.mxu0 0.0
    %2114 = vmatprep.subr.mxu0 0.0
    %2115 = vmatpush1.msra.mxu0 0.0
    %2116 = vmatprep.subr.mxu0 0.0
    %2117 = vmatpush1.msra.mxu0 0.0
    %2118 = vmatprep.subr.mxu0 0.0
    %2119 = vmatpush1.msra.mxu0 0.0
    %2120 = vmatprep.subr.mxu0 0.0
    %2121 = vmatpush1.msra.mxu0 %v1228
    %2122 = vmatprep.subr.mxu0 0.0
    %2123 = vmatpush1.msra.mxu0 %v1227
    %2124 = vmatprep.subr.mxu0 0.0
    %2125 = vmatpush1.msra.mxu0 %v1226
    %2126 = vmatprep.subr.mxu0 0.0
    %2127 = vmatpush1.msra.mxu0 %v1225
    %2128 = vmatprep.subr.mxu0 0.0
    %2129 = vmatpush2.msra.mxu0 0.0
    %2130 = vmatprep.subr.mxu0 0.0
    %2131 = vmatpush2.msra.mxu0 0.0
    %2132 = vmatprep.subr.mxu0 0.0
    %2133 = vmatpush2.msra.mxu0 0.0
    %2134 = vmatprep.subr.mxu0 0.0
    %2135 = vmatpush2.msra.mxu0 0.0
    %2136 = vmatprep.subr.mxu0 0.0
    %2137 = vmatpush2.msra.mxu0 0.0
    %2138 = vmatprep.subr.mxu0 0.0
    %2139 = vmatpush2.msra.mxu0 0.0
    %2140 = vmatprep.subr.mxu0 0.0
    %2141 = vmatpush2.msra.mxu0 0.0
    %2142 = vmatprep.subr.mxu0 0.0
    %2143 = vmatpush2.msra.mxu0 0.0
    %2144 = vmatprep.subr.mxu0 0.0
    %2145 = vmatpush2.msra.mxu0 0.0
    %2146 = vmatprep.subr.mxu0 0.0
    %2147 = vmatpush2.msra.mxu0 0.0
    %2148 = vmatprep.subr.mxu0 0.0
    %2149 = vmatpush2.msra.mxu0 0.0
    %2150 = vmatprep.subr.mxu0 0.0
    %2151 = vmatpush2.msra.mxu0 0.0
    %2152 = vmatprep.subr.mxu0 0.0
    %2153 = vmatpush2.msra.mxu0 0.0
    %2154 = vmatprep.subr.mxu0 0.0
    %2155 = vmatpush2.msra.mxu0 0.0
    %2156 = vmatprep.subr.mxu0 0.0
    %2157 = vmatpush2.msra.mxu0 0.0
    %2158 = vmatprep.subr.mxu0 0.0
    %2159 = vmatpush2.msra.mxu0 0.0
    %2160 = vmatprep.mubr.f32.mxu0 0.0
    %2161 = vmatmul.mubr.f32.gmra.mxu0 %v2094
    %v2162 = vpop.f32.mrf.mxu0
    %v2163 = vadd.f32 0.0, %v2162
    %v2164 = vpop.f32.mrf.mxu0
    %2165 = vdwg.mxu0
    %v2166 = vadd.f32 %v2092, %v2163
    %v2167 = vtanh.pop %v2166
    %v2168 = vxor.u32 %v2166, 2147483648
    %v2169 = vmul.f32 %v2168, 1.442695
    %v2170 = vpow.pop %v2169
    %v2171 = vadd.f32 %v2170, 1.0
    %v2172 = vrcp.pop %v2171
    %v2173 = vmul.f32 1.0, %v2172
    %v2174 = vsel %vm101, %v2167, %v2173
    %2176 = vrot.lane.b32.xlu0 %v2088, 32
    %v2177 = vpop.permute.xlu0 %2176
    %v2179 = vmul.f32 %v2174, %v2177
    %2181 = vrot.lane.b32.xlu0 %v2174, 64
    %v2182 = vpop.permute.xlu0 %2181
    %v2184 = vmul.f32 %v2174, %v2182
    %2186 = vrot.lane.b32.xlu0 %v2184, 32
    %v2187 = vpop.permute.xlu0 %2186
    %v2189 = vadd.f32 %v2179, %v2187
    %v2190 = vtanh.pop %v2189
    %2192 = vrot.lane.b32.xlu0 %v2190, 64
    %v2193 = vpop.permute.xlu0 %2192
    %v2195 = vmul.f32 %v2174, %v2193
    %v2196 = vld [vmem:[%s1085] sm:$0xff]
    %vm2197 = vcmp.gt.f32.partialorder %v2196, 0.5
    %2199 = vrot.lane.b32.xlu0 %v2195, 32
    %v2200 = vpop.permute.xlu0 %2199
    %v2202 = vsel %vm2197, %v2200, %v2083
    %2204 = vrot.lane.b32.xlu0 %v2189, 96
    %v2205 = vpop.permute.xlu0 %2204
    %v2207 = vsel %vm2197, %v2205, %v2088
    %v2208 = vsel %vm2197, %v2200, 0.0
    %s2209 = scalar_lea.vmem [#allocation12], 48
    %2210 = vst.msk [vmem:[%s2209] sm:$0xff] %vm88, %v2208
    %v2211 = vld [vmem:[%s1101] sm:$0xff]
    %v2213 = vsel %vm88, %v2202, 0
    %2215 = vmatprep.subr.mxu0 0.0
    %2216 = vmatpush1.msra.mxu0 0.0
    %2217 = vmatprep.subr.mxu0 0.0
    %2218 = vmatpush1.msra.mxu0 0.0
    %2219 = vmatprep.subr.mxu0 0.0
    %2220 = vmatpush1.msra.mxu0 0.0
    %2221 = vmatprep.subr.mxu0 0.0
    %2222 = vmatpush1.msra.mxu0 0.0
    %2223 = vmatprep.subr.mxu0 0.0
    %2224 = vmatpush1.msra.mxu0 0.0
    %2225 = vmatprep.subr.mxu0 0.0
    %2226 = vmatpush1.msra.mxu0 0.0
    %2227 = vmatprep.subr.mxu0 0.0
    %2228 = vmatpush1.msra.mxu0 0.0
    %2229 = vmatprep.subr.mxu0 0.0
    %2230 = vmatpush1.msra.mxu0 0.0
    %2231 = vmatprep.subr.mxu0 0.0
    %2232 = vmatpush1.msra.mxu0 0.0
    %2233 = vmatprep.subr.mxu0 0.0
    %2234 = vmatpush1.msra.mxu0 0.0
    %2235 = vmatprep.subr.mxu0 0.0
    %2236 = vmatpush1.msra.mxu0 0.0
    %2237 = vmatprep.subr.mxu0 0.0
    %2238 = vmatpush1.msra.mxu0 0.0
    %2239 = vmatprep.subr.mxu0 0.0
    %2240 = vmatpush1.msra.mxu0 %v1228
    %2241 = vmatprep.subr.mxu0 0.0
    %2242 = vmatpush1.msra.mxu0 %v1227
    %2243 = vmatprep.subr.mxu0 0.0
    %2244 = vmatpush1.msra.mxu0 %v1226
    %2245 = vmatprep.subr.mxu0 0.0
    %2246 = vmatpush1.msra.mxu0 %v1225
    %2247 = vmatprep.subr.mxu0 0.0
    %2248 = vmatpush2.msra.mxu0 0.0
    %2249 = vmatprep.subr.mxu0 0.0
    %2250 = vmatpush2.msra.mxu0 0.0
    %2251 = vmatprep.subr.mxu0 0.0
    %2252 = vmatpush2.msra.mxu0 0.0
    %2253 = vmatprep.subr.mxu0 0.0
    %2254 = vmatpush2.msra.mxu0 0.0
    %2255 = vmatprep.subr.mxu0 0.0
    %2256 = vmatpush2.msra.mxu0 0.0
    %2257 = vmatprep.subr.mxu0 0.0
    %2258 = vmatpush2.msra.mxu0 0.0
    %2259 = vmatprep.subr.mxu0 0.0
    %2260 = vmatpush2.msra.mxu0 0.0
    %2261 = vmatprep.subr.mxu0 0.0
    %2262 = vmatpush2.msra.mxu0 0.0
    %2263 = vmatprep.subr.mxu0 0.0
    %2264 = vmatpush2.msra.mxu0 0.0
    %2265 = vmatprep.subr.mxu0 0.0
    %2266 = vmatpush2.msra.mxu0 0.0
    %2267 = vmatprep.subr.mxu0 0.0
    %2268 = vmatpush2.msra.mxu0 0.0
    %2269 = vmatprep.subr.mxu0 0.0
    %2270 = vmatpush2.msra.mxu0 0.0
    %2271 = vmatprep.subr.mxu0 0.0
    %2272 = vmatpush2.msra.mxu0 0.0
    %2273 = vmatprep.subr.mxu0 0.0
    %2274 = vmatpush2.msra.mxu0 0.0
    %2275 = vmatprep.subr.mxu0 0.0
    %2276 = vmatpush2.msra.mxu0 0.0
    %2277 = vmatprep.subr.mxu0 0.0
    %2278 = vmatpush2.msra.mxu0 0.0
    %2279 = vmatprep.mubr.f32.mxu0 0.0
    %2280 = vmatmul.mubr.f32.gmra.mxu0 %v2213
    %v2281 = vpop.f32.mrf.mxu0
    %v2282 = vadd.f32 0.0, %v2281
    %v2283 = vpop.f32.mrf.mxu0
    %2284 = vdwg.mxu0
    %v2285 = vadd.f32 %v2211, %v2282
    %v2286 = vtanh.pop %v2285
    %v2287 = vxor.u32 %v2285, 2147483648
    %v2288 = vmul.f32 %v2287, 1.442695
    %v2289 = vpow.pop %v2288
    %v2290 = vadd.f32 %v2289, 1.0
    %v2291 = vrcp.pop %v2290
    %v2292 = vmul.f32 1.0, %v2291
    %v2293 = vsel %vm101, %v2286, %v2292
    %2295 = vrot.lane.b32.xlu0 %v2207, 32
    %v2296 = vpop.permute.xlu0 %2295
    %v2298 = vmul.f32 %v2293, %v2296
    %2300 = vrot.lane.b32.xlu0 %v2293, 64
    %v2301 = vpop.permute.xlu0 %2300
    %v2303 = vmul.f32 %v2293, %v2301
    %2305 = vrot.lane.b32.xlu0 %v2303, 32
    %v2306 = vpop.permute.xlu0 %2305
    %v2308 = vadd.f32 %v2298, %v2306
    %v2309 = vtanh.pop %v2308
    %2311 = vrot.lane.b32.xlu0 %v2309, 64
    %v2312 = vpop.permute.xlu0 %2311
    %v2314 = vmul.f32 %v2293, %v2312
    %v2315 = vld [vmem:[%s1206] sm:$0xff]
    %vm2316 = vcmp.gt.f32.partialorder %v2315, 0.5
    %2318 = vrot.lane.b32.xlu0 %v2314, 32
    %v2319 = vpop.permute.xlu0 %2318
    %v2321 = vsel %vm2316, %v2319, %v2202
    %2323 = vrot.lane.b32.xlu0 %v2308, 96
    %v2324 = vpop.permute.xlu0 %2323
    %v2326 = vsel %vm2316, %v2324, %v2207
    %v2327 = vsel %vm2316, %v2319, 0.0
    %s2328 = scalar_lea.vmem [#allocation12], 56
    %2329 = vst.msk [vmem:[%s2328] sm:$0xff] %vm88, %v2327
    %s2330 = scalar_lea.vmem [#allocation13], 8
    %2331 = vst.msk [vmem:[%s2330] sm:$0xff] %vm88, %v2321
    %s2332 = scalar_lea.vmem [#allocation15], 8
    %2333 = vst.msk [vmem:[%s2332] sm:$0xff] %vm88, %v2326
    // Predicated region
    $region38: #{tpu_custom_call.1} parent=1 // pred_check
      _
    $region39: #{tpu_custom_call.1} parent=1 // pred_check_branch
      %2335 = sbr.rel (0) target = $region41
    $region40: #{tpu_custom_call.1} parent=1 // pred_region
      %s2337 = ssub.s32 1024, 1024
      %2338 = vsyncadd [#allocation6], %s2337
      %s2339 = sshll.u32 [#allocation12], 4
      %s2340 = int_to_ptr.vmem [resolvable:$true] %s2339
      %2345 = dma.vmem_to_hbm [thread:$0]  %s2340, 1024, %s5, [#allocation6], 128, 128, 8
    $region41: #{tpu_custom_call.1} parent=1 // pred_fallthru
      _
    // Predicated region
    $region42: #{tpu_custom_call.1} parent=1 // pred_check
      _
    $region43: #{tpu_custom_call.1} parent=1 // pred_check_branch
      %2347 = sbr.rel (0) target = $region45
    $region44: #{tpu_custom_call.1} parent=1 // pred_region
      %s2349 = ssub.s32 256, 256
      %2350 = vsyncadd [#allocation14], %s2349
      %s2351 = sshll.u32 [#allocation13], 4
      %s2352 = int_to_ptr.vmem [resolvable:$true] %s2351
      %2357 = dma.vmem_to_hbm [thread:$0]  %s2352, 256, %s6, [#allocation14], 128, 128, 8
    $region45: #{tpu_custom_call.1} parent=1 // pred_fallthru
      _
    // Predicated region
    $region46: #{tpu_custom_call.1} parent=1 // pred_check
      _
    $region47: #{tpu_custom_call.1} parent=1 // pred_check_branch
      %2359 = sbr.rel (0) target = $region49
    $region48: #{tpu_custom_call.1} parent=1 // pred_region
      %s2361 = ssub.s32 256, 256
      %2362 = vsyncadd [#allocation14], %s2361
      %s2363 = sshll.u32 [#allocation15], 4
      %s2364 = int_to_ptr.vmem [resolvable:$true] %s2363
      %2369 = dma.vmem_to_hbm [thread:$0]  %s2364, 256, %s7, [#allocation14], 128, 128, 8
    $region49: #{tpu_custom_call.1} parent=1 // pred_fallthru
      _
    // Predicated region
    $region50: #{tpu_custom_call.1} parent=1 // pred_check
      _
    $region51: #{tpu_custom_call.1} parent=1 // pred_check_branch
      %2371 = sbr.rel (0) target = $region53
    $region52: #{tpu_custom_call.1} parent=1 // pred_region
      %2372 = dma.done [#allocation6], 1024
    $region53: #{tpu_custom_call.1} parent=1 // pred_fallthru
      _
    // Predicated region
    $region54: #{tpu_custom_call.1} parent=1 // pred_check
      _
    $region55: #{tpu_custom_call.1} parent=1 // pred_check_branch
      %2374 = sbr.rel (0) target = $region57
    $region56: #{tpu_custom_call.1} parent=1 // pred_region
      %2375 = dma.done [#allocation14], 256
    $region57: #{tpu_custom_call.1} parent=1 // pred_fallthru
      _
    // Predicated region
    $region58: #{tpu_custom_call.1} parent=1 // pred_check
      _
    $region59: #{tpu_custom_call.1} parent=1 // pred_check_branch
      %2377 = sbr.rel (0) target = $region61
    $region60: #{tpu_custom_call.1} parent=1 // pred_region
      %2378 = dma.done [#allocation14], 256
    $region61: #{tpu_custom_call.1} parent=1 // pred_fallthru
      _
    %2379 = vsyncpa [#allocation5], 1
    %2380 = vsyncpa [#allocation8], 1
    %2381 = vsyncpa [#allocation11], 1
    %2382 = vsyncpa [#allocation6], 1
    %2383 = vsyncpa [#allocation14], 1

</llo_original>
